<compile_context>
chip_gen: v7x
topology: tpu7x:2x2x1
jax: 0.10.0
libtpu: 0.0.40
codegen_flags: <defaults>
</compile_context>

<pallas_src>
import functools

import jax
import jax.numpy as jnp
from jax.experimental import pallas as pl
from jax.experimental.pallas import tpu as pltpu

LANE = 128                                   # TPU lane width
_FUSED_VMEM_BUDGET = 24 * 1024 * 1024        # resident working set allowed for fused path
_FUSED_VMEM_LIMIT = 48 * 1024 * 1024         # scoped-VMEM cap requested for fused kernel
_TILED_VMEM_LIMIT = 32 * 1024 * 1024         # raise v5e's 16 MiB scoped default


# -----------------------------------------------------------------------------
# Small helpers
# -----------------------------------------------------------------------------
def _round_up(x, m):
    return ((x + m - 1) // m) * m


def _pad2d(x, rows, cols):
    return jnp.pad(x, ((0, rows - x.shape[0]), (0, cols - x.shape[1])))


def _pad1d(x, n):
    return jnp.pad(x, (0, n - x.shape[0]))


def _pick_row_tile(n_pad):
    # Large row tiles amortize the ~0.35us/grid-step overhead; acc scratch is only
    # tm * f_out * 4 bytes.  (On v7x prefer n_pad//tm even so the parallel axis splits
    # evenly across the 2 TensorCores.)
    for t in (512, 256, 128):
        if n_pad % t == 0:
            return t
    return 128  # unreachable: n_pad is always a multiple of 128


def _pick_k_tile(n_pad):
    # 256 fills the 256-deep MXU pass on v6e/v7x; 128 is the fallback.
    return 256 if n_pad % 256 == 0 else 128


# -----------------------------------------------------------------------------
# Fused whole-forward kernel (single grid point, everything resident in VMEM)
# -----------------------------------------------------------------------------
def _fused_forward_kernel(a_ref, x_ref, w1_ref, b1_ref, hw_ref, hb_ref,
                          lw_ref, lb_ref, o_ref, act_ref, *, depth):
    # a_ref : [N_pad, N_pad] bf16 normalized adjacency (read from VMEM per use)
    # x_ref : [N_pad, F_pad] f32 node features
    # w1_ref: [F_pad, H_pad] bf16, b1_ref: [1, H_pad] f32
    # hw_ref: [max(depth-1,1), H_pad, H_pad] bf16, hb_ref: [max(depth-1,1), 1, H_pad] f32
    # lw_ref: [H_pad, E_pad] bf16, lb_ref: [E_pad, 1] f32
    # o_ref : [E_pad, N_pad] f32 (already transposed)
    # act_ref: VMEM scratch [N_pad, H_pad] f32 (inter-layer activations, never hit HBM)

    # conv1: relu(A_hat @ (X @ W1) + b1)
    xw = jnp.dot(x_ref[...].astype(jnp.bfloat16), w1_ref[...],
                 preferred_element_type=jnp.float32)
    y = jnp.dot(a_ref[...], xw.astype(jnp.bfloat16),
                preferred_element_type=jnp.float32)
    act_ref[...] = jnp.maximum(y + b1_ref[...], 0.0)

    # hidden GCN convs (static Python unroll over depth-1)
    for i in range(depth - 1):
        xw = jnp.dot(act_ref[...].astype(jnp.bfloat16), hw_ref[i],
                     preferred_element_type=jnp.float32)
        y = jnp.dot(a_ref[...], xw.astype(jnp.bfloat16),
                    preferred_element_type=jnp.float32)
        act_ref[...] = jnp.maximum(y + hb_ref[i], 0.0)

    # linear -> sigmoid -> transpose: o[e, n] = sigmoid(sum_h W[h, e] * act[n, h] + b[e])
    y = jax.lax.dot_general(
        lw_ref[...], act_ref[...].astype(jnp.bfloat16),
        dimension_numbers=(((0,), (1,)), ((), ())),
        preferred_element_type=jnp.float32,
    )
    o_ref[...] = jax.nn.sigmoid(y + lb_ref[...])


def _fused_forward(a_hat, x, w1, b1, hw, hb, lw, lb, *, depth):
    n_pad = a_hat.shape[0]
    h_pad = w1.shape[1]
    e_pad = lw.shape[1]
    kernel = functools.partial(_fused_forward_kernel, depth=depth)
    return pl.pallas_call(
        kernel,
        out_shape=jax.ShapeDtypeStruct((e_pad, n_pad), jnp.float32),
        in_specs=[pl.BlockSpec(memory_space=pltpu.MemorySpace.VMEM)] * 8,
        out_specs=pl.BlockSpec(memory_space=pltpu.MemorySpace.VMEM),
        scratch_shapes=[pltpu.VMEM((n_pad, h_pad), jnp.float32)],
        compiler_params=pltpu.CompilerParams(vmem_limit_bytes=_FUSED_VMEM_LIMIT),
    )(a_hat, x, w1, b1, hw, hb, lw, lb)


# -----------------------------------------------------------------------------
# Tiled fallback kernels (large N): one pallas_call per GCN layer, XW fused in
# -----------------------------------------------------------------------------
def _gcn_layer_kernel(a_ref, x_ref, w_ref, b_ref, o_ref, acc_ref, *, apply_relu):
    # grid = (N/tm, N/tk); accumulate A_hat[i,k] @ (X[k] @ W) over the k axis.
    k = pl.program_id(1)

    @pl.when(k == 0)
    def _():
        acc_ref[...] = jnp.zeros_like(acc_ref)

    xw = jnp.dot(x_ref[...].astype(jnp.bfloat16), w_ref[...],
                 preferred_element_type=jnp.float32)
    acc_ref[...] += jnp.dot(a_ref[...], xw.astype(jnp.bfloat16),
                            preferred_element_type=jnp.float32)

    @pl.when(k == pl.num_programs(1) - 1)
    def _():
        y = acc_ref[...] + b_ref[...]
        if apply_relu:
            y = jnp.maximum(y, 0.0)
        o_ref[...] = y.astype(o_ref.dtype)


def _gcn_layer_tiled(a_hat_bf16, x_f32, w_bf16, b_f32, *, apply_relu):
    """relu(A_hat @ (X @ W) + b), tiled over (rows, contraction). Returns f32."""
    n_pad = a_hat_bf16.shape[0]
    f_in = x_f32.shape[1]
    f_out = w_bf16.shape[1]
    tm = _pick_row_tile(n_pad)
    tk = _pick_k_tile(n_pad)
    kernel = functools.partial(_gcn_layer_kernel, apply_relu=apply_relu)
    return pl.pallas_call(
        kernel,
        out_shape=jax.ShapeDtypeStruct((n_pad, f_out), jnp.float32),
        grid_spec=pltpu.PrefetchScalarGridSpec(
            num_scalar_prefetch=0,
            grid=(n_pad // tm, n_pad // tk),
            in_specs=[
                pl.BlockSpec((tm, tk), lambda i, k: (i, k)),        # A_hat tile (dominant stream)
                pl.BlockSpec((tk, f_in), lambda i, k: (k, 0)),      # X k-slab (f32, cast in-kernel)
                pl.BlockSpec((f_in, f_out), lambda i, k: (0, 0)),   # W, grid-resident
                pl.BlockSpec((1, f_out), lambda i, k: (0, 0)),      # bias
            ],
            out_specs=pl.BlockSpec((tm, f_out), lambda i, k: (i, 0)),
            scratch_shapes=[pltpu.VMEM((tm, f_out), jnp.float32)],
        ),
        compiler_params=pltpu.CompilerParams(
            dimension_semantics=("parallel", "arbitrary"),
            vmem_limit_bytes=_TILED_VMEM_LIMIT,
        ),
    )(a_hat_bf16, x_f32, w_bf16, b_f32)


def _linear_sigmoid_t_kernel(x_ref, w_ref, b_ref, o_ref):
    # o[e, n] = sigmoid(sum_h W[h, e] * X[n, h] + b[e]) — transposed output off the MXU.
    y = jax.lax.dot_general(
        w_ref[...], x_ref[...].astype(jnp.bfloat16),
        dimension_numbers=(((0,), (1,)), ((), ())),
        preferred_element_type=jnp.float32,
    )
    o_ref[...] = jax.nn.sigmoid(y + b_ref[...])


def _linear_sigmoid_transpose(x_f32, w_bf16, b_f32_col):
    """sigmoid(X @ W + b).T produced directly as [E_pad, N_pad] (lane-dense on N)."""
    n_pad, h_pad = x_f32.shape
    e_pad = w_bf16.shape[1]
    tn = _pick_row_tile(n_pad)
    return pl.pallas_call(
        _linear_sigmoid_t_kernel,
        out_shape=jax.ShapeDtypeStruct((e_pad, n_pad), jnp.float32),
        grid_spec=pltpu.PrefetchScalarGridSpec(
            num_scalar_prefetch=0,
            grid=(n_pad // tn,),
            in_specs=[
                pl.BlockSpec((tn, h_pad), lambda j: (j, 0)),        # X node-block
                pl.BlockSpec((h_pad, e_pad), lambda j: (0, 0)),     # W, resident
                pl.BlockSpec((e_pad, 1), lambda j: (0, 0)),         # bias [E, 1]
            ],
            out_specs=pl.BlockSpec((e_pad, tn), lambda j: (0, j)),
        ),
        compiler_params=pltpu.CompilerParams(
            dimension_semantics=("parallel",),
            vmem_limit_bytes=_TILED_VMEM_LIMIT,
        ),
    )(x_f32, w_bf16, b_f32_col)


# -----------------------------------------------------------------------------
# Graph / parameter preparation (hoisted out of the steady-state hot path)
# -----------------------------------------------------------------------------
def build_normalized_adjacency(edge_index, num_nodes):
    """A_hat = D^{-1/2} (A + I) D^{-1/2}  (what GCNConv's gcn_norm computes)."""
    src, dst = edge_index[0], edge_index[1]
    w = jnp.where(src != dst, 1.0, 0.0).astype(jnp.float32)
    a = jnp.zeros((num_nodes, num_nodes), dtype=jnp.float32).at[dst, src].add(w)
    a = a + jnp.eye(num_nodes, dtype=jnp.float32)
    deg = jnp.sum(a, axis=1)
    dinv = jnp.where(deg > 0, jax.lax.rsqrt(deg), 0.0)
    return dinv[:, None] * a * dinv[None, :]


def prepare_graph(edge_index, num_nodes):
    """Build + pad + bf16-cast A_hat ONCE (not per forward)."""
    n_pad = _round_up(num_nodes, LANE)
    a_hat = build_normalized_adjacency(edge_index, num_nodes)
    return _pad2d(a_hat, n_pad, n_pad).astype(jnp.bfloat16)


def pad_node_features(node_features):
    n, f = node_features.shape
    return _pad2d(node_features.astype(jnp.float32),
                  _round_up(n, LANE), _round_up(f, LANE))


def prepare_params(params):
    """Pad + cast weights ONCE: weights bf16, biases f32, lane-aligned shapes."""
    f, h = params["conv1_w"].shape
    e = params["linear_w"].shape[1]
    f_pad, h_pad, e_pad = _round_up(f, LANE), _round_up(h, LANE), _round_up(e, LANE)
    depth = len(params["hconvs"]) + 1

    w1 = _pad2d(params["conv1_w"], f_pad, h_pad).astype(jnp.bfloat16)
    b1 = _pad1d(params["conv1_b"], h_pad).reshape(1, h_pad).astype(jnp.float32)
    if depth > 1:
        hw = jnp.stack([_pad2d(w, h_pad, h_pad) for (w, _) in params["hconvs"]]
                       ).astype(jnp.bfloat16)
        hb = jnp.stack([_pad1d(b, h_pad).reshape(1, h_pad) for (_, b) in params["hconvs"]]
                       ).astype(jnp.float32)
    else:  # dummy (never read: static loop has zero iterations)
        hw = jnp.zeros((1, h_pad, h_pad), jnp.bfloat16)
        hb = jnp.zeros((1, 1, h_pad), jnp.float32)
    lw = _pad2d(params["linear_w"], h_pad, e_pad).astype(jnp.bfloat16)
    lb = _pad1d(params["linear_b"], e_pad).reshape(e_pad, 1).astype(jnp.float32)
    return {"w1": w1, "b1": b1, "hw": hw, "hb": hb, "lw": lw, "lb": lb}


# -----------------------------------------------------------------------------
# Forward pass
# -----------------------------------------------------------------------------
def gcn_encoder_apply(prep, a_hat_pad, x_pad, *, depth, num_nodes, embed_size,
                      force_tiled=False):
    n_pad = a_hat_pad.shape[0]
    f_pad = x_pad.shape[1]
    h_pad = prep["w1"].shape[1]
    e_pad = prep["lw"].shape[1]

    resident_bytes = (2 * n_pad * n_pad      # A_hat bf16
                      + 4 * n_pad * f_pad    # X f32
                      + 4 * n_pad * h_pad    # activation scratch f32
                      + 4 * e_pad * n_pad)   # transposed output f32
    if resident_bytes <= _FUSED_VMEM_BUDGET and not force_tiled:
        out = _fused_forward(a_hat_pad, x_pad, prep["w1"], prep["b1"],
                             prep["hw"], prep["hb"], prep["lw"], prep["lb"],
                             depth=depth)
    else:
        x = _gcn_layer_tiled(a_hat_pad, x_pad, prep["w1"], prep["b1"], apply_relu=True)
        for i in range(depth - 1):
            x = _gcn_layer_tiled(a_hat_pad, x, prep["hw"][i], prep["hb"][i],
                                 apply_relu=True)
        out = _linear_sigmoid_transpose(x, prep["lw"], prep["lb"])
    return out[:embed_size, :num_nodes]


def gcn_encoder_forward(params, node_features, edge_index, *, train=False):
    """One-shot convenience wrapper (rebuilds A_hat each call). For steady-state use,
    call prepare_graph / prepare_params once and jit gcn_encoder_apply."""
    # TODO(synk): stochastic dropout for train=True via pltpu.prng_* is not wired in;
    #             train=False (identity) matches the reference.
    del train
    n = node_features.shape[0]
    e = params["linear_w"].shape[1]
    depth = len(params["hconvs"]) + 1
    a_hat_pad = prepare_graph(edge_index, n)
    prep = prepare_params(params)
    x_pad = pad_node_features(node_features)
    return gcn_encoder_apply(prep, a_hat_pad, x_pad,
                             depth=depth, num_nodes=n, embed_size=e)


# -----------------------------------------------------------------------------
# Pure-JAX reference (for correctness check)
# -----------------------------------------------------------------------------
def gcn_encoder_reference(params, node_features, edge_index):
    n = node_features.shape[0]
    a_hat = build_normalized_adjacency(edge_index, n)
    x = node_features.astype(jnp.float32)
    x = jax.nn.relu(a_hat @ (x @ params["conv1_w"]) + params["conv1_b"])
    for w, b in params["hconvs"]:
        x = jax.nn.relu(a_hat @ (x @ w) + b)
    y = jax.nn.sigmoid(x @ params["linear_w"] + params["linear_b"])
    return y.T


# -----------------------------------------------------------------------------
# Params
# -----------------------------------------------------------------------------
def init_params(key, num_features, hidden_size, embed_size, depth=2):
    """Deterministic Glorot-uniform weights, zero biases (shapes match the module)."""
    def glorot(k, fan_in, fan_out):
        limit = jnp.sqrt(6.0 / (fan_in + fan_out))
        return jax.random.uniform(k, (fan_in, fan_out), jnp.float32, -limit, limit)

    keys = jax.random.split(key, depth + 1)
    return {
        "conv1_w": glorot(keys[0], num_features, hidden_size),
        "conv1_b": jnp.zeros((hidden_size,), jnp.float32),
        "hconvs": [
            (glorot(keys[1 + i], hidden_size, hidden_size),
             jnp.zeros((hidden_size,), jnp.float32))
            for i in range(depth - 1)
        ],
        "linear_w": glorot(keys[depth], hidden_size, embed_size),
        "linear_b": jnp.zeros((embed_size,), jnp.float32),
    }


# -----------------------------------------------------------------------------
# Main
# -----------------------------------------------------------------------------
if __name__ == "__main__":
    NUM_NODES = 384       # N_pad = 384 (3 x 128)
    NUM_FEATURES = 8
    HIDDEN_SIZE = 32
    EMBED_SIZE = 16
    DEPTH = 2
    TRAIN = False

    key = jax.random.PRNGKey(0)
    k_feat, k_param = jax.random.split(key)

    node_features = jax.random.normal(k_feat, (NUM_NODES, NUM_FEATURES), jnp.float32)

    # deterministic undirected ring graph edge_index [2, 2N]
    src = jnp.arange(NUM_NODES, dtype=jnp.int32)
    dst = (src + 1) % NUM_NODES
    edge_index = jnp.stack(
        [jnp.concatenate([src, dst]), jnp.concatenate([dst, src])], axis=0
    )

    params = init_params(k_param, NUM_FEATURES, HIDDEN_SIZE, EMBED_SIZE, DEPTH)

    # Hoisted-once preparation (adjacency build + padding + bf16 casts).
    a_hat_pad = jax.block_until_ready(prepare_graph(edge_index, NUM_NODES))
    prep = prepare_params(params)
    x_pad = pad_node_features(node_features)

    fwd = jax.jit(functools.partial(
        gcn_encoder_apply, depth=DEPTH, num_nodes=NUM_NODES, embed_size=EMBED_SIZE))
    out = jax.block_until_ready(fwd(prep, a_hat_pad, x_pad))

    assert out.shape == (EMBED_SIZE, NUM_NODES), out.shape
    assert out.dtype == jnp.float32

    ref = jax.block_until_ready(gcn_encoder_reference(params, node_features, edge_index))
    max_err = float(jnp.max(jnp.abs(out - ref)))
    assert max_err < 5e-2, f"fused path max abs error {max_err}"

    # Also exercise the tiled large-N fallback path on the same data.
    out_tiled = jax.block_until_ready(
        gcn_encoder_apply(prep, a_hat_pad, x_pad, depth=DEPTH,
                          num_nodes=NUM_NODES, embed_size=EMBED_SIZE, force_tiled=True))
    max_err_tiled = float(jnp.max(jnp.abs(out_tiled - ref)))
    assert max_err_tiled < 5e-2, f"tiled path max abs error {max_err_tiled}"

    print("KERNEL_OK")
</pallas_src>

<mosaic_0001>
module attributes {stable_mosaic.version = 11 : i64} {
  func.func @_fused_forward_kernel(%arg0: memref<384x384xbf16, #tpu.memory_space<vmem>>, %arg1: memref<384x128xf32, #tpu.memory_space<vmem>>, %arg2: memref<128x128xbf16, #tpu.memory_space<vmem>>, %arg3: memref<1x128xf32, #tpu.memory_space<vmem>>, %arg4: memref<1x128x128xbf16, #tpu.memory_space<vmem>>, %arg5: memref<1x1x128xf32, #tpu.memory_space<vmem>>, %arg6: memref<128x128xbf16, #tpu.memory_space<vmem>>, %arg7: memref<128x1xf32, #tpu.memory_space<vmem>>, %arg8: memref<128x384xf32, #tpu.memory_space<vmem>>, %arg9: memref<384x128xf32, #tpu.memory_space<vmem>>) attributes {dimension_semantics = [], scalar_prefetch = 0 : i64, scratch_operands = 1 : i64, tpu.core_type = #tpu.core_type<tc>} {
    %c0 = arith.constant 0 : index
    %c0_0 = arith.constant 0 : index
    %0 = vector.load %arg1[%c0, %c0_0] : memref<384x128xf32, #tpu.memory_space<vmem>>, vector<384x128xf32>
    %1 = arith.truncf %0 : vector<384x128xf32> to vector<384x128xbf16>
    %c0_1 = arith.constant 0 : index
    %c0_2 = arith.constant 0 : index
    %2 = vector.load %arg2[%c0_1, %c0_2] : memref<128x128xbf16, #tpu.memory_space<vmem>>, vector<128x128xbf16>
    %cst = arith.constant dense<0.000000e+00> : vector<384x128xf32>
    %3 = tpu.matmul %1, %2, %cst {dimension_numbers = #tpu.dot_dimension_numbers<[1], [0], [0], [1], [0, 0, 1, 1], [], []>} : vector<384x128xbf16>, vector<128x128xbf16>, vector<384x128xf32> -> vector<384x128xf32>
    %c0_3 = arith.constant 0 : index
    %c0_4 = arith.constant 0 : index
    %4 = vector.load %arg0[%c0_3, %c0_4] : memref<384x384xbf16, #tpu.memory_space<vmem>>, vector<384x384xbf16>
    %5 = arith.truncf %3 : vector<384x128xf32> to vector<384x128xbf16>
    %cst_5 = arith.constant dense<0.000000e+00> : vector<384x128xf32>
    %6 = tpu.matmul %4, %5, %cst_5 {dimension_numbers = #tpu.dot_dimension_numbers<[1], [0], [0], [1], [0, 0, 1, 1], [], []>} : vector<384x384xbf16>, vector<384x128xbf16>, vector<384x128xf32> -> vector<384x128xf32>
    %c0_6 = arith.constant 0 : index
    %c0_7 = arith.constant 0 : index
    %7 = vector.load %arg3[%c0_6, %c0_7] : memref<1x128xf32, #tpu.memory_space<vmem>>, vector<1x128xf32>
    %8 = vector.broadcast %7 : vector<1x128xf32> to vector<384x128xf32>
    %9 = arith.addf %6, %8 : vector<384x128xf32>
    %cst_8 = arith.constant 0.000000e+00 : f32
    %10 = vector.broadcast %cst_8 : f32 to vector<384x128xf32>
    %11 = arith.maximumf %9, %10 : vector<384x128xf32>
    %c0_9 = arith.constant 0 : index
    %c0_10 = arith.constant 0 : index
    %12 = vector.load %arg9[%c0_9, %c0_10] : memref<384x128xf32, #tpu.memory_space<vmem>>, vector<384x128xf32>
    tpu.vector_store %arg9[%c0_9, %c0_10], %11 {strides = array<i32>} : memref<384x128xf32, #tpu.memory_space<vmem>>, vector<384x128xf32>,
    %c0_11 = arith.constant 0 : index
    %c0_12 = arith.constant 0 : index
    %13 = vector.load %arg9[%c0_11, %c0_12] : memref<384x128xf32, #tpu.memory_space<vmem>>, vector<384x128xf32>
    %14 = arith.truncf %13 : vector<384x128xf32> to vector<384x128xbf16>
    %c0_13 = arith.constant 0 : index
    %c0_14 = arith.constant 0 : index
    %c0_15 = arith.constant 0 : index
    %15 = vector.load %arg4[%c0_13, %c0_14, %c0_15] : memref<1x128x128xbf16, #tpu.memory_space<vmem>>, vector<1x128x128xbf16>
    %16 = vector.shape_cast %15 : vector<1x128x128xbf16> to vector<128x128xbf16>
    %cst_16 = arith.constant dense<0.000000e+00> : vector<384x128xf32>
    %17 = tpu.matmul %14, %16, %cst_16 {dimension_numbers = #tpu.dot_dimension_numbers<[1], [0], [0], [1], [0, 0, 1, 1], [], []>} : vector<384x128xbf16>, vector<128x128xbf16>, vector<384x128xf32> -> vector<384x128xf32>
    %c0_17 = arith.constant 0 : index
    %c0_18 = arith.constant 0 : index
    %18 = vector.load %arg0[%c0_17, %c0_18] : memref<384x384xbf16, #tpu.memory_space<vmem>>, vector<384x384xbf16>
    %19 = arith.truncf %17 : vector<384x128xf32> to vector<384x128xbf16>
    %cst_19 = arith.constant dense<0.000000e+00> : vector<384x128xf32>
    %20 = tpu.matmul %18, %19, %cst_19 {dimension_numbers = #tpu.dot_dimension_numbers<[1], [0], [0], [1], [0, 0, 1, 1], [], []>} : vector<384x384xbf16>, vector<384x128xbf16>, vector<384x128xf32> -> vector<384x128xf32>
    %c0_20 = arith.constant 0 : index
    %c0_21 = arith.constant 0 : index
    %c0_22 = arith.constant 0 : index
    %21 = vector.load %arg5[%c0_20, %c0_21, %c0_22] : memref<1x1x128xf32, #tpu.memory_space<vmem>>, vector<1x1x128xf32>
    %22 = vector.shape_cast %21 : vector<1x1x128xf32> to vector<1x128xf32>
    %23 = vector.broadcast %22 : vector<1x128xf32> to vector<384x128xf32>
    %24 = arith.addf %20, %23 : vector<384x128xf32>
    %cst_23 = arith.constant 0.000000e+00 : f32
    %25 = vector.broadcast %cst_23 : f32 to vector<384x128xf32>
    %26 = arith.maximumf %24, %25 : vector<384x128xf32>
    %c0_24 = arith.constant 0 : index
    %c0_25 = arith.constant 0 : index
    %27 = vector.load %arg9[%c0_24, %c0_25] : memref<384x128xf32, #tpu.memory_space<vmem>>, vector<384x128xf32>
    tpu.vector_store %arg9[%c0_24, %c0_25], %26 {strides = array<i32>} : memref<384x128xf32, #tpu.memory_space<vmem>>, vector<384x128xf32>,
    %c0_26 = arith.constant 0 : index
    %c0_27 = arith.constant 0 : index
    %28 = vector.load %arg6[%c0_26, %c0_27] : memref<128x128xbf16, #tpu.memory_space<vmem>>, vector<128x128xbf16>
    %c0_28 = arith.constant 0 : index
    %c0_29 = arith.constant 0 : index
    %29 = vector.load %arg9[%c0_28, %c0_29] : memref<384x128xf32, #tpu.memory_space<vmem>>, vector<384x128xf32>
    %30 = arith.truncf %29 : vector<384x128xf32> to vector<384x128xbf16>
    %cst_30 = arith.constant dense<0.000000e+00> : vector<128x384xf32>
    %31 = tpu.matmul %28, %30, %cst_30 {dimension_numbers = #tpu.dot_dimension_numbers<[0], [1], [1], [0], [0, 1, 1, 0], [], []>} : vector<128x128xbf16>, vector<384x128xbf16>, vector<128x384xf32> -> vector<128x384xf32>
    %c0_31 = arith.constant 0 : index
    %c0_32 = arith.constant 0 : index
    %32 = vector.load %arg7[%c0_31, %c0_32] : memref<128x1xf32, #tpu.memory_space<vmem>>, vector<128x1xf32>
    %33 = vector.broadcast %32 : vector<128x1xf32> to vector<128x384xf32>
    %34 = arith.addf %31, %33 : vector<128x384xf32>
    %35 = arith.negf %34 : vector<128x384xf32>
    %36 = math.exp %35 : vector<128x384xf32>
    %cst_33 = arith.constant 1.000000e+00 : f32
    %37 = vector.broadcast %cst_33 : f32 to vector<128x384xf32>
    %38 = arith.addf %37, %36 : vector<128x384xf32>
    %39 = arith.divf %37, %38 : vector<128x384xf32>
    %c0_34 = arith.constant 0 : index
    %c0_35 = arith.constant 0 : index
    %40 = vector.load %arg8[%c0_34, %c0_35] : memref<128x384xf32, #tpu.memory_space<vmem>>, vector<128x384xf32>
    tpu.vector_store %arg8[%c0_34, %c0_35], %39 {strides = array<i32>} : memref<128x384xf32, #tpu.memory_space<vmem>>, vector<128x384xf32>,
    return
  }
}

</mosaic_0001>

<llo_original>
// kernel: gcn_encoder_apply.1
$region0: #{gcn_encoder_apply.1}
  #allocation0 [shape = 'u32[]', space=smem, size = 0x4, offset = 0x4, fixed_abs, tag = 'smem constant byte address 0x4 - core index']
  #allocation1 [shape = 'u32[144,128]{1,0:T(1,128)}', space=vmem, size = 0x12000, scoped, tag = 'internal scratch']
  #allocation2 [shape = 'f32[384,128]{1,0:T(8,128)}', space=vmem, size = 0x30000, scoped, tag = 'scratch operand']
  %s0 = inlined_call_operand.hbm [shape: bf16[384,384], index: 0, kind: input, shape index: {}]
  %s1 = inlined_call_operand.hbm [shape: f32[384,128], index: 1, kind: input, shape index: {}]
  %s2 = inlined_call_operand.vmem [shape: bf16[128,128], index: 2, kind: input, shape index: {}]
  %s3 = inlined_call_operand.vmem [shape: f32[1,128], index: 3, kind: input, shape index: {}]
  %s4 = inlined_call_operand.vmem [shape: bf16[1,128,128], index: 4, kind: input, shape index: {}]
  %s5 = inlined_call_operand.vmem [shape: f32[1,1,128], index: 5, kind: input, shape index: {}]
  %s6 = inlined_call_operand.hbm [shape: bf16[128,128], index: 6, kind: input, shape index: {}]
  %s7 = inlined_call_operand.vmem [shape: f32[128,1], index: 7, kind: input, shape index: {}]
  %s8 = inlined_call_operand.vmem [shape: f32[128,384], index: 8, kind: output, shape index: {}]
  %s9 = sld [smem:[#allocation0]]
  $region54: #{gcn_encoder_apply.1} parent=0
    _
  %s11 = ssub.s32 1, %s9
  %s12 = scalar_select 0, %s11, %s9
  $region1: #{gcn_encoder_apply.1} parent=0
    #allocation3 [shape = 'u8[294912]{0}', space=vmem, size = 0x48000, scoped, tag = 'input window, operand 0, single buffered']
    #allocation4 [shape = 's32[1]{0}', space=sflag, size = 0x4, scoped, tag = 'scoped memory for gcn_encoder_apply.1']
    #allocation5 [shape = 'u8[196608]{0}', space=vmem, size = 0x30000, scoped, tag = 'input window, operand 1, single buffered']
    #allocation6 [shape = 's32[1]{0}', space=sflag, size = 0x4, scoped, tag = 'scoped memory for gcn_encoder_apply.1']
    #allocation7 [shape = 'u8[32768]{0}', space=vmem, size = 0x8000, scoped, tag = 'input window, operand 6, single buffered']
    %13 = vsyncpa [#allocation4], 0
    %14 = vsyncpa [#allocation6], 0
    // Predicated region
    $region2: #{gcn_encoder_apply.1} parent=1 // pred_check
      _
    $region3: #{gcn_encoder_apply.1} parent=1 // pred_check_branch
      %16 = sbr.rel (0) target = $region5
    $region4: #{gcn_encoder_apply.1} parent=1 // pred_region
      %s18 = ssub.s32 9216, 9216
      %19 = vsyncadd [#allocation4], %s18
      %s20 = sshll.u32 [#allocation3], 4
      %s21 = int_to_ptr.vmem [resolvable:$true] %s20
      %26 = dma.hbm_to_vmem [thread:$0]  %s0, 9216, %s21, [#allocation4], 192, 192, 12
    $region5: #{gcn_encoder_apply.1} parent=1 // pred_fallthru
      _
    // Predicated region
    $region6: #{gcn_encoder_apply.1} parent=1 // pred_check
      _
    $region7: #{gcn_encoder_apply.1} parent=1 // pred_check_branch
      %28 = sbr.rel (0) target = $region9
    $region8: #{gcn_encoder_apply.1} parent=1 // pred_region
      %s30 = ssub.s32 6144, 6144
      %31 = vsyncadd [#allocation6], %s30
      %s32 = sshll.u32 [#allocation5], 4
      %s33 = int_to_ptr.vmem [resolvable:$true] %s32
      %38 = dma.hbm_to_vmem [thread:$0]  %s1, 6144, %s33, [#allocation6], 128, 128, 8
    $region9: #{gcn_encoder_apply.1} parent=1 // pred_fallthru
      _
    // Predicated region
    $region10: #{gcn_encoder_apply.1} parent=1 // pred_check
      _
    $region11: #{gcn_encoder_apply.1} parent=1 // pred_check_branch
      %40 = sbr.rel (0) target = $region13
    $region12: #{gcn_encoder_apply.1} parent=1 // pred_region
      _
    $region13: #{gcn_encoder_apply.1} parent=1 // pred_fallthru
      _
    // Predicated region
    $region14: #{gcn_encoder_apply.1} parent=1 // pred_check
      _
    $region15: #{gcn_encoder_apply.1} parent=1 // pred_check_branch
      %42 = sbr.rel (0) target = $region17
    $region16: #{gcn_encoder_apply.1} parent=1 // pred_region
      _
    $region17: #{gcn_encoder_apply.1} parent=1 // pred_fallthru
      _
    // Predicated region
    $region18: #{gcn_encoder_apply.1} parent=1 // pred_check
      _
    $region19: #{gcn_encoder_apply.1} parent=1 // pred_check_branch
      %44 = sbr.rel (0) target = $region21
    $region20: #{gcn_encoder_apply.1} parent=1 // pred_region
      _
    $region21: #{gcn_encoder_apply.1} parent=1 // pred_fallthru
      _
    // Predicated region
    $region22: #{gcn_encoder_apply.1} parent=1 // pred_check
      _
    $region23: #{gcn_encoder_apply.1} parent=1 // pred_check_branch
      %46 = sbr.rel (0) target = $region25
    $region24: #{gcn_encoder_apply.1} parent=1 // pred_region
      _
    $region25: #{gcn_encoder_apply.1} parent=1 // pred_fallthru
      _
    // Predicated region
    $region26: #{gcn_encoder_apply.1} parent=1 // pred_check
      _
    $region27: #{gcn_encoder_apply.1} parent=1 // pred_check_branch
      %48 = sbr.rel (0) target = $region29
    $region28: #{gcn_encoder_apply.1} parent=1 // pred_region
      %s50 = ssub.s32 1024, 1024
      %51 = vsyncadd [#allocation6], %s50
      %s52 = sshll.u32 [#allocation7], 4
      %s53 = int_to_ptr.vmem [resolvable:$true] %s52
      %58 = dma.hbm_to_vmem [thread:$0]  %s6, 1024, %s53, [#allocation6], 64, 64, 4
    $region29: #{gcn_encoder_apply.1} parent=1 // pred_fallthru
      _
    // Predicated region
    $region30: #{gcn_encoder_apply.1} parent=1 // pred_check
      _
    $region31: #{gcn_encoder_apply.1} parent=1 // pred_check_branch
      %60 = sbr.rel (0) target = $region33
    $region32: #{gcn_encoder_apply.1} parent=1 // pred_region
      _
    $region33: #{gcn_encoder_apply.1} parent=1 // pred_fallthru
      _
    // Predicated region
    $region34: #{gcn_encoder_apply.1} parent=1 // pred_check
      _
    $region35: #{gcn_encoder_apply.1} parent=1 // pred_check_branch
      %62 = sbr.rel (0) target = $region37
    $region36: #{gcn_encoder_apply.1} parent=1 // pred_region
      %63 = dma.done [#allocation4], 9216
    $region37: #{gcn_encoder_apply.1} parent=1 // pred_fallthru
      _
    // Predicated region
    $region38: #{gcn_encoder_apply.1} parent=1 // pred_check
      _
    $region39: #{gcn_encoder_apply.1} parent=1 // pred_check_branch
      %65 = sbr.rel (0) target = $region41
    $region40: #{gcn_encoder_apply.1} parent=1 // pred_region
      %66 = dma.done [#allocation6], 6144
    $region41: #{gcn_encoder_apply.1} parent=1 // pred_fallthru
      _
    // Predicated region
    $region42: #{gcn_encoder_apply.1} parent=1 // pred_check
      _
    $region43: #{gcn_encoder_apply.1} parent=1 // pred_check_branch
      %68 = sbr.rel (0) target = $region45
    $region44: #{gcn_encoder_apply.1} parent=1 // pred_region
      %69 = dma.done [#allocation6], 1024
    $region45: #{gcn_encoder_apply.1} parent=1 // pred_fallthru
      _
    %v71 = vld [vmem:[#allocation5] sm:$0xff]
    %v72 = vld [vmem:[#allocation5 + $0x8] sm:$0xff]
    %v73 = vld [vmem:[#allocation5 + $0x10] sm:$0xff]
    %v74 = vld [vmem:[#allocation5 + $0x18] sm:$0xff]
    %v75 = vld [vmem:[#allocation5 + $0x20] sm:$0xff]
    %v76 = vld [vmem:[#allocation5 + $0x28] sm:$0xff]
    %v77 = vld [vmem:[#allocation5 + $0x30] sm:$0xff]
    %v78 = vld [vmem:[#allocation5 + $0x38] sm:$0xff]
    %v79 = vld [vmem:[#allocation5 + $0x40] sm:$0xff]
    %v80 = vld [vmem:[#allocation5 + $0x48] sm:$0xff]
    %v81 = vld [vmem:[#allocation5 + $0x50] sm:$0xff]
    %v82 = vld [vmem:[#allocation5 + $0x58] sm:$0xff]
    %v83 = vld [vmem:[#allocation5 + $0x60] sm:$0xff]
    %v84 = vld [vmem:[#allocation5 + $0x68] sm:$0xff]
    %v85 = vld [vmem:[#allocation5 + $0x70] sm:$0xff]
    %v86 = vld [vmem:[#allocation5 + $0x78] sm:$0xff]
    %v87 = vld [vmem:[#allocation5 + $0x80] sm:$0xff]
    %v88 = vld [vmem:[#allocation5 + $0x88] sm:$0xff]
    %v89 = vld [vmem:[#allocation5 + $0x90] sm:$0xff]
    %v90 = vld [vmem:[#allocation5 + $0x98] sm:$0xff]
    %v91 = vld [vmem:[#allocation5 + $0xa0] sm:$0xff]
    %v92 = vld [vmem:[#allocation5 + $0xa8] sm:$0xff]
    %v93 = vld [vmem:[#allocation5 + $0xb0] sm:$0xff]
    %v94 = vld [vmem:[#allocation5 + $0xb8] sm:$0xff]
    %v95 = vld [vmem:[#allocation5 + $0xc0] sm:$0xff]
    %v96 = vld [vmem:[#allocation5 + $0xc8] sm:$0xff]
    %v97 = vld [vmem:[#allocation5 + $0xd0] sm:$0xff]
    %v98 = vld [vmem:[#allocation5 + $0xd8] sm:$0xff]
    %v99 = vld [vmem:[#allocation5 + $0xe0] sm:$0xff]
    %v100 = vld [vmem:[#allocation5 + $0xe8] sm:$0xff]
    %v101 = vld [vmem:[#allocation5 + $0xf0] sm:$0xff]
    %v102 = vld [vmem:[#allocation5 + $0xf8] sm:$0xff]
    %v103 = vld [vmem:[#allocation5 + $0x100] sm:$0xff]
    %v104 = vld [vmem:[#allocation5 + $0x108] sm:$0xff]
    %v105 = vld [vmem:[#allocation5 + $0x110] sm:$0xff]
    %v106 = vld [vmem:[#allocation5 + $0x118] sm:$0xff]
    %v107 = vld [vmem:[#allocation5 + $0x120] sm:$0xff]
    %v108 = vld [vmem:[#allocation5 + $0x128] sm:$0xff]
    %v109 = vld [vmem:[#allocation5 + $0x130] sm:$0xff]
    %v110 = vld [vmem:[#allocation5 + $0x138] sm:$0xff]
    %v111 = vld [vmem:[#allocation5 + $0x140] sm:$0xff]
    %v112 = vld [vmem:[#allocation5 + $0x148] sm:$0xff]
    %v113 = vld [vmem:[#allocation5 + $0x150] sm:$0xff]
    %v114 = vld [vmem:[#allocation5 + $0x158] sm:$0xff]
    %v115 = vld [vmem:[#allocation5 + $0x160] sm:$0xff]
    %v116 = vld [vmem:[#allocation5 + $0x168] sm:$0xff]
    %v117 = vld [vmem:[#allocation5 + $0x170] sm:$0xff]
    %v118 = vld [vmem:[#allocation5 + $0x178] sm:$0xff]
    %v119 = vpack.c.bf16 %v72, %v71
    %v120 = vpack.c.bf16 %v74, %v73
    %v121 = vpack.c.bf16 %v76, %v75
    %v122 = vpack.c.bf16 %v78, %v77
    %v123 = vpack.c.bf16 %v80, %v79
    %v124 = vpack.c.bf16 %v82, %v81
    %v125 = vpack.c.bf16 %v84, %v83
    %v126 = vpack.c.bf16 %v86, %v85
    %v127 = vpack.c.bf16 %v88, %v87
    %v128 = vpack.c.bf16 %v90, %v89
    %v129 = vpack.c.bf16 %v92, %v91
    %v130 = vpack.c.bf16 %v94, %v93
    %v131 = vpack.c.bf16 %v96, %v95
    %v132 = vpack.c.bf16 %v98, %v97
    %v133 = vpack.c.bf16 %v100, %v99
    %v134 = vpack.c.bf16 %v102, %v101
    %v135 = vpack.c.bf16 %v104, %v103
    %v136 = vpack.c.bf16 %v106, %v105
    %v137 = vpack.c.bf16 %v108, %v107
    %v138 = vpack.c.bf16 %v110, %v109
    %v139 = vpack.c.bf16 %v112, %v111
    %v140 = vpack.c.bf16 %v114, %v113
    %v141 = vpack.c.bf16 %v116, %v115
    %v142 = vpack.c.bf16 %v118, %v117
    %v143 = vld [vmem:[%s2] sm:$0xf]
    %v144 = vld [vmem:[%s2 + $0x4] sm:$0xf]
    %v145 = vld [vmem:[%s2 + $0x8] sm:$0xf]
    %v146 = vld [vmem:[%s2 + $0xc] sm:$0xf]
    %v147 = vld [vmem:[%s2 + $0x10] sm:$0xf]
    %v148 = vld [vmem:[%s2 + $0x14] sm:$0xf]
    %v149 = vld [vmem:[%s2 + $0x18] sm:$0xf]
    %v150 = vld [vmem:[%s2 + $0x1c] sm:$0xf]
    %v151 = vld [vmem:[%s2 + $0x20] sm:$0xf]
    %v152 = vld [vmem:[%s2 + $0x24] sm:$0xf]
    %v153 = vld [vmem:[%s2 + $0x28] sm:$0xf]
    %v154 = vld [vmem:[%s2 + $0x2c] sm:$0xf]
    %v155 = vld [vmem:[%s2 + $0x30] sm:$0xf]
    %v156 = vld [vmem:[%s2 + $0x34] sm:$0xf]
    %v157 = vld [vmem:[%s2 + $0x38] sm:$0xf]
    %v158 = vld [vmem:[%s2 + $0x3c] sm:$0xf]
    %v175 = vunpack.c.l.b16 %v143
    %v176 = vunpack.c.l.b16 %v144
    %v177 = vunpack.c.l.b16 %v145
    %v178 = vunpack.c.l.b16 %v146
    %v179 = vunpack.c.l.b16 %v147
    %v180 = vunpack.c.l.b16 %v148
    %v181 = vunpack.c.l.b16 %v149
    %v182 = vunpack.c.l.b16 %v150
    %v183 = vunpack.c.l.b16 %v151
    %v184 = vunpack.c.l.b16 %v152
    %v185 = vunpack.c.l.b16 %v153
    %v186 = vunpack.c.l.b16 %v154
    %v187 = vunpack.c.l.b16 %v155
    %v188 = vunpack.c.l.b16 %v156
    %v189 = vunpack.c.l.b16 %v157
    %v190 = vunpack.c.l.b16 %v158
    %v191 = vpack.c.b16 %v176, %v175
    %v192 = vpack.c.b16 %v178, %v177
    %v193 = vpack.c.b16 %v180, %v179
    %v194 = vpack.c.b16 %v182, %v181
    %v195 = vpack.c.b16 %v184, %v183
    %v196 = vpack.c.b16 %v186, %v185
    %v197 = vpack.c.b16 %v188, %v187
    %v198 = vpack.c.b16 %v190, %v189
    %207 = vmatprep.subr.bf16.mxu0 0
    %208 = vmatpush1.bf16.msra.mxu0 %v191
    %209 = vmatprep.subr.bf16.mxu0 0
    %210 = vmatpush1.bf16.msra.mxu0 %v192
    %211 = vmatprep.subr.bf16.mxu0 0
    %212 = vmatpush1.bf16.msra.mxu0 %v193
    %213 = vmatprep.subr.bf16.mxu0 0
    %214 = vmatpush1.bf16.msra.mxu0 %v194
    %215 = vmatprep.subr.bf16.mxu0 0
    %216 = vmatpush1.bf16.msra.mxu0 %v195
    %217 = vmatprep.subr.bf16.mxu0 0
    %218 = vmatpush1.bf16.msra.mxu0 %v196
    %219 = vmatprep.subr.bf16.mxu0 0
    %220 = vmatpush1.bf16.msra.mxu0 %v197
    %221 = vmatprep.subr.bf16.mxu0 0
    %222 = vmatpush1.bf16.msra.mxu0 %v198
    %223 = vmatprep.subr.bf16.mxu0 0
    %224 = vmatpush1.bf16.msra.mxu0 0
    %225 = vmatprep.subr.bf16.mxu0 0
    %226 = vmatpush1.bf16.msra.mxu0 0
    %227 = vmatprep.subr.bf16.mxu0 0
    %228 = vmatpush1.bf16.msra.mxu0 0
    %229 = vmatprep.subr.bf16.mxu0 0
    %230 = vmatpush1.bf16.msra.mxu0 0
    %231 = vmatprep.subr.bf16.mxu0 0
    %232 = vmatpush1.bf16.msra.mxu0 0
    %233 = vmatprep.subr.bf16.mxu0 0
    %234 = vmatpush1.bf16.msra.mxu0 0
    %235 = vmatprep.subr.bf16.mxu0 0
    %236 = vmatpush1.bf16.msra.mxu0 0
    %237 = vmatprep.subr.bf16.mxu0 0
    %238 = vmatpush1.bf16.msra.mxu0 0
    %239 = vmatprep.mubr.bf16.mxu0 0
    %240 = vmatmul.mubr.bf16.gmra.mrb[0].mxu0 %v119
    %v241 = vpop.f32.mrb[0].mxu0
    %v242 = vadd.f32 0.0, %v241
    %v243 = vpop.f32.mrb[0].mxu0
    %v244 = vpop.f32.mrb[0].mxu0
    %v245 = vadd.f32 0.0, %v244
    %v246 = vpop.f32.mrb[0].mxu0
    %247 = vmatprep.mubr.bf16.mxu0 0
    %248 = vmatmul.mubr.bf16.gmra.mrb[0].mxu0 %v120
    %v249 = vpop.f32.mrb[0].mxu0
    %v250 = vadd.f32 0.0, %v249
    %v251 = vpop.f32.mrb[0].mxu0
    %v252 = vpop.f32.mrb[0].mxu0
    %v253 = vadd.f32 0.0, %v252
    %v254 = vpop.f32.mrb[0].mxu0
    %255 = vmatprep.mubr.bf16.mxu0 0
    %256 = vmatmul.mubr.bf16.gmra.mrb[0].mxu0 %v121
    %v257 = vpop.f32.mrb[0].mxu0
    %v258 = vadd.f32 0.0, %v257
    %v259 = vpop.f32.mrb[0].mxu0
    %v260 = vpop.f32.mrb[0].mxu0
    %v261 = vadd.f32 0.0, %v260
    %v262 = vpop.f32.mrb[0].mxu0
    %263 = vmatprep.mubr.bf16.mxu0 0
    %264 = vmatmul.mubr.bf16.gmra.mrb[0].mxu0 %v122
    %v265 = vpop.f32.mrb[0].mxu0
    %v266 = vadd.f32 0.0, %v265
    %v267 = vpop.f32.mrb[0].mxu0
    %v268 = vpop.f32.mrb[0].mxu0
    %v269 = vadd.f32 0.0, %v268
    %v270 = vpop.f32.mrb[0].mxu0
    %271 = vmatprep.mubr.bf16.mxu0 0
    %272 = vmatmul.mubr.bf16.gmra.mrb[0].mxu0 %v123
    %v273 = vpop.f32.mrb[0].mxu0
    %v274 = vadd.f32 0.0, %v273
    %v275 = vpop.f32.mrb[0].mxu0
    %v276 = vpop.f32.mrb[0].mxu0
    %v277 = vadd.f32 0.0, %v276
    %v278 = vpop.f32.mrb[0].mxu0
    %279 = vmatprep.mubr.bf16.mxu0 0
    %280 = vmatmul.mubr.bf16.gmra.mrb[0].mxu0 %v124
    %v281 = vpop.f32.mrb[0].mxu0
    %v282 = vadd.f32 0.0, %v281
    %v283 = vpop.f32.mrb[0].mxu0
    %v284 = vpop.f32.mrb[0].mxu0
    %v285 = vadd.f32 0.0, %v284
    %v286 = vpop.f32.mrb[0].mxu0
    %287 = vmatprep.mubr.bf16.mxu0 0
    %288 = vmatmul.mubr.bf16.gmra.mrb[0].mxu0 %v125
    %v289 = vpop.f32.mrb[0].mxu0
    %v290 = vadd.f32 0.0, %v289
    %v291 = vpop.f32.mrb[0].mxu0
    %v292 = vpop.f32.mrb[0].mxu0
    %v293 = vadd.f32 0.0, %v292
    %v294 = vpop.f32.mrb[0].mxu0
    %295 = vmatprep.mubr.bf16.mxu0 0
    %296 = vmatmul.mubr.bf16.gmra.mrb[0].mxu0 %v126
    %v297 = vpop.f32.mrb[0].mxu0
    %v298 = vadd.f32 0.0, %v297
    %v299 = vpop.f32.mrb[0].mxu0
    %v300 = vpop.f32.mrb[0].mxu0
    %v301 = vadd.f32 0.0, %v300
    %v302 = vpop.f32.mrb[0].mxu0
    %303 = vmatprep.mubr.bf16.mxu0 0
    %304 = vmatmul.mubr.bf16.gmra.mrb[0].mxu0 %v127
    %v305 = vpop.f32.mrb[0].mxu0
    %v306 = vadd.f32 0.0, %v305
    %v307 = vpop.f32.mrb[0].mxu0
    %v308 = vpop.f32.mrb[0].mxu0
    %v309 = vadd.f32 0.0, %v308
    %v310 = vpop.f32.mrb[0].mxu0
    %311 = vmatprep.mubr.bf16.mxu0 0
    %312 = vmatmul.mubr.bf16.gmra.mrb[0].mxu0 %v128
    %v313 = vpop.f32.mrb[0].mxu0
    %v314 = vadd.f32 0.0, %v313
    %v315 = vpop.f32.mrb[0].mxu0
    %v316 = vpop.f32.mrb[0].mxu0
    %v317 = vadd.f32 0.0, %v316
    %v318 = vpop.f32.mrb[0].mxu0
    %319 = vmatprep.mubr.bf16.mxu0 0
    %320 = vmatmul.mubr.bf16.gmra.mrb[0].mxu0 %v129
    %v321 = vpop.f32.mrb[0].mxu0
    %v322 = vadd.f32 0.0, %v321
    %v323 = vpop.f32.mrb[0].mxu0
    %v324 = vpop.f32.mrb[0].mxu0
    %v325 = vadd.f32 0.0, %v324
    %v326 = vpop.f32.mrb[0].mxu0
    %327 = vmatprep.mubr.bf16.mxu0 0
    %328 = vmatmul.mubr.bf16.gmra.mrb[0].mxu0 %v130
    %v329 = vpop.f32.mrb[0].mxu0
    %v330 = vadd.f32 0.0, %v329
    %v331 = vpop.f32.mrb[0].mxu0
    %v332 = vpop.f32.mrb[0].mxu0
    %v333 = vadd.f32 0.0, %v332
    %v334 = vpop.f32.mrb[0].mxu0
    %335 = vmatprep.mubr.bf16.mxu0 0
    %336 = vmatmul.mubr.bf16.gmra.mrb[0].mxu0 %v131
    %v337 = vpop.f32.mrb[0].mxu0
    %v338 = vadd.f32 0.0, %v337
    %v339 = vpop.f32.mrb[0].mxu0
    %v340 = vpop.f32.mrb[0].mxu0
    %v341 = vadd.f32 0.0, %v340
    %v342 = vpop.f32.mrb[0].mxu0
    %343 = vmatprep.mubr.bf16.mxu0 0
    %344 = vmatmul.mubr.bf16.gmra.mrb[0].mxu0 %v132
    %v345 = vpop.f32.mrb[0].mxu0
    %v346 = vadd.f32 0.0, %v345
    %v347 = vpop.f32.mrb[0].mxu0
    %v348 = vpop.f32.mrb[0].mxu0
    %v349 = vadd.f32 0.0, %v348
    %v350 = vpop.f32.mrb[0].mxu0
    %351 = vmatprep.mubr.bf16.mxu0 0
    %352 = vmatmul.mubr.bf16.gmra.mrb[0].mxu0 %v133
    %v353 = vpop.f32.mrb[0].mxu0
    %v354 = vadd.f32 0.0, %v353
    %v355 = vpop.f32.mrb[0].mxu0
    %v356 = vpop.f32.mrb[0].mxu0
    %v357 = vadd.f32 0.0, %v356
    %v358 = vpop.f32.mrb[0].mxu0
    %359 = vmatprep.mubr.bf16.mxu0 0
    %360 = vmatmul.mubr.bf16.gmra.mrb[0].mxu0 %v134
    %v361 = vpop.f32.mrb[0].mxu0
    %v362 = vadd.f32 0.0, %v361
    %v363 = vpop.f32.mrb[0].mxu0
    %v364 = vpop.f32.mrb[0].mxu0
    %v365 = vadd.f32 0.0, %v364
    %v366 = vpop.f32.mrb[0].mxu0
    %367 = vmatprep.mubr.bf16.mxu0 0
    %368 = vmatmul.mubr.bf16.gmra.mrb[0].mxu0 %v135
    %v369 = vpop.f32.mrb[0].mxu0
    %v370 = vadd.f32 0.0, %v369
    %v371 = vpop.f32.mrb[0].mxu0
    %v372 = vpop.f32.mrb[0].mxu0
    %v373 = vadd.f32 0.0, %v372
    %v374 = vpop.f32.mrb[0].mxu0
    %375 = vmatprep.mubr.bf16.mxu0 0
    %376 = vmatmul.mubr.bf16.gmra.mrb[0].mxu0 %v136
    %v377 = vpop.f32.mrb[0].mxu0
    %v378 = vadd.f32 0.0, %v377
    %v379 = vpop.f32.mrb[0].mxu0
    %v380 = vpop.f32.mrb[0].mxu0
    %v381 = vadd.f32 0.0, %v380
    %v382 = vpop.f32.mrb[0].mxu0
    %383 = vmatprep.mubr.bf16.mxu0 0
    %384 = vmatmul.mubr.bf16.gmra.mrb[0].mxu0 %v137
    %v385 = vpop.f32.mrb[0].mxu0
    %v386 = vadd.f32 0.0, %v385
    %v387 = vpop.f32.mrb[0].mxu0
    %v388 = vpop.f32.mrb[0].mxu0
    %v389 = vadd.f32 0.0, %v388
    %v390 = vpop.f32.mrb[0].mxu0
    %391 = vmatprep.mubr.bf16.mxu0 0
    %392 = vmatmul.mubr.bf16.gmra.mrb[0].mxu0 %v138
    %v393 = vpop.f32.mrb[0].mxu0
    %v394 = vadd.f32 0.0, %v393
    %v395 = vpop.f32.mrb[0].mxu0
    %v396 = vpop.f32.mrb[0].mxu0
    %v397 = vadd.f32 0.0, %v396
    %v398 = vpop.f32.mrb[0].mxu0
    %399 = vmatprep.mubr.bf16.mxu0 0
    %400 = vmatmul.mubr.bf16.gmra.mrb[0].mxu0 %v139
    %v401 = vpop.f32.mrb[0].mxu0
    %v402 = vadd.f32 0.0, %v401
    %v403 = vpop.f32.mrb[0].mxu0
    %v404 = vpop.f32.mrb[0].mxu0
    %v405 = vadd.f32 0.0, %v404
    %v406 = vpop.f32.mrb[0].mxu0
    %407 = vmatprep.mubr.bf16.mxu0 0
    %408 = vmatmul.mubr.bf16.gmra.mrb[0].mxu0 %v140
    %v409 = vpop.f32.mrb[0].mxu0
    %v410 = vadd.f32 0.0, %v409
    %v411 = vpop.f32.mrb[0].mxu0
    %v412 = vpop.f32.mrb[0].mxu0
    %v413 = vadd.f32 0.0, %v412
    %v414 = vpop.f32.mrb[0].mxu0
    %415 = vmatprep.mubr.bf16.mxu0 0
    %416 = vmatmul.mubr.bf16.gmra.mrb[0].mxu0 %v141
    %v417 = vpop.f32.mrb[0].mxu0
    %v418 = vadd.f32 0.0, %v417
    %v419 = vpop.f32.mrb[0].mxu0
    %v420 = vpop.f32.mrb[0].mxu0
    %v421 = vadd.f32 0.0, %v420
    %v422 = vpop.f32.mrb[0].mxu0
    %423 = vmatprep.mubr.bf16.mxu0 0
    %424 = vmatmul.mubr.bf16.gmra.mrb[0].mxu0 %v142
    %v425 = vpop.f32.mrb[0].mxu0
    %v426 = vadd.f32 0.0, %v425
    %v427 = vpop.f32.mrb[0].mxu0
    %v428 = vpop.f32.mrb[0].mxu0
    %v429 = vadd.f32 0.0, %v428
    %v430 = vpop.f32.mrb[0].mxu0
    %431 = vdwg.mxu0
    %v432 = vld [vmem:[#allocation3] sm:$0xff]
    %v433 = vld [vmem:[#allocation3 + $0x8] sm:$0xf]
    %v434 = vld [vmem:[#allocation3 + $0xc] sm:$0xff]
    %v435 = vld [vmem:[#allocation3 + $0x14] sm:$0xf]
    %v436 = vld [vmem:[#allocation3 + $0x18] sm:$0xff]
    %v437 = vld [vmem:[#allocation3 + $0x20] sm:$0xf]
    %v438 = vld [vmem:[#allocation3 + $0x24] sm:$0xff]
    %v439 = vld [vmem:[#allocation3 + $0x2c] sm:$0xf]
    %v440 = vld [vmem:[#allocation3 + $0x30] sm:$0xff]
    %v441 = vld [vmem:[#allocation3 + $0x38] sm:$0xf]
    %v442 = vld [vmem:[#allocation3 + $0x3c] sm:$0xff]
    %v443 = vld [vmem:[#allocation3 + $0x44] sm:$0xf]
    %v444 = vld [vmem:[#allocation3 + $0x48] sm:$0xff]
    %v445 = vld [vmem:[#allocation3 + $0x50] sm:$0xf]
    %v446 = vld [vmem:[#allocation3 + $0x54] sm:$0xff]
    %v447 = vld [vmem:[#allocation3 + $0x5c] sm:$0xf]
    %v448 = vld [vmem:[#allocation3 + $0x60] sm:$0xff]
    %v449 = vld [vmem:[#allocation3 + $0x68] sm:$0xf]
    %v450 = vld [vmem:[#allocation3 + $0x6c] sm:$0xff]
    %v451 = vld [vmem:[#allocation3 + $0x74] sm:$0xf]
    %v452 = vld [vmem:[#allocation3 + $0x78] sm:$0xff]
    %v453 = vld [vmem:[#allocation3 + $0x80] sm:$0xf]
    %v454 = vld [vmem:[#allocation3 + $0x84] sm:$0xff]
    %v455 = vld [vmem:[#allocation3 + $0x8c] sm:$0xf]
    %v456 = vld [vmem:[#allocation3 + $0x90] sm:$0xff]
    %v457 = vld [vmem:[#allocation3 + $0x98] sm:$0xf]
    %v458 = vld [vmem:[#allocation3 + $0x9c] sm:$0xff]
    %v459 = vld [vmem:[#allocation3 + $0xa4] sm:$0xf]
    %v460 = vld [vmem:[#allocation3 + $0xa8] sm:$0xff]
    %v461 = vld [vmem:[#allocation3 + $0xb0] sm:$0xf]
    %v462 = vld [vmem:[#allocation3 + $0xb4] sm:$0xff]
    %v463 = vld [vmem:[#allocation3 + $0xbc] sm:$0xf]
    %v464 = vld [vmem:[#allocation3 + $0xc0] sm:$0xff]
    %v465 = vld [vmem:[#allocation3 + $0xc8] sm:$0xf]
    %v466 = vld [vmem:[#allocation3 + $0xcc] sm:$0xff]
    %v467 = vld [vmem:[#allocation3 + $0xd4] sm:$0xf]
    %v468 = vld [vmem:[#allocation3 + $0xd8] sm:$0xff]
    %v469 = vld [vmem:[#allocation3 + $0xe0] sm:$0xf]
    %v470 = vld [vmem:[#allocation3 + $0xe4] sm:$0xff]
    %v471 = vld [vmem:[#allocation3 + $0xec] sm:$0xf]
    %v472 = vld [vmem:[#allocation3 + $0xf0] sm:$0xff]
    %v473 = vld [vmem:[#allocation3 + $0xf8] sm:$0xf]
    %v474 = vld [vmem:[#allocation3 + $0xfc] sm:$0xff]
    %v475 = vld [vmem:[#allocation3 + $0x104] sm:$0xf]
    %v476 = vld [vmem:[#allocation3 + $0x108] sm:$0xff]
    %v477 = vld [vmem:[#allocation3 + $0x110] sm:$0xf]
    %v478 = vld [vmem:[#allocation3 + $0x114] sm:$0xff]
    %v479 = vld [vmem:[#allocation3 + $0x11c] sm:$0xf]
    %v480 = vld [vmem:[#allocation3 + $0x120] sm:$0xff]
    %v481 = vld [vmem:[#allocation3 + $0x128] sm:$0xf]
    %v482 = vld [vmem:[#allocation3 + $0x12c] sm:$0xff]
    %v483 = vld [vmem:[#allocation3 + $0x134] sm:$0xf]
    %v484 = vld [vmem:[#allocation3 + $0x138] sm:$0xff]
    %v485 = vld [vmem:[#allocation3 + $0x140] sm:$0xf]
    %v486 = vld [vmem:[#allocation3 + $0x144] sm:$0xff]
    %v487 = vld [vmem:[#allocation3 + $0x14c] sm:$0xf]
    %v488 = vld [vmem:[#allocation3 + $0x150] sm:$0xff]
    %v489 = vld [vmem:[#allocation3 + $0x158] sm:$0xf]
    %v490 = vld [vmem:[#allocation3 + $0x15c] sm:$0xff]
    %v491 = vld [vmem:[#allocation3 + $0x164] sm:$0xf]
    %v492 = vld [vmem:[#allocation3 + $0x168] sm:$0xff]
    %v493 = vld [vmem:[#allocation3 + $0x170] sm:$0xf]
    %v494 = vld [vmem:[#allocation3 + $0x174] sm:$0xff]
    %v495 = vld [vmem:[#allocation3 + $0x17c] sm:$0xf]
    %v496 = vld [vmem:[#allocation3 + $0x180] sm:$0xff]
    %v497 = vld [vmem:[#allocation3 + $0x188] sm:$0xf]
    %v498 = vld [vmem:[#allocation3 + $0x18c] sm:$0xff]
    %v499 = vld [vmem:[#allocation3 + $0x194] sm:$0xf]
    %v500 = vld [vmem:[#allocation3 + $0x198] sm:$0xff]
    %v501 = vld [vmem:[#allocation3 + $0x1a0] sm:$0xf]
    %v502 = vld [vmem:[#allocation3 + $0x1a4] sm:$0xff]
    %v503 = vld [vmem:[#allocation3 + $0x1ac] sm:$0xf]
    %v504 = vld [vmem:[#allocation3 + $0x1b0] sm:$0xff]
    %v505 = vld [vmem:[#allocation3 + $0x1b8] sm:$0xf]
    %v506 = vld [vmem:[#allocation3 + $0x1bc] sm:$0xff]
    %v507 = vld [vmem:[#allocation3 + $0x1c4] sm:$0xf]
    %v508 = vld [vmem:[#allocation3 + $0x1c8] sm:$0xff]
    %v509 = vld [vmem:[#allocation3 + $0x1d0] sm:$0xf]
    %v510 = vld [vmem:[#allocation3 + $0x1d4] sm:$0xff]
    %v511 = vld [vmem:[#allocation3 + $0x1dc] sm:$0xf]
    %v512 = vld [vmem:[#allocation3 + $0x1e0] sm:$0xff]
    %v513 = vld [vmem:[#allocation3 + $0x1e8] sm:$0xf]
    %v514 = vld [vmem:[#allocation3 + $0x1ec] sm:$0xff]
    %v515 = vld [vmem:[#allocation3 + $0x1f4] sm:$0xf]
    %v516 = vld [vmem:[#allocation3 + $0x1f8] sm:$0xff]
    %v517 = vld [vmem:[#allocation3 + $0x200] sm:$0xf]
    %v518 = vld [vmem:[#allocation3 + $0x204] sm:$0xff]
    %v519 = vld [vmem:[#allocation3 + $0x20c] sm:$0xf]
    %v520 = vld [vmem:[#allocation3 + $0x210] sm:$0xff]
    %v521 = vld [vmem:[#allocation3 + $0x218] sm:$0xf]
    %v522 = vld [vmem:[#allocation3 + $0x21c] sm:$0xff]
    %v523 = vld [vmem:[#allocation3 + $0x224] sm:$0xf]
    %v524 = vld [vmem:[#allocation3 + $0x228] sm:$0xff]
    %v525 = vld [vmem:[#allocation3 + $0x230] sm:$0xf]
    %v526 = vld [vmem:[#allocation3 + $0x234] sm:$0xff]
    %v527 = vld [vmem:[#allocation3 + $0x23c] sm:$0xf]
    %v528 = vpack.c.bf16 %v245, %v242
    %v529 = vpack.c.bf16 %v253, %v250
    %v530 = vpack.c.bf16 %v261, %v258
    %v531 = vpack.c.bf16 %v269, %v266
    %v532 = vpack.c.bf16 %v277, %v274
    %v533 = vpack.c.bf16 %v285, %v282
    %v534 = vpack.c.bf16 %v293, %v290
    %v535 = vpack.c.bf16 %v301, %v298
    %v536 = vpack.c.bf16 %v309, %v306
    %v537 = vpack.c.bf16 %v317, %v314
    %v538 = vpack.c.bf16 %v325, %v322
    %v539 = vpack.c.bf16 %v333, %v330
    %v540 = vpack.c.bf16 %v341, %v338
    %v541 = vpack.c.bf16 %v349, %v346
    %v542 = vpack.c.bf16 %v357, %v354
    %v543 = vpack.c.bf16 %v365, %v362
    %v544 = vpack.c.bf16 %v373, %v370
    %v545 = vpack.c.bf16 %v381, %v378
    %v546 = vpack.c.bf16 %v389, %v386
    %v547 = vpack.c.bf16 %v397, %v394
    %v548 = vpack.c.bf16 %v405, %v402
    %v549 = vpack.c.bf16 %v413, %v410
    %v550 = vpack.c.bf16 %v421, %v418
    %v551 = vpack.c.bf16 %v429, %v426
    %v552 = vld [vmem:[%s3] sm:$0x1]
    %v554 = vlaneseq
    %v555 = vshrl.u32 %v554, 7
    %v556 = vsub.s32 0, %v555
    %v557 = vrot.slane %v552, %v556
    %v655 = vunpack.c.l.b16 %v432
    %v656 = vunpack.c.h.b16 %v432
    %v657 = vunpack.c.l.b16 %v433
    %v658 = vunpack.c.l.b16 %v434
    %v659 = vunpack.c.h.b16 %v434
    %v660 = vunpack.c.l.b16 %v435
    %v661 = vunpack.c.l.b16 %v436
    %v662 = vunpack.c.h.b16 %v436
    %v663 = vunpack.c.l.b16 %v437
    %v664 = vunpack.c.l.b16 %v438
    %v665 = vunpack.c.h.b16 %v438
    %v666 = vunpack.c.l.b16 %v439
    %v667 = vunpack.c.l.b16 %v440
    %v668 = vunpack.c.h.b16 %v440
    %v669 = vunpack.c.l.b16 %v441
    %v670 = vunpack.c.l.b16 %v442
    %v671 = vunpack.c.h.b16 %v442
    %v672 = vunpack.c.l.b16 %v443
    %v673 = vunpack.c.l.b16 %v444
    %v674 = vunpack.c.h.b16 %v444
    %v675 = vunpack.c.l.b16 %v445
    %v676 = vunpack.c.l.b16 %v446
    %v677 = vunpack.c.h.b16 %v446
    %v678 = vunpack.c.l.b16 %v447
    %v679 = vunpack.c.l.b16 %v448
    %v680 = vunpack.c.h.b16 %v448
    %v681 = vunpack.c.l.b16 %v449
    %v682 = vunpack.c.l.b16 %v450
    %v683 = vunpack.c.h.b16 %v450
    %v684 = vunpack.c.l.b16 %v451
    %v685 = vunpack.c.l.b16 %v452
    %v686 = vunpack.c.h.b16 %v452
    %v687 = vunpack.c.l.b16 %v453
    %v688 = vunpack.c.l.b16 %v454
    %v689 = vunpack.c.h.b16 %v454
    %v690 = vunpack.c.l.b16 %v455
    %v691 = vunpack.c.l.b16 %v456
    %v692 = vunpack.c.h.b16 %v456
    %v693 = vunpack.c.l.b16 %v457
    %v694 = vunpack.c.l.b16 %v458
    %v695 = vunpack.c.h.b16 %v458
    %v696 = vunpack.c.l.b16 %v459
    %v697 = vunpack.c.l.b16 %v460
    %v698 = vunpack.c.h.b16 %v460
    %v699 = vunpack.c.l.b16 %v461
    %v700 = vunpack.c.l.b16 %v462
    %v701 = vunpack.c.h.b16 %v462
    %v702 = vunpack.c.l.b16 %v463
    %v703 = vunpack.c.l.b16 %v464
    %v704 = vunpack.c.h.b16 %v464
    %v705 = vunpack.c.l.b16 %v465
    %v706 = vunpack.c.l.b16 %v466
    %v707 = vunpack.c.h.b16 %v466
    %v708 = vunpack.c.l.b16 %v467
    %v709 = vunpack.c.l.b16 %v468
    %v710 = vunpack.c.h.b16 %v468
    %v711 = vunpack.c.l.b16 %v469
    %v712 = vunpack.c.l.b16 %v470
    %v713 = vunpack.c.h.b16 %v470
    %v714 = vunpack.c.l.b16 %v471
    %v715 = vunpack.c.l.b16 %v472
    %v716 = vunpack.c.h.b16 %v472
    %v717 = vunpack.c.l.b16 %v473
    %v718 = vunpack.c.l.b16 %v474
    %v719 = vunpack.c.h.b16 %v474
    %v720 = vunpack.c.l.b16 %v475
    %v721 = vunpack.c.l.b16 %v476
    %v722 = vunpack.c.h.b16 %v476
    %v723 = vunpack.c.l.b16 %v477
    %v724 = vunpack.c.l.b16 %v478
    %v725 = vunpack.c.h.b16 %v478
    %v726 = vunpack.c.l.b16 %v479
    %v727 = vunpack.c.l.b16 %v480
    %v728 = vunpack.c.h.b16 %v480
    %v729 = vunpack.c.l.b16 %v481
    %v730 = vunpack.c.l.b16 %v482
    %v731 = vunpack.c.h.b16 %v482
    %v732 = vunpack.c.l.b16 %v483
    %v733 = vunpack.c.l.b16 %v484
    %v734 = vunpack.c.h.b16 %v484
    %v735 = vunpack.c.l.b16 %v485
    %v736 = vunpack.c.l.b16 %v486
    %v737 = vunpack.c.h.b16 %v486
    %v738 = vunpack.c.l.b16 %v487
    %v739 = vunpack.c.l.b16 %v488
    %v740 = vunpack.c.h.b16 %v488
    %v741 = vunpack.c.l.b16 %v489
    %v742 = vunpack.c.l.b16 %v490
    %v743 = vunpack.c.h.b16 %v490
    %v744 = vunpack.c.l.b16 %v491
    %v745 = vunpack.c.l.b16 %v492
    %v746 = vunpack.c.h.b16 %v492
    %v747 = vunpack.c.l.b16 %v493
    %v748 = vunpack.c.l.b16 %v494
    %v749 = vunpack.c.h.b16 %v494
    %v750 = vunpack.c.l.b16 %v495
    %v751 = vunpack.c.l.b16 %v496
    %v752 = vunpack.c.h.b16 %v496
    %v753 = vunpack.c.l.b16 %v497
    %v754 = vunpack.c.l.b16 %v498
    %v755 = vunpack.c.h.b16 %v498
    %v756 = vunpack.c.l.b16 %v499
    %v757 = vunpack.c.l.b16 %v500
    %v758 = vunpack.c.h.b16 %v500
    %v759 = vunpack.c.l.b16 %v501
    %v760 = vunpack.c.l.b16 %v502
    %v761 = vunpack.c.h.b16 %v502
    %v762 = vunpack.c.l.b16 %v503
    %v763 = vunpack.c.l.b16 %v504
    %v764 = vunpack.c.h.b16 %v504
    %v765 = vunpack.c.l.b16 %v505
    %v766 = vunpack.c.l.b16 %v506
    %v767 = vunpack.c.h.b16 %v506
    %v768 = vunpack.c.l.b16 %v507
    %v769 = vunpack.c.l.b16 %v508
    %v770 = vunpack.c.h.b16 %v508
    %v771 = vunpack.c.l.b16 %v509
    %v772 = vunpack.c.l.b16 %v510
    %v773 = vunpack.c.h.b16 %v510
    %v774 = vunpack.c.l.b16 %v511
    %v775 = vunpack.c.l.b16 %v512
    %v776 = vunpack.c.h.b16 %v512
    %v777 = vunpack.c.l.b16 %v513
    %v778 = vunpack.c.l.b16 %v514
    %v779 = vunpack.c.h.b16 %v514
    %v780 = vunpack.c.l.b16 %v515
    %v781 = vunpack.c.l.b16 %v516
    %v782 = vunpack.c.h.b16 %v516
    %v783 = vunpack.c.l.b16 %v517
    %v784 = vunpack.c.l.b16 %v518
    %v785 = vunpack.c.h.b16 %v518
    %v786 = vunpack.c.l.b16 %v519
    %v787 = vunpack.c.l.b16 %v520
    %v788 = vunpack.c.h.b16 %v520
    %v789 = vunpack.c.l.b16 %v521
    %v790 = vunpack.c.l.b16 %v522
    %v791 = vunpack.c.h.b16 %v522
    %v792 = vunpack.c.l.b16 %v523
    %v793 = vunpack.c.l.b16 %v524
    %v794 = vunpack.c.h.b16 %v524
    %v795 = vunpack.c.l.b16 %v525
    %v796 = vunpack.c.l.b16 %v526
    %v797 = vunpack.c.h.b16 %v526
    %v798 = vunpack.c.l.b16 %v527
    %v799 = vpack.c.b16 %v658, %v655
    %v800 = vpack.c.b16 %v659, %v656
    %v801 = vpack.c.b16 %v660, %v657
    %v802 = vpack.c.b16 %v664, %v661
    %v803 = vpack.c.b16 %v665, %v662
    %v804 = vpack.c.b16 %v666, %v663
    %v805 = vpack.c.b16 %v670, %v667
    %v806 = vpack.c.b16 %v671, %v668
    %v807 = vpack.c.b16 %v672, %v669
    %v808 = vpack.c.b16 %v676, %v673
    %v809 = vpack.c.b16 %v677, %v674
    %v810 = vpack.c.b16 %v678, %v675
    %v811 = vpack.c.b16 %v682, %v679
    %v812 = vpack.c.b16 %v683, %v680
    %v813 = vpack.c.b16 %v684, %v681
    %v814 = vpack.c.b16 %v688, %v685
    %v815 = vpack.c.b16 %v689, %v686
    %v816 = vpack.c.b16 %v690, %v687
    %v817 = vpack.c.b16 %v694, %v691
    %v818 = vpack.c.b16 %v695, %v692
    %v819 = vpack.c.b16 %v696, %v693
    %v820 = vpack.c.b16 %v700, %v697
    %v821 = vpack.c.b16 %v701, %v698
    %v822 = vpack.c.b16 %v702, %v699
    %v823 = vpack.c.b16 %v706, %v703
    %v824 = vpack.c.b16 %v707, %v704
    %v825 = vpack.c.b16 %v708, %v705
    %v826 = vpack.c.b16 %v712, %v709
    %v827 = vpack.c.b16 %v713, %v710
    %v828 = vpack.c.b16 %v714, %v711
    %v829 = vpack.c.b16 %v718, %v715
    %v830 = vpack.c.b16 %v719, %v716
    %v831 = vpack.c.b16 %v720, %v717
    %v832 = vpack.c.b16 %v724, %v721
    %v833 = vpack.c.b16 %v725, %v722
    %v834 = vpack.c.b16 %v726, %v723
    %v835 = vpack.c.b16 %v730, %v727
    %v836 = vpack.c.b16 %v731, %v728
    %v837 = vpack.c.b16 %v732, %v729
    %v838 = vpack.c.b16 %v736, %v733
    %v839 = vpack.c.b16 %v737, %v734
    %v840 = vpack.c.b16 %v738, %v735
    %v841 = vpack.c.b16 %v742, %v739
    %v842 = vpack.c.b16 %v743, %v740
    %v843 = vpack.c.b16 %v744, %v741
    %v844 = vpack.c.b16 %v748, %v745
    %v845 = vpack.c.b16 %v749, %v746
    %v846 = vpack.c.b16 %v750, %v747
    %v847 = vpack.c.b16 %v754, %v751
    %v848 = vpack.c.b16 %v755, %v752
    %v849 = vpack.c.b16 %v756, %v753
    %v850 = vpack.c.b16 %v760, %v757
    %v851 = vpack.c.b16 %v761, %v758
    %v852 = vpack.c.b16 %v762, %v759
    %v853 = vpack.c.b16 %v766, %v763
    %v854 = vpack.c.b16 %v767, %v764
    %v855 = vpack.c.b16 %v768, %v765
    %v856 = vpack.c.b16 %v772, %v769
    %v857 = vpack.c.b16 %v773, %v770
    %v858 = vpack.c.b16 %v774, %v771
    %v859 = vpack.c.b16 %v778, %v775
    %v860 = vpack.c.b16 %v779, %v776
    %v861 = vpack.c.b16 %v780, %v777
    %v862 = vpack.c.b16 %v784, %v781
    %v863 = vpack.c.b16 %v785, %v782
    %v864 = vpack.c.b16 %v786, %v783
    %v865 = vpack.c.b16 %v790, %v787
    %v866 = vpack.c.b16 %v791, %v788
    %v867 = vpack.c.b16 %v792, %v789
    %v868 = vpack.c.b16 %v796, %v793
    %v869 = vpack.c.b16 %v797, %v794
    %v870 = vpack.c.b16 %v798, %v795
    %943 = vmatprep.subr.bf16.mxu0 0
    %944 = vmatpush1.bf16.msra.mxu0 %v528
    %945 = vmatprep.subr.bf16.mxu0 0
    %946 = vmatpush1.bf16.msra.mxu0 %v529
    %947 = vmatprep.subr.bf16.mxu0 0
    %948 = vmatpush1.bf16.msra.mxu0 %v530
    %949 = vmatprep.subr.bf16.mxu0 0
    %950 = vmatpush1.bf16.msra.mxu0 %v531
    %951 = vmatprep.subr.bf16.mxu0 0
    %952 = vmatpush1.bf16.msra.mxu0 %v532
    %953 = vmatprep.subr.bf16.mxu0 0
    %954 = vmatpush1.bf16.msra.mxu0 %v533
    %955 = vmatprep.subr.bf16.mxu0 0
    %956 = vmatpush1.bf16.msra.mxu0 %v534
    %957 = vmatprep.subr.bf16.mxu0 0
    %958 = vmatpush1.bf16.msra.mxu0 %v535
    %959 = vmatprep.subr.bf16.mxu0 0
    %960 = vmatpush1.bf16.msra.mxu0 %v536
    %961 = vmatprep.subr.bf16.mxu0 0
    %962 = vmatpush1.bf16.msra.mxu0 %v537
    %963 = vmatprep.subr.bf16.mxu0 0
    %964 = vmatpush1.bf16.msra.mxu0 %v538
    %965 = vmatprep.subr.bf16.mxu0 0
    %966 = vmatpush1.bf16.msra.mxu0 %v539
    %967 = vmatprep.subr.bf16.mxu0 0
    %968 = vmatpush1.bf16.msra.mxu0 %v540
    %969 = vmatprep.subr.bf16.mxu0 0
    %970 = vmatpush1.bf16.msra.mxu0 %v541
    %971 = vmatprep.subr.bf16.mxu0 0
    %972 = vmatpush1.bf16.msra.mxu0 %v542
    %973 = vmatprep.subr.bf16.mxu0 0
    %974 = vmatpush1.bf16.msra.mxu0 %v543
    %975 = vmatprep.mubr.bf16.mxu0 %v800
    %976 = vmatmul.mubr.bf16.gmra.mrb[0].mxu0 %v799
    %v977 = vpop.f32.mrb[0].mxu0
    %v978 = vadd.f32 %v557, %v977
    %v979 = vpop.f32.mrb[0].mxu0
    %v980 = vpop.f32.mrb[0].mxu0
    %v981 = vadd.f32 %v557, %v980
    %v982 = vpop.f32.mrb[0].mxu0
    %983 = vmatprep.mubr.bf16.mxu0 %v803
    %984 = vmatmul.mubr.bf16.gmra.mrb[0].mxu0 %v802
    %v985 = vpop.f32.mrb[0].mxu0
    %v986 = vadd.f32 %v557, %v985
    %v987 = vpop.f32.mrb[0].mxu0
    %v988 = vpop.f32.mrb[0].mxu0
    %v989 = vadd.f32 %v557, %v988
    %v990 = vpop.f32.mrb[0].mxu0
    %991 = vmatprep.mubr.bf16.mxu0 %v806
    %992 = vmatmul.mubr.bf16.gmra.mrb[0].mxu0 %v805
    %v993 = vpop.f32.mrb[0].mxu0
    %v994 = vadd.f32 %v557, %v993
    %v995 = vpop.f32.mrb[0].mxu0
    %v996 = vpop.f32.mrb[0].mxu0
    %v997 = vadd.f32 %v557, %v996
    %v998 = vpop.f32.mrb[0].mxu0
    %999 = vmatprep.mubr.bf16.mxu0 %v809
    %1000 = vmatmul.mubr.bf16.gmra.mrb[0].mxu0 %v808
    %v1001 = vpop.f32.mrb[0].mxu0
    %v1002 = vadd.f32 %v557, %v1001
    %v1003 = vpop.f32.mrb[0].mxu0
    %v1004 = vpop.f32.mrb[0].mxu0
    %v1005 = vadd.f32 %v557, %v1004
    %v1006 = vpop.f32.mrb[0].mxu0
    %1007 = vmatprep.mubr.bf16.mxu0 %v812
    %1008 = vmatmul.mubr.bf16.gmra.mrb[0].mxu0 %v811
    %v1009 = vpop.f32.mrb[0].mxu0
    %v1010 = vadd.f32 %v557, %v1009
    %v1011 = vpop.f32.mrb[0].mxu0
    %v1012 = vpop.f32.mrb[0].mxu0
    %v1013 = vadd.f32 %v557, %v1012
    %v1014 = vpop.f32.mrb[0].mxu0
    %1015 = vmatprep.mubr.bf16.mxu0 %v815
    %1016 = vmatmul.mubr.bf16.gmra.mrb[0].mxu0 %v814
    %v1017 = vpop.f32.mrb[0].mxu0
    %v1018 = vadd.f32 %v557, %v1017
    %v1019 = vpop.f32.mrb[0].mxu0
    %v1020 = vpop.f32.mrb[0].mxu0
    %v1021 = vadd.f32 %v557, %v1020
    %v1022 = vpop.f32.mrb[0].mxu0
    %1023 = vmatprep.mubr.bf16.mxu0 %v818
    %1024 = vmatmul.mubr.bf16.gmra.mrb[0].mxu0 %v817
    %v1025 = vpop.f32.mrb[0].mxu0
    %v1026 = vadd.f32 %v557, %v1025
    %v1027 = vpop.f32.mrb[0].mxu0
    %v1028 = vpop.f32.mrb[0].mxu0
    %v1029 = vadd.f32 %v557, %v1028
    %v1030 = vpop.f32.mrb[0].mxu0
    %1031 = vmatprep.mubr.bf16.mxu0 %v821
    %1032 = vmatmul.mubr.bf16.gmra.mrb[0].mxu0 %v820
    %v1033 = vpop.f32.mrb[0].mxu0
    %v1034 = vadd.f32 %v557, %v1033
    %v1035 = vpop.f32.mrb[0].mxu0
    %v1036 = vpop.f32.mrb[0].mxu0
    %v1037 = vadd.f32 %v557, %v1036
    %v1038 = vpop.f32.mrb[0].mxu0
    %1039 = vmatprep.mubr.bf16.mxu0 %v824
    %1040 = vmatmul.mubr.bf16.gmra.mrb[0].mxu0 %v823
    %v1041 = vpop.f32.mrb[0].mxu0
    %v1042 = vadd.f32 %v557, %v1041
    %v1043 = vpop.f32.mrb[0].mxu0
    %v1044 = vpop.f32.mrb[0].mxu0
    %v1045 = vadd.f32 %v557, %v1044
    %v1046 = vpop.f32.mrb[0].mxu0
    %1047 = vmatprep.mubr.bf16.mxu0 %v827
    %1048 = vmatmul.mubr.bf16.gmra.mrb[0].mxu0 %v826
    %v1049 = vpop.f32.mrb[0].mxu0
    %v1050 = vadd.f32 %v557, %v1049
    %v1051 = vpop.f32.mrb[0].mxu0
    %v1052 = vpop.f32.mrb[0].mxu0
    %v1053 = vadd.f32 %v557, %v1052
    %v1054 = vpop.f32.mrb[0].mxu0
    %1055 = vmatprep.mubr.bf16.mxu0 %v830
    %1056 = vmatmul.mubr.bf16.gmra.mrb[0].mxu0 %v829
    %v1057 = vpop.f32.mrb[0].mxu0
    %v1058 = vadd.f32 %v557, %v1057
    %v1059 = vpop.f32.mrb[0].mxu0
    %v1060 = vpop.f32.mrb[0].mxu0
    %v1061 = vadd.f32 %v557, %v1060
    %v1062 = vpop.f32.mrb[0].mxu0
    %1063 = vmatprep.mubr.bf16.mxu0 %v833
    %1064 = vmatmul.mubr.bf16.gmra.mrb[0].mxu0 %v832
    %v1065 = vpop.f32.mrb[0].mxu0
    %v1066 = vadd.f32 %v557, %v1065
    %v1067 = vpop.f32.mrb[0].mxu0
    %v1068 = vpop.f32.mrb[0].mxu0
    %v1069 = vadd.f32 %v557, %v1068
    %v1070 = vpop.f32.mrb[0].mxu0
    %1071 = vmatprep.mubr.bf16.mxu0 %v836
    %1072 = vmatmul.mubr.bf16.gmra.mrb[0].mxu0 %v835
    %v1073 = vpop.f32.mrb[0].mxu0
    %v1074 = vadd.f32 %v557, %v1073
    %v1075 = vpop.f32.mrb[0].mxu0
    %v1076 = vpop.f32.mrb[0].mxu0
    %v1077 = vadd.f32 %v557, %v1076
    %v1078 = vpop.f32.mrb[0].mxu0
    %1079 = vmatprep.mubr.bf16.mxu0 %v839
    %1080 = vmatmul.mubr.bf16.gmra.mrb[0].mxu0 %v838
    %v1081 = vpop.f32.mrb[0].mxu0
    %v1082 = vadd.f32 %v557, %v1081
    %v1083 = vpop.f32.mrb[0].mxu0
    %v1084 = vpop.f32.mrb[0].mxu0
    %v1085 = vadd.f32 %v557, %v1084
    %v1086 = vpop.f32.mrb[0].mxu0
    %1087 = vmatprep.mubr.bf16.mxu0 %v842
    %1088 = vmatmul.mubr.bf16.gmra.mrb[0].mxu0 %v841
    %v1089 = vpop.f32.mrb[0].mxu0
    %v1090 = vadd.f32 %v557, %v1089
    %v1091 = vpop.f32.mrb[0].mxu0
    %v1092 = vpop.f32.mrb[0].mxu0
    %v1093 = vadd.f32 %v557, %v1092
    %v1094 = vpop.f32.mrb[0].mxu0
    %1095 = vmatprep.mubr.bf16.mxu0 %v845
    %1096 = vmatmul.mubr.bf16.gmra.mrb[0].mxu0 %v844
    %v1097 = vpop.f32.mrb[0].mxu0
    %v1098 = vadd.f32 %v557, %v1097
    %v1099 = vpop.f32.mrb[0].mxu0
    %v1100 = vpop.f32.mrb[0].mxu0
    %v1101 = vadd.f32 %v557, %v1100
    %v1102 = vpop.f32.mrb[0].mxu0
    %1103 = vmatprep.mubr.bf16.mxu0 %v848
    %1104 = vmatmul.mubr.bf16.gmra.mrb[0].mxu0 %v847
    %v1105 = vpop.f32.mrb[0].mxu0
    %v1106 = vadd.f32 %v557, %v1105
    %v1107 = vpop.f32.mrb[0].mxu0
    %v1108 = vpop.f32.mrb[0].mxu0
    %v1109 = vadd.f32 %v557, %v1108
    %v1110 = vpop.f32.mrb[0].mxu0
    %1111 = vmatprep.mubr.bf16.mxu0 %v851
    %1112 = vmatmul.mubr.bf16.gmra.mrb[0].mxu0 %v850
    %v1113 = vpop.f32.mrb[0].mxu0
    %v1114 = vadd.f32 %v557, %v1113
    %v1115 = vpop.f32.mrb[0].mxu0
    %v1116 = vpop.f32.mrb[0].mxu0
    %v1117 = vadd.f32 %v557, %v1116
    %v1118 = vpop.f32.mrb[0].mxu0
    %1119 = vmatprep.mubr.bf16.mxu0 %v854
    %1120 = vmatmul.mubr.bf16.gmra.mrb[0].mxu0 %v853
    %v1121 = vpop.f32.mrb[0].mxu0
    %v1122 = vadd.f32 %v557, %v1121
    %v1123 = vpop.f32.mrb[0].mxu0
    %v1124 = vpop.f32.mrb[0].mxu0
    %v1125 = vadd.f32 %v557, %v1124
    %v1126 = vpop.f32.mrb[0].mxu0
    %1127 = vmatprep.mubr.bf16.mxu0 %v857
    %1128 = vmatmul.mubr.bf16.gmra.mrb[0].mxu0 %v856
    %v1129 = vpop.f32.mrb[0].mxu0
    %v1130 = vadd.f32 %v557, %v1129
    %v1131 = vpop.f32.mrb[0].mxu0
    %v1132 = vpop.f32.mrb[0].mxu0
    %v1133 = vadd.f32 %v557, %v1132
    %v1134 = vpop.f32.mrb[0].mxu0
    %1135 = vmatprep.mubr.bf16.mxu0 %v860
    %1136 = vmatmul.mubr.bf16.gmra.mrb[0].mxu0 %v859
    %v1137 = vpop.f32.mrb[0].mxu0
    %v1138 = vadd.f32 %v557, %v1137
    %v1139 = vpop.f32.mrb[0].mxu0
    %v1140 = vpop.f32.mrb[0].mxu0
    %v1141 = vadd.f32 %v557, %v1140
    %v1142 = vpop.f32.mrb[0].mxu0
    %1143 = vmatprep.mubr.bf16.mxu0 %v863
    %1144 = vmatmul.mubr.bf16.gmra.mrb[0].mxu0 %v862
    %v1145 = vpop.f32.mrb[0].mxu0
    %v1146 = vadd.f32 %v557, %v1145
    %v1147 = vpop.f32.mrb[0].mxu0
    %v1148 = vpop.f32.mrb[0].mxu0
    %v1149 = vadd.f32 %v557, %v1148
    %v1150 = vpop.f32.mrb[0].mxu0
    %1151 = vmatprep.mubr.bf16.mxu0 %v866
    %1152 = vmatmul.mubr.bf16.gmra.mrb[0].mxu0 %v865
    %v1153 = vpop.f32.mrb[0].mxu0
    %v1154 = vadd.f32 %v557, %v1153
    %v1155 = vpop.f32.mrb[0].mxu0
    %v1156 = vpop.f32.mrb[0].mxu0
    %v1157 = vadd.f32 %v557, %v1156
    %v1158 = vpop.f32.mrb[0].mxu0
    %1159 = vmatprep.mubr.bf16.mxu0 %v869
    %1160 = vmatmul.mubr.bf16.gmra.mrb[0].mxu0 %v868
    %v1161 = vpop.f32.mrb[0].mxu0
    %v1162 = vadd.f32 %v557, %v1161
    %v1163 = vpop.f32.mrb[0].mxu0
    %v1164 = vpop.f32.mrb[0].mxu0
    %v1165 = vadd.f32 %v557, %v1164
    %v1166 = vpop.f32.mrb[0].mxu0
    %1167 = vdwg.mxu0
    %1168 = vmatprep.subr.bf16.mxu0 0
    %1169 = vmatpush1.bf16.msra.mxu0 %v544
    %1170 = vmatprep.subr.bf16.mxu0 0
    %1171 = vmatpush1.bf16.msra.mxu0 %v545
    %1172 = vmatprep.subr.bf16.mxu0 0
    %1173 = vmatpush1.bf16.msra.mxu0 %v546
    %1174 = vmatprep.subr.bf16.mxu0 0
    %1175 = vmatpush1.bf16.msra.mxu0 %v547
    %1176 = vmatprep.subr.bf16.mxu0 0
    %1177 = vmatpush1.bf16.msra.mxu0 %v548
    %1178 = vmatprep.subr.bf16.mxu0 0
    %1179 = vmatpush1.bf16.msra.mxu0 %v549
    %1180 = vmatprep.subr.bf16.mxu0 0
    %1181 = vmatpush1.bf16.msra.mxu0 %v550
    %1182 = vmatprep.subr.bf16.mxu0 0
    %1183 = vmatpush1.bf16.msra.mxu0 %v551
    %1184 = vmatprep.subr.bf16.mxu0 0
    %1185 = vmatpush1.bf16.msra.mxu0 0
    %1186 = vmatprep.subr.bf16.mxu0 0
    %1187 = vmatpush1.bf16.msra.mxu0 0
    %1188 = vmatprep.subr.bf16.mxu0 0
    %1189 = vmatpush1.bf16.msra.mxu0 0
    %1190 = vmatprep.subr.bf16.mxu0 0
    %1191 = vmatpush1.bf16.msra.mxu0 0
    %1192 = vmatprep.subr.bf16.mxu0 0
    %1193 = vmatpush1.bf16.msra.mxu0 0
    %1194 = vmatprep.subr.bf16.mxu0 0
    %1195 = vmatpush1.bf16.msra.mxu0 0
    %1196 = vmatprep.subr.bf16.mxu0 0
    %1197 = vmatpush1.bf16.msra.mxu0 0
    %1198 = vmatprep.subr.bf16.mxu0 0
    %1199 = vmatpush1.bf16.msra.mxu0 0
    %1200 = vmatprep.mubr.bf16.mxu0 0
    %1201 = vmatmul.mubr.bf16.gmra.mrb[0].mxu0 %v801
    %v1202 = vpop.f32.mrb[0].mxu0
    %v1203 = vadd.f32 %v978, %v1202
    %v1204 = vpop.f32.mrb[0].mxu0
    %v1205 = vpop.f32.mrb[0].mxu0
    %v1206 = vadd.f32 %v981, %v1205
    %v1207 = vpop.f32.mrb[0].mxu0
    %1208 = vmatprep.mubr.bf16.mxu0 0
    %1209 = vmatmul.mubr.bf16.gmra.mrb[0].mxu0 %v804
    %v1210 = vpop.f32.mrb[0].mxu0
    %v1211 = vadd.f32 %v986, %v1210
    %v1212 = vpop.f32.mrb[0].mxu0
    %v1213 = vpop.f32.mrb[0].mxu0
    %v1214 = vadd.f32 %v989, %v1213
    %v1215 = vpop.f32.mrb[0].mxu0
    %1216 = vmatprep.mubr.bf16.mxu0 0
    %1217 = vmatmul.mubr.bf16.gmra.mrb[0].mxu0 %v807
    %v1218 = vpop.f32.mrb[0].mxu0
    %v1219 = vadd.f32 %v994, %v1218
    %v1220 = vpop.f32.mrb[0].mxu0
    %v1221 = vpop.f32.mrb[0].mxu0
    %v1222 = vadd.f32 %v997, %v1221
    %v1223 = vpop.f32.mrb[0].mxu0
    %1224 = vmatprep.mubr.bf16.mxu0 0
    %1225 = vmatmul.mubr.bf16.gmra.mrb[0].mxu0 %v810
    %v1226 = vpop.f32.mrb[0].mxu0
    %v1227 = vadd.f32 %v1002, %v1226
    %v1228 = vpop.f32.mrb[0].mxu0
    %v1229 = vpop.f32.mrb[0].mxu0
    %v1230 = vadd.f32 %v1005, %v1229
    %v1231 = vpop.f32.mrb[0].mxu0
    %1232 = vmatprep.mubr.bf16.mxu0 0
    %1233 = vmatmul.mubr.bf16.gmra.mrb[0].mxu0 %v813
    %v1234 = vpop.f32.mrb[0].mxu0
    %v1235 = vadd.f32 %v1010, %v1234
    %v1236 = vpop.f32.mrb[0].mxu0
    %v1237 = vpop.f32.mrb[0].mxu0
    %v1238 = vadd.f32 %v1013, %v1237
    %v1239 = vpop.f32.mrb[0].mxu0
    %1240 = vmatprep.mubr.bf16.mxu0 0
    %1241 = vmatmul.mubr.bf16.gmra.mrb[0].mxu0 %v816
    %v1242 = vpop.f32.mrb[0].mxu0
    %v1243 = vadd.f32 %v1018, %v1242
    %v1244 = vpop.f32.mrb[0].mxu0
    %v1245 = vpop.f32.mrb[0].mxu0
    %v1246 = vadd.f32 %v1021, %v1245
    %v1247 = vpop.f32.mrb[0].mxu0
    %1248 = vmatprep.mubr.bf16.mxu0 0
    %1249 = vmatmul.mubr.bf16.gmra.mrb[0].mxu0 %v819
    %v1250 = vpop.f32.mrb[0].mxu0
    %v1251 = vadd.f32 %v1026, %v1250
    %v1252 = vpop.f32.mrb[0].mxu0
    %v1253 = vpop.f32.mrb[0].mxu0
    %v1254 = vadd.f32 %v1029, %v1253
    %v1255 = vpop.f32.mrb[0].mxu0
    %1256 = vmatprep.mubr.bf16.mxu0 0
    %1257 = vmatmul.mubr.bf16.gmra.mrb[0].mxu0 %v822
    %v1258 = vpop.f32.mrb[0].mxu0
    %v1259 = vadd.f32 %v1034, %v1258
    %v1260 = vpop.f32.mrb[0].mxu0
    %v1261 = vpop.f32.mrb[0].mxu0
    %v1262 = vadd.f32 %v1037, %v1261
    %v1263 = vpop.f32.mrb[0].mxu0
    %1264 = vmatprep.mubr.bf16.mxu0 0
    %1265 = vmatmul.mubr.bf16.gmra.mrb[0].mxu0 %v825
    %v1266 = vpop.f32.mrb[0].mxu0
    %v1267 = vadd.f32 %v1042, %v1266
    %v1268 = vpop.f32.mrb[0].mxu0
    %v1269 = vpop.f32.mrb[0].mxu0
    %v1270 = vadd.f32 %v1045, %v1269
    %v1271 = vpop.f32.mrb[0].mxu0
    %1272 = vmatprep.mubr.bf16.mxu0 0
    %1273 = vmatmul.mubr.bf16.gmra.mrb[0].mxu0 %v828
    %v1274 = vpop.f32.mrb[0].mxu0
    %v1275 = vadd.f32 %v1050, %v1274
    %v1276 = vpop.f32.mrb[0].mxu0
    %v1277 = vpop.f32.mrb[0].mxu0
    %v1278 = vadd.f32 %v1053, %v1277
    %v1279 = vpop.f32.mrb[0].mxu0
    %1280 = vmatprep.mubr.bf16.mxu0 0
    %1281 = vmatmul.mubr.bf16.gmra.mrb[0].mxu0 %v831
    %v1282 = vpop.f32.mrb[0].mxu0
    %v1283 = vadd.f32 %v1058, %v1282
    %v1284 = vpop.f32.mrb[0].mxu0
    %v1285 = vpop.f32.mrb[0].mxu0
    %v1286 = vadd.f32 %v1061, %v1285
    %v1287 = vpop.f32.mrb[0].mxu0
    %1288 = vmatprep.mubr.bf16.mxu0 0
    %1289 = vmatmul.mubr.bf16.gmra.mrb[0].mxu0 %v834
    %v1290 = vpop.f32.mrb[0].mxu0
    %v1291 = vadd.f32 %v1066, %v1290
    %v1292 = vpop.f32.mrb[0].mxu0
    %v1293 = vpop.f32.mrb[0].mxu0
    %v1294 = vadd.f32 %v1069, %v1293
    %v1295 = vpop.f32.mrb[0].mxu0
    %1296 = vmatprep.mubr.bf16.mxu0 0
    %1297 = vmatmul.mubr.bf16.gmra.mrb[0].mxu0 %v837
    %v1298 = vpop.f32.mrb[0].mxu0
    %v1299 = vadd.f32 %v1074, %v1298
    %v1300 = vpop.f32.mrb[0].mxu0
    %v1301 = vpop.f32.mrb[0].mxu0
    %v1302 = vadd.f32 %v1077, %v1301
    %v1303 = vpop.f32.mrb[0].mxu0
    %1304 = vmatprep.mubr.bf16.mxu0 0
    %1305 = vmatmul.mubr.bf16.gmra.mrb[0].mxu0 %v840
    %v1306 = vpop.f32.mrb[0].mxu0
    %v1307 = vadd.f32 %v1082, %v1306
    %v1308 = vpop.f32.mrb[0].mxu0
    %v1309 = vpop.f32.mrb[0].mxu0
    %v1310 = vadd.f32 %v1085, %v1309
    %v1311 = vpop.f32.mrb[0].mxu0
    %1312 = vmatprep.mubr.bf16.mxu0 0
    %1313 = vmatmul.mubr.bf16.gmra.mrb[0].mxu0 %v843
    %v1314 = vpop.f32.mrb[0].mxu0
    %v1315 = vadd.f32 %v1090, %v1314
    %v1316 = vpop.f32.mrb[0].mxu0
    %v1317 = vpop.f32.mrb[0].mxu0
    %v1318 = vadd.f32 %v1093, %v1317
    %v1319 = vpop.f32.mrb[0].mxu0
    %1320 = vmatprep.mubr.bf16.mxu0 0
    %1321 = vmatmul.mubr.bf16.gmra.mrb[0].mxu0 %v846
    %v1322 = vpop.f32.mrb[0].mxu0
    %v1323 = vadd.f32 %v1098, %v1322
    %v1324 = vpop.f32.mrb[0].mxu0
    %v1325 = vpop.f32.mrb[0].mxu0
    %v1326 = vadd.f32 %v1101, %v1325
    %v1327 = vpop.f32.mrb[0].mxu0
    %1328 = vmatprep.mubr.bf16.mxu0 0
    %1329 = vmatmul.mubr.bf16.gmra.mrb[0].mxu0 %v849
    %v1330 = vpop.f32.mrb[0].mxu0
    %v1331 = vadd.f32 %v1106, %v1330
    %v1332 = vpop.f32.mrb[0].mxu0
    %v1333 = vpop.f32.mrb[0].mxu0
    %v1334 = vadd.f32 %v1109, %v1333
    %v1335 = vpop.f32.mrb[0].mxu0
    %1336 = vmatprep.mubr.bf16.mxu0 0
    %1337 = vmatmul.mubr.bf16.gmra.mrb[0].mxu0 %v852
    %v1338 = vpop.f32.mrb[0].mxu0
    %v1339 = vadd.f32 %v1114, %v1338
    %v1340 = vpop.f32.mrb[0].mxu0
    %v1341 = vpop.f32.mrb[0].mxu0
    %v1342 = vadd.f32 %v1117, %v1341
    %v1343 = vpop.f32.mrb[0].mxu0
    %1344 = vmatprep.mubr.bf16.mxu0 0
    %1345 = vmatmul.mubr.bf16.gmra.mrb[0].mxu0 %v855
    %v1346 = vpop.f32.mrb[0].mxu0
    %v1347 = vadd.f32 %v1122, %v1346
    %v1348 = vpop.f32.mrb[0].mxu0
    %v1349 = vpop.f32.mrb[0].mxu0
    %v1350 = vadd.f32 %v1125, %v1349
    %v1351 = vpop.f32.mrb[0].mxu0
    %1352 = vmatprep.mubr.bf16.mxu0 0
    %1353 = vmatmul.mubr.bf16.gmra.mrb[0].mxu0 %v858
    %v1354 = vpop.f32.mrb[0].mxu0
    %v1355 = vadd.f32 %v1130, %v1354
    %v1356 = vpop.f32.mrb[0].mxu0
    %v1357 = vpop.f32.mrb[0].mxu0
    %v1358 = vadd.f32 %v1133, %v1357
    %v1359 = vpop.f32.mrb[0].mxu0
    %1360 = vmatprep.mubr.bf16.mxu0 0
    %1361 = vmatmul.mubr.bf16.gmra.mrb[0].mxu0 %v861
    %v1362 = vpop.f32.mrb[0].mxu0
    %v1363 = vadd.f32 %v1138, %v1362
    %v1364 = vpop.f32.mrb[0].mxu0
    %v1365 = vpop.f32.mrb[0].mxu0
    %v1366 = vadd.f32 %v1141, %v1365
    %v1367 = vpop.f32.mrb[0].mxu0
    %1368 = vmatprep.mubr.bf16.mxu0 0
    %1369 = vmatmul.mubr.bf16.gmra.mrb[0].mxu0 %v864
    %v1370 = vpop.f32.mrb[0].mxu0
    %v1371 = vadd.f32 %v1146, %v1370
    %v1372 = vpop.f32.mrb[0].mxu0
    %v1373 = vpop.f32.mrb[0].mxu0
    %v1374 = vadd.f32 %v1149, %v1373
    %v1375 = vpop.f32.mrb[0].mxu0
    %1376 = vmatprep.mubr.bf16.mxu0 0
    %1377 = vmatmul.mubr.bf16.gmra.mrb[0].mxu0 %v867
    %v1378 = vpop.f32.mrb[0].mxu0
    %v1379 = vadd.f32 %v1154, %v1378
    %v1380 = vpop.f32.mrb[0].mxu0
    %v1381 = vpop.f32.mrb[0].mxu0
    %v1382 = vadd.f32 %v1157, %v1381
    %v1383 = vpop.f32.mrb[0].mxu0
    %1384 = vmatprep.mubr.bf16.mxu0 0
    %1385 = vmatmul.mubr.bf16.gmra.mrb[0].mxu0 %v870
    %v1386 = vpop.f32.mrb[0].mxu0
    %v1387 = vadd.f32 %v1162, %v1386
    %v1388 = vpop.f32.mrb[0].mxu0
    %v1389 = vpop.f32.mrb[0].mxu0
    %v1390 = vadd.f32 %v1165, %v1389
    %v1391 = vpop.f32.mrb[0].mxu0
    %1392 = vdwg.mxu0
    %v1393 = vmax.f32 %v1203, 0.0
    %v1394 = vmax.f32 %v1206, 0.0
    %v1395 = vmax.f32 %v1211, 0.0
    %v1396 = vmax.f32 %v1214, 0.0
    %v1397 = vmax.f32 %v1219, 0.0
    %v1398 = vmax.f32 %v1222, 0.0
    %v1399 = vmax.f32 %v1227, 0.0
    %v1400 = vmax.f32 %v1230, 0.0
    %v1401 = vmax.f32 %v1235, 0.0
    %v1402 = vmax.f32 %v1238, 0.0
    %v1403 = vmax.f32 %v1243, 0.0
    %v1404 = vmax.f32 %v1246, 0.0
    %v1405 = vmax.f32 %v1251, 0.0
    %v1406 = vmax.f32 %v1254, 0.0
    %v1407 = vmax.f32 %v1259, 0.0
    %v1408 = vmax.f32 %v1262, 0.0
    %v1409 = vmax.f32 %v1267, 0.0
    %v1410 = vmax.f32 %v1270, 0.0
    %v1411 = vmax.f32 %v1275, 0.0
    %v1412 = vmax.f32 %v1278, 0.0
    %v1413 = vmax.f32 %v1283, 0.0
    %v1414 = vmax.f32 %v1286, 0.0
    %v1415 = vmax.f32 %v1291, 0.0
    %v1416 = vmax.f32 %v1294, 0.0
    %v1417 = vmax.f32 %v1299, 0.0
    %v1418 = vmax.f32 %v1302, 0.0
    %v1419 = vmax.f32 %v1307, 0.0
    %v1420 = vmax.f32 %v1310, 0.0
    %v1421 = vmax.f32 %v1315, 0.0
    %v1422 = vmax.f32 %v1318, 0.0
    %v1423 = vmax.f32 %v1323, 0.0
    %v1424 = vmax.f32 %v1326, 0.0
    %v1425 = vmax.f32 %v1331, 0.0
    %v1426 = vmax.f32 %v1334, 0.0
    %v1427 = vmax.f32 %v1339, 0.0
    %v1428 = vmax.f32 %v1342, 0.0
    %v1429 = vmax.f32 %v1347, 0.0
    %v1430 = vmax.f32 %v1350, 0.0
    %v1431 = vmax.f32 %v1355, 0.0
    %v1432 = vmax.f32 %v1358, 0.0
    %v1433 = vmax.f32 %v1363, 0.0
    %v1434 = vmax.f32 %v1366, 0.0
    %v1435 = vmax.f32 %v1371, 0.0
    %v1436 = vmax.f32 %v1374, 0.0
    %v1437 = vmax.f32 %v1379, 0.0
    %v1438 = vmax.f32 %v1382, 0.0
    %v1439 = vmax.f32 %v1387, 0.0
    %v1440 = vmax.f32 %v1390, 0.0
    %1441 = vst [vmem:[#allocation2] sm:$0xff] %v1393
    %1442 = vst [vmem:[#allocation2 + $0x8] sm:$0xff] %v1394
    %1443 = vst [vmem:[#allocation2 + $0x10] sm:$0xff] %v1395
    %1444 = vst [vmem:[#allocation2 + $0x18] sm:$0xff] %v1396
    %1445 = vst [vmem:[#allocation2 + $0x20] sm:$0xff] %v1397
    %1446 = vst [vmem:[#allocation2 + $0x28] sm:$0xff] %v1398
    %1447 = vst [vmem:[#allocation2 + $0x30] sm:$0xff] %v1399
    %1448 = vst [vmem:[#allocation2 + $0x38] sm:$0xff] %v1400
    %1449 = vst [vmem:[#allocation2 + $0x40] sm:$0xff] %v1401
    %1450 = vst [vmem:[#allocation2 + $0x48] sm:$0xff] %v1402
    %1451 = vst [vmem:[#allocation2 + $0x50] sm:$0xff] %v1403
    %1452 = vst [vmem:[#allocation2 + $0x58] sm:$0xff] %v1404
    %1453 = vst [vmem:[#allocation2 + $0x60] sm:$0xff] %v1405
    %1454 = vst [vmem:[#allocation2 + $0x68] sm:$0xff] %v1406
    %1455 = vst [vmem:[#allocation2 + $0x70] sm:$0xff] %v1407
    %1456 = vst [vmem:[#allocation2 + $0x78] sm:$0xff] %v1408
    %1457 = vst [vmem:[#allocation2 + $0x80] sm:$0xff] %v1409
    %1458 = vst [vmem:[#allocation2 + $0x88] sm:$0xff] %v1410
    %1459 = vst [vmem:[#allocation2 + $0x90] sm:$0xff] %v1411
    %1460 = vst [vmem:[#allocation2 + $0x98] sm:$0xff] %v1412
    %1461 = vst [vmem:[#allocation2 + $0xa0] sm:$0xff] %v1413
    %1462 = vst [vmem:[#allocation2 + $0xa8] sm:$0xff] %v1414
    %1463 = vst [vmem:[#allocation2 + $0xb0] sm:$0xff] %v1415
    %1464 = vst [vmem:[#allocation2 + $0xb8] sm:$0xff] %v1416
    %1465 = vst [vmem:[#allocation2 + $0xc0] sm:$0xff] %v1417
    %1466 = vst [vmem:[#allocation2 + $0xc8] sm:$0xff] %v1418
    %1467 = vst [vmem:[#allocation2 + $0xd0] sm:$0xff] %v1419
    %1468 = vst [vmem:[#allocation2 + $0xd8] sm:$0xff] %v1420
    %1469 = vst [vmem:[#allocation2 + $0xe0] sm:$0xff] %v1421
    %1470 = vst [vmem:[#allocation2 + $0xe8] sm:$0xff] %v1422
    %1471 = vst [vmem:[#allocation2 + $0xf0] sm:$0xff] %v1423
    %1472 = vst [vmem:[#allocation2 + $0xf8] sm:$0xff] %v1424
    %1473 = vst [vmem:[#allocation2 + $0x100] sm:$0xff] %v1425
    %1474 = vst [vmem:[#allocation2 + $0x108] sm:$0xff] %v1426
    %1475 = vst [vmem:[#allocation2 + $0x110] sm:$0xff] %v1427
    %1476 = vst [vmem:[#allocation2 + $0x118] sm:$0xff] %v1428
    %1477 = vst [vmem:[#allocation2 + $0x120] sm:$0xff] %v1429
    %1478 = vst [vmem:[#allocation2 + $0x128] sm:$0xff] %v1430
    %1479 = vst [vmem:[#allocation2 + $0x130] sm:$0xff] %v1431
    %1480 = vst [vmem:[#allocation2 + $0x138] sm:$0xff] %v1432
    %1481 = vst [vmem:[#allocation2 + $0x140] sm:$0xff] %v1433
    %1482 = vst [vmem:[#allocation2 + $0x148] sm:$0xff] %v1434
    %1483 = vst [vmem:[#allocation2 + $0x150] sm:$0xff] %v1435
    %1484 = vst [vmem:[#allocation2 + $0x158] sm:$0xff] %v1436
    %1485 = vst [vmem:[#allocation2 + $0x160] sm:$0xff] %v1437
    %1486 = vst [vmem:[#allocation2 + $0x168] sm:$0xff] %v1438
    %1487 = vst [vmem:[#allocation2 + $0x170] sm:$0xff] %v1439
    %1488 = vst [vmem:[#allocation2 + $0x178] sm:$0xff] %v1440
    %v1489 = vld [vmem:[#allocation2] sm:$0xff]
    %v1490 = vld [vmem:[#allocation2 + $0x8] sm:$0xff]
    %v1491 = vld [vmem:[#allocation2 + $0x10] sm:$0xff]
    %v1492 = vld [vmem:[#allocation2 + $0x18] sm:$0xff]
    %v1493 = vld [vmem:[#allocation2 + $0x20] sm:$0xff]
    %v1494 = vld [vmem:[#allocation2 + $0x28] sm:$0xff]
    %v1495 = vld [vmem:[#allocation2 + $0x30] sm:$0xff]
    %v1496 = vld [vmem:[#allocation2 + $0x38] sm:$0xff]
    %v1497 = vld [vmem:[#allocation2 + $0x40] sm:$0xff]
    %v1498 = vld [vmem:[#allocation2 + $0x48] sm:$0xff]
    %v1499 = vld [vmem:[#allocation2 + $0x50] sm:$0xff]
    %v1500 = vld [vmem:[#allocation2 + $0x58] sm:$0xff]
    %v1501 = vld [vmem:[#allocation2 + $0x60] sm:$0xff]
    %v1502 = vld [vmem:[#allocation2 + $0x68] sm:$0xff]
    %v1503 = vld [vmem:[#allocation2 + $0x70] sm:$0xff]
    %v1504 = vld [vmem:[#allocation2 + $0x78] sm:$0xff]
    %v1505 = vld [vmem:[#allocation2 + $0x80] sm:$0xff]
    %v1506 = vld [vmem:[#allocation2 + $0x88] sm:$0xff]
    %v1507 = vld [vmem:[#allocation2 + $0x90] sm:$0xff]
    %v1508 = vld [vmem:[#allocation2 + $0x98] sm:$0xff]
    %v1509 = vld [vmem:[#allocation2 + $0xa0] sm:$0xff]
    %v1510 = vld [vmem:[#allocation2 + $0xa8] sm:$0xff]
    %v1511 = vld [vmem:[#allocation2 + $0xb0] sm:$0xff]
    %v1512 = vld [vmem:[#allocation2 + $0xb8] sm:$0xff]
    %v1513 = vld [vmem:[#allocation2 + $0xc0] sm:$0xff]
    %v1514 = vld [vmem:[#allocation2 + $0xc8] sm:$0xff]
    %v1515 = vld [vmem:[#allocation2 + $0xd0] sm:$0xff]
    %v1516 = vld [vmem:[#allocation2 + $0xd8] sm:$0xff]
    %v1517 = vld [vmem:[#allocation2 + $0xe0] sm:$0xff]
    %v1518 = vld [vmem:[#allocation2 + $0xe8] sm:$0xff]
    %v1519 = vld [vmem:[#allocation2 + $0xf0] sm:$0xff]
    %v1520 = vld [vmem:[#allocation2 + $0xf8] sm:$0xff]
    %v1521 = vld [vmem:[#allocation2 + $0x100] sm:$0xff]
    %v1522 = vld [vmem:[#allocation2 + $0x108] sm:$0xff]
    %v1523 = vld [vmem:[#allocation2 + $0x110] sm:$0xff]
    %v1524 = vld [vmem:[#allocation2 + $0x118] sm:$0xff]
    %v1525 = vld [vmem:[#allocation2 + $0x120] sm:$0xff]
    %v1526 = vld [vmem:[#allocation2 + $0x128] sm:$0xff]
    %v1527 = vld [vmem:[#allocation2 + $0x130] sm:$0xff]
    %v1528 = vld [vmem:[#allocation2 + $0x138] sm:$0xff]
    %v1529 = vld [vmem:[#allocation2 + $0x140] sm:$0xff]
    %v1530 = vld [vmem:[#allocation2 + $0x148] sm:$0xff]
    %v1531 = vld [vmem:[#allocation2 + $0x150] sm:$0xff]
    %v1532 = vld [vmem:[#allocation2 + $0x158] sm:$0xff]
    %v1533 = vld [vmem:[#allocation2 + $0x160] sm:$0xff]
    %v1534 = vld [vmem:[#allocation2 + $0x168] sm:$0xff]
    %v1535 = vld [vmem:[#allocation2 + $0x170] sm:$0xff]
    %v1536 = vld [vmem:[#allocation2 + $0x178] sm:$0xff]
    %v1537 = vpack.c.bf16 %v1490, %v1489
    %v1538 = vpack.c.bf16 %v1492, %v1491
    %v1539 = vpack.c.bf16 %v1494, %v1493
    %v1540 = vpack.c.bf16 %v1496, %v1495
    %v1541 = vpack.c.bf16 %v1498, %v1497
    %v1542 = vpack.c.bf16 %v1500, %v1499
    %v1543 = vpack.c.bf16 %v1502, %v1501
    %v1544 = vpack.c.bf16 %v1504, %v1503
    %v1545 = vpack.c.bf16 %v1506, %v1505
    %v1546 = vpack.c.bf16 %v1508, %v1507
    %v1547 = vpack.c.bf16 %v1510, %v1509
    %v1548 = vpack.c.bf16 %v1512, %v1511
    %v1549 = vpack.c.bf16 %v1514, %v1513
    %v1550 = vpack.c.bf16 %v1516, %v1515
    %v1551 = vpack.c.bf16 %v1518, %v1517
    %v1552 = vpack.c.bf16 %v1520, %v1519
    %v1553 = vpack.c.bf16 %v1522, %v1521
    %v1554 = vpack.c.bf16 %v1524, %v1523
    %v1555 = vpack.c.bf16 %v1526, %v1525
    %v1556 = vpack.c.bf16 %v1528, %v1527
    %v1557 = vpack.c.bf16 %v1530, %v1529
    %v1558 = vpack.c.bf16 %v1532, %v1531
    %v1559 = vpack.c.bf16 %v1534, %v1533
    %v1560 = vpack.c.bf16 %v1536, %v1535
    %v1561 = vld [vmem:[%s4] sm:$0xf]
    %v1562 = vld [vmem:[%s4 + $0x4] sm:$0xf]
    %v1563 = vld [vmem:[%s4 + $0x8] sm:$0xf]
    %v1564 = vld [vmem:[%s4 + $0xc] sm:$0xf]
    %v1565 = vld [vmem:[%s4 + $0x10] sm:$0xf]
    %v1566 = vld [vmem:[%s4 + $0x14] sm:$0xf]
    %v1567 = vld [vmem:[%s4 + $0x18] sm:$0xf]
    %v1568 = vld [vmem:[%s4 + $0x1c] sm:$0xf]
    %v1569 = vld [vmem:[%s4 + $0x20] sm:$0xf]
    %v1570 = vld [vmem:[%s4 + $0x24] sm:$0xf]
    %v1571 = vld [vmem:[%s4 + $0x28] sm:$0xf]
    %v1572 = vld [vmem:[%s4 + $0x2c] sm:$0xf]
    %v1573 = vld [vmem:[%s4 + $0x30] sm:$0xf]
    %v1574 = vld [vmem:[%s4 + $0x34] sm:$0xf]
    %v1575 = vld [vmem:[%s4 + $0x38] sm:$0xf]
    %v1576 = vld [vmem:[%s4 + $0x3c] sm:$0xf]
    %v1593 = vunpack.c.l.b16 %v1561
    %v1594 = vunpack.c.l.b16 %v1562
    %v1595 = vunpack.c.l.b16 %v1563
    %v1596 = vunpack.c.l.b16 %v1564
    %v1597 = vunpack.c.l.b16 %v1565
    %v1598 = vunpack.c.l.b16 %v1566
    %v1599 = vunpack.c.l.b16 %v1567
    %v1600 = vunpack.c.l.b16 %v1568
    %v1601 = vunpack.c.l.b16 %v1569
    %v1602 = vunpack.c.l.b16 %v1570
    %v1603 = vunpack.c.l.b16 %v1571
    %v1604 = vunpack.c.l.b16 %v1572
    %v1605 = vunpack.c.l.b16 %v1573
    %v1606 = vunpack.c.l.b16 %v1574
    %v1607 = vunpack.c.l.b16 %v1575
    %v1608 = vunpack.c.l.b16 %v1576
    %v1609 = vpack.c.b16 %v1594, %v1593
    %v1610 = vpack.c.b16 %v1596, %v1595
    %v1611 = vpack.c.b16 %v1598, %v1597
    %v1612 = vpack.c.b16 %v1600, %v1599
    %v1613 = vpack.c.b16 %v1602, %v1601
    %v1614 = vpack.c.b16 %v1604, %v1603
    %v1615 = vpack.c.b16 %v1606, %v1605
    %v1616 = vpack.c.b16 %v1608, %v1607
    %1625 = vmatprep.subr.bf16.mxu0 0
    %1626 = vmatpush1.bf16.msra.mxu0 %v1609
    %1627 = vmatprep.subr.bf16.mxu0 0
    %1628 = vmatpush1.bf16.msra.mxu0 %v1610
    %1629 = vmatprep.subr.bf16.mxu0 0
    %1630 = vmatpush1.bf16.msra.mxu0 %v1611
    %1631 = vmatprep.subr.bf16.mxu0 0
    %1632 = vmatpush1.bf16.msra.mxu0 %v1612
    %1633 = vmatprep.subr.bf16.mxu0 0
    %1634 = vmatpush1.bf16.msra.mxu0 %v1613
    %1635 = vmatprep.subr.bf16.mxu0 0
    %1636 = vmatpush1.bf16.msra.mxu0 %v1614
    %1637 = vmatprep.subr.bf16.mxu0 0
    %1638 = vmatpush1.bf16.msra.mxu0 %v1615
    %1639 = vmatprep.subr.bf16.mxu0 0
    %1640 = vmatpush1.bf16.msra.mxu0 %v1616
    %1641 = vmatprep.subr.bf16.mxu0 0
    %1642 = vmatpush1.bf16.msra.mxu0 0
    %1643 = vmatprep.subr.bf16.mxu0 0
    %1644 = vmatpush1.bf16.msra.mxu0 0
    %1645 = vmatprep.subr.bf16.mxu0 0
    %1646 = vmatpush1.bf16.msra.mxu0 0
    %1647 = vmatprep.subr.bf16.mxu0 0
    %1648 = vmatpush1.bf16.msra.mxu0 0
    %1649 = vmatprep.subr.bf16.mxu0 0
    %1650 = vmatpush1.bf16.msra.mxu0 0
    %1651 = vmatprep.subr.bf16.mxu0 0
    %1652 = vmatpush1.bf16.msra.mxu0 0
    %1653 = vmatprep.subr.bf16.mxu0 0
    %1654 = vmatpush1.bf16.msra.mxu0 0
    %1655 = vmatprep.subr.bf16.mxu0 0
    %1656 = vmatpush1.bf16.msra.mxu0 0
    %1657 = vmatprep.mubr.bf16.mxu0 0
    %1658 = vmatmul.mubr.bf16.gmra.mrb[0].mxu0 %v1537
    %v1659 = vpop.f32.mrb[0].mxu0
    %v1660 = vadd.f32 0.0, %v1659
    %v1661 = vpop.f32.mrb[0].mxu0
    %v1662 = vpop.f32.mrb[0].mxu0
    %v1663 = vadd.f32 0.0, %v1662
    %v1664 = vpop.f32.mrb[0].mxu0
    %1665 = vmatprep.mubr.bf16.mxu0 0
    %1666 = vmatmul.mubr.bf16.gmra.mrb[0].mxu0 %v1538
    %v1667 = vpop.f32.mrb[0].mxu0
    %v1668 = vadd.f32 0.0, %v1667
    %v1669 = vpop.f32.mrb[0].mxu0
    %v1670 = vpop.f32.mrb[0].mxu0
    %v1671 = vadd.f32 0.0, %v1670
    %v1672 = vpop.f32.mrb[0].mxu0
    %1673 = vmatprep.mubr.bf16.mxu0 0
    %1674 = vmatmul.mubr.bf16.gmra.mrb[0].mxu0 %v1539
    %v1675 = vpop.f32.mrb[0].mxu0
    %v1676 = vadd.f32 0.0, %v1675
    %v1677 = vpop.f32.mrb[0].mxu0
    %v1678 = vpop.f32.mrb[0].mxu0
    %v1679 = vadd.f32 0.0, %v1678
    %v1680 = vpop.f32.mrb[0].mxu0
    %1681 = vmatprep.mubr.bf16.mxu0 0
    %1682 = vmatmul.mubr.bf16.gmra.mrb[0].mxu0 %v1540
    %v1683 = vpop.f32.mrb[0].mxu0
    %v1684 = vadd.f32 0.0, %v1683
    %v1685 = vpop.f32.mrb[0].mxu0
    %v1686 = vpop.f32.mrb[0].mxu0
    %v1687 = vadd.f32 0.0, %v1686
    %v1688 = vpop.f32.mrb[0].mxu0
    %1689 = vmatprep.mubr.bf16.mxu0 0
    %1690 = vmatmul.mubr.bf16.gmra.mrb[0].mxu0 %v1541
    %v1691 = vpop.f32.mrb[0].mxu0
    %v1692 = vadd.f32 0.0, %v1691
    %v1693 = vpop.f32.mrb[0].mxu0
    %v1694 = vpop.f32.mrb[0].mxu0
    %v1695 = vadd.f32 0.0, %v1694
    %v1696 = vpop.f32.mrb[0].mxu0
    %1697 = vmatprep.mubr.bf16.mxu0 0
    %1698 = vmatmul.mubr.bf16.gmra.mrb[0].mxu0 %v1542
    %v1699 = vpop.f32.mrb[0].mxu0
    %v1700 = vadd.f32 0.0, %v1699
    %v1701 = vpop.f32.mrb[0].mxu0
    %v1702 = vpop.f32.mrb[0].mxu0
    %v1703 = vadd.f32 0.0, %v1702
    %v1704 = vpop.f32.mrb[0].mxu0
    %1705 = vmatprep.mubr.bf16.mxu0 0
    %1706 = vmatmul.mubr.bf16.gmra.mrb[0].mxu0 %v1543
    %v1707 = vpop.f32.mrb[0].mxu0
    %v1708 = vadd.f32 0.0, %v1707
    %v1709 = vpop.f32.mrb[0].mxu0
    %v1710 = vpop.f32.mrb[0].mxu0
    %v1711 = vadd.f32 0.0, %v1710
    %v1712 = vpop.f32.mrb[0].mxu0
    %1713 = vmatprep.mubr.bf16.mxu0 0
    %1714 = vmatmul.mubr.bf16.gmra.mrb[0].mxu0 %v1544
    %v1715 = vpop.f32.mrb[0].mxu0
    %v1716 = vadd.f32 0.0, %v1715
    %v1717 = vpop.f32.mrb[0].mxu0
    %v1718 = vpop.f32.mrb[0].mxu0
    %v1719 = vadd.f32 0.0, %v1718
    %v1720 = vpop.f32.mrb[0].mxu0
    %1721 = vmatprep.mubr.bf16.mxu0 0
    %1722 = vmatmul.mubr.bf16.gmra.mrb[0].mxu0 %v1545
    %v1723 = vpop.f32.mrb[0].mxu0
    %v1724 = vadd.f32 0.0, %v1723
    %v1725 = vpop.f32.mrb[0].mxu0
    %v1726 = vpop.f32.mrb[0].mxu0
    %v1727 = vadd.f32 0.0, %v1726
    %v1728 = vpop.f32.mrb[0].mxu0
    %1729 = vmatprep.mubr.bf16.mxu0 0
    %1730 = vmatmul.mubr.bf16.gmra.mrb[0].mxu0 %v1546
    %v1731 = vpop.f32.mrb[0].mxu0
    %v1732 = vadd.f32 0.0, %v1731
    %v1733 = vpop.f32.mrb[0].mxu0
    %v1734 = vpop.f32.mrb[0].mxu0
    %v1735 = vadd.f32 0.0, %v1734
    %v1736 = vpop.f32.mrb[0].mxu0
    %1737 = vmatprep.mubr.bf16.mxu0 0
    %1738 = vmatmul.mubr.bf16.gmra.mrb[0].mxu0 %v1547
    %v1739 = vpop.f32.mrb[0].mxu0
    %v1740 = vadd.f32 0.0, %v1739
    %v1741 = vpop.f32.mrb[0].mxu0
    %v1742 = vpop.f32.mrb[0].mxu0
    %v1743 = vadd.f32 0.0, %v1742
    %v1744 = vpop.f32.mrb[0].mxu0
    %1745 = vmatprep.mubr.bf16.mxu0 0
    %1746 = vmatmul.mubr.bf16.gmra.mrb[0].mxu0 %v1548
    %v1747 = vpop.f32.mrb[0].mxu0
    %v1748 = vadd.f32 0.0, %v1747
    %v1749 = vpop.f32.mrb[0].mxu0
    %v1750 = vpop.f32.mrb[0].mxu0
    %v1751 = vadd.f32 0.0, %v1750
    %v1752 = vpop.f32.mrb[0].mxu0
    %1753 = vmatprep.mubr.bf16.mxu0 0
    %1754 = vmatmul.mubr.bf16.gmra.mrb[0].mxu0 %v1549
    %v1755 = vpop.f32.mrb[0].mxu0
    %v1756 = vadd.f32 0.0, %v1755
    %v1757 = vpop.f32.mrb[0].mxu0
    %v1758 = vpop.f32.mrb[0].mxu0
    %v1759 = vadd.f32 0.0, %v1758
    %v1760 = vpop.f32.mrb[0].mxu0
    %1761 = vmatprep.mubr.bf16.mxu0 0
    %1762 = vmatmul.mubr.bf16.gmra.mrb[0].mxu0 %v1550
    %v1763 = vpop.f32.mrb[0].mxu0
    %v1764 = vadd.f32 0.0, %v1763
    %v1765 = vpop.f32.mrb[0].mxu0
    %v1766 = vpop.f32.mrb[0].mxu0
    %v1767 = vadd.f32 0.0, %v1766
    %v1768 = vpop.f32.mrb[0].mxu0
    %1769 = vmatprep.mubr.bf16.mxu0 0
    %1770 = vmatmul.mubr.bf16.gmra.mrb[0].mxu0 %v1551
    %v1771 = vpop.f32.mrb[0].mxu0
    %v1772 = vadd.f32 0.0, %v1771
    %v1773 = vpop.f32.mrb[0].mxu0
    %v1774 = vpop.f32.mrb[0].mxu0
    %v1775 = vadd.f32 0.0, %v1774
    %v1776 = vpop.f32.mrb[0].mxu0
    %1777 = vmatprep.mubr.bf16.mxu0 0
    %1778 = vmatmul.mubr.bf16.gmra.mrb[0].mxu0 %v1552
    %v1779 = vpop.f32.mrb[0].mxu0
    %v1780 = vadd.f32 0.0, %v1779
    %v1781 = vpop.f32.mrb[0].mxu0
    %v1782 = vpop.f32.mrb[0].mxu0
    %v1783 = vadd.f32 0.0, %v1782
    %v1784 = vpop.f32.mrb[0].mxu0
    %1785 = vmatprep.mubr.bf16.mxu0 0
    %1786 = vmatmul.mubr.bf16.gmra.mrb[0].mxu0 %v1553
    %v1787 = vpop.f32.mrb[0].mxu0
    %v1788 = vadd.f32 0.0, %v1787
    %v1789 = vpop.f32.mrb[0].mxu0
    %v1790 = vpop.f32.mrb[0].mxu0
    %v1791 = vadd.f32 0.0, %v1790
    %v1792 = vpop.f32.mrb[0].mxu0
    %1793 = vmatprep.mubr.bf16.mxu0 0
    %1794 = vmatmul.mubr.bf16.gmra.mrb[0].mxu0 %v1554
    %v1795 = vpop.f32.mrb[0].mxu0
    %v1796 = vadd.f32 0.0, %v1795
    %v1797 = vpop.f32.mrb[0].mxu0
    %v1798 = vpop.f32.mrb[0].mxu0
    %v1799 = vadd.f32 0.0, %v1798
    %v1800 = vpop.f32.mrb[0].mxu0
    %1801 = vmatprep.mubr.bf16.mxu0 0
    %1802 = vmatmul.mubr.bf16.gmra.mrb[0].mxu0 %v1555
    %v1803 = vpop.f32.mrb[0].mxu0
    %v1804 = vadd.f32 0.0, %v1803
    %v1805 = vpop.f32.mrb[0].mxu0
    %v1806 = vpop.f32.mrb[0].mxu0
    %v1807 = vadd.f32 0.0, %v1806
    %v1808 = vpop.f32.mrb[0].mxu0
    %1809 = vmatprep.mubr.bf16.mxu0 0
    %1810 = vmatmul.mubr.bf16.gmra.mrb[0].mxu0 %v1556
    %v1811 = vpop.f32.mrb[0].mxu0
    %v1812 = vadd.f32 0.0, %v1811
    %v1813 = vpop.f32.mrb[0].mxu0
    %v1814 = vpop.f32.mrb[0].mxu0
    %v1815 = vadd.f32 0.0, %v1814
    %v1816 = vpop.f32.mrb[0].mxu0
    %1817 = vmatprep.mubr.bf16.mxu0 0
    %1818 = vmatmul.mubr.bf16.gmra.mrb[0].mxu0 %v1557
    %v1819 = vpop.f32.mrb[0].mxu0
    %v1820 = vadd.f32 0.0, %v1819
    %v1821 = vpop.f32.mrb[0].mxu0
    %v1822 = vpop.f32.mrb[0].mxu0
    %v1823 = vadd.f32 0.0, %v1822
    %v1824 = vpop.f32.mrb[0].mxu0
    %1825 = vmatprep.mubr.bf16.mxu0 0
    %1826 = vmatmul.mubr.bf16.gmra.mrb[0].mxu0 %v1558
    %v1827 = vpop.f32.mrb[0].mxu0
    %v1828 = vadd.f32 0.0, %v1827
    %v1829 = vpop.f32.mrb[0].mxu0
    %v1830 = vpop.f32.mrb[0].mxu0
    %v1831 = vadd.f32 0.0, %v1830
    %v1832 = vpop.f32.mrb[0].mxu0
    %1833 = vmatprep.mubr.bf16.mxu0 0
    %1834 = vmatmul.mubr.bf16.gmra.mrb[0].mxu0 %v1559
    %v1835 = vpop.f32.mrb[0].mxu0
    %v1836 = vadd.f32 0.0, %v1835
    %v1837 = vpop.f32.mrb[0].mxu0
    %v1838 = vpop.f32.mrb[0].mxu0
    %v1839 = vadd.f32 0.0, %v1838
    %v1840 = vpop.f32.mrb[0].mxu0
    %1841 = vmatprep.mubr.bf16.mxu0 0
    %1842 = vmatmul.mubr.bf16.gmra.mrb[0].mxu0 %v1560
    %v1843 = vpop.f32.mrb[0].mxu0
    %v1844 = vadd.f32 0.0, %v1843
    %v1845 = vpop.f32.mrb[0].mxu0
    %v1846 = vpop.f32.mrb[0].mxu0
    %v1847 = vadd.f32 0.0, %v1846
    %v1848 = vpop.f32.mrb[0].mxu0
    %1849 = vdwg.mxu0
    %v1850 = vld [vmem:[#allocation3] sm:$0xff]
    %v1851 = vld [vmem:[#allocation3 + $0x8] sm:$0xf]
    %v1852 = vld [vmem:[#allocation3 + $0xc] sm:$0xff]
    %v1853 = vld [vmem:[#allocation3 + $0x14] sm:$0xf]
    %v1854 = vld [vmem:[#allocation3 + $0x18] sm:$0xff]
    %v1855 = vld [vmem:[#allocation3 + $0x20] sm:$0xf]
    %v1856 = vld [vmem:[#allocation3 + $0x24] sm:$0xff]
    %v1857 = vld [vmem:[#allocation3 + $0x2c] sm:$0xf]
    %v1858 = vld [vmem:[#allocation3 + $0x30] sm:$0xff]
    %v1859 = vld [vmem:[#allocation3 + $0x38] sm:$0xf]
    %v1860 = vld [vmem:[#allocation3 + $0x3c] sm:$0xff]
    %v1861 = vld [vmem:[#allocation3 + $0x44] sm:$0xf]
    %v1862 = vld [vmem:[#allocation3 + $0x48] sm:$0xff]
    %v1863 = vld [vmem:[#allocation3 + $0x50] sm:$0xf]
    %v1864 = vld [vmem:[#allocation3 + $0x54] sm:$0xff]
    %v1865 = vld [vmem:[#allocation3 + $0x5c] sm:$0xf]
    %v1866 = vld [vmem:[#allocation3 + $0x60] sm:$0xff]
    %v1867 = vld [vmem:[#allocation3 + $0x68] sm:$0xf]
    %v1868 = vld [vmem:[#allocation3 + $0x6c] sm:$0xff]
    %v1869 = vld [vmem:[#allocation3 + $0x74] sm:$0xf]
    %v1870 = vld [vmem:[#allocation3 + $0x78] sm:$0xff]
    %v1871 = vld [vmem:[#allocation3 + $0x80] sm:$0xf]
    %v1872 = vld [vmem:[#allocation3 + $0x84] sm:$0xff]
    %v1873 = vld [vmem:[#allocation3 + $0x8c] sm:$0xf]
    %v1874 = vld [vmem:[#allocation3 + $0x90] sm:$0xff]
    %v1875 = vld [vmem:[#allocation3 + $0x98] sm:$0xf]
    %v1876 = vld [vmem:[#allocation3 + $0x9c] sm:$0xff]
    %v1877 = vld [vmem:[#allocation3 + $0xa4] sm:$0xf]
    %v1878 = vld [vmem:[#allocation3 + $0xa8] sm:$0xff]
    %v1879 = vld [vmem:[#allocation3 + $0xb0] sm:$0xf]
    %v1880 = vld [vmem:[#allocation3 + $0xb4] sm:$0xff]
    %v1881 = vld [vmem:[#allocation3 + $0xbc] sm:$0xf]
    %v1882 = vld [vmem:[#allocation3 + $0xc0] sm:$0xff]
    %v1883 = vld [vmem:[#allocation3 + $0xc8] sm:$0xf]
    %v1884 = vld [vmem:[#allocation3 + $0xcc] sm:$0xff]
    %v1885 = vld [vmem:[#allocation3 + $0xd4] sm:$0xf]
    %v1886 = vld [vmem:[#allocation3 + $0xd8] sm:$0xff]
    %v1887 = vld [vmem:[#allocation3 + $0xe0] sm:$0xf]
    %v1888 = vld [vmem:[#allocation3 + $0xe4] sm:$0xff]
    %v1889 = vld [vmem:[#allocation3 + $0xec] sm:$0xf]
    %v1890 = vld [vmem:[#allocation3 + $0xf0] sm:$0xff]
    %v1891 = vld [vmem:[#allocation3 + $0xf8] sm:$0xf]
    %v1892 = vld [vmem:[#allocation3 + $0xfc] sm:$0xff]
    %v1893 = vld [vmem:[#allocation3 + $0x104] sm:$0xf]
    %v1894 = vld [vmem:[#allocation3 + $0x108] sm:$0xff]
    %v1895 = vld [vmem:[#allocation3 + $0x110] sm:$0xf]
    %v1896 = vld [vmem:[#allocation3 + $0x114] sm:$0xff]
    %v1897 = vld [vmem:[#allocation3 + $0x11c] sm:$0xf]
    %v1898 = vld [vmem:[#allocation3 + $0x120] sm:$0xff]
    %v1899 = vld [vmem:[#allocation3 + $0x128] sm:$0xf]
    %v1900 = vld [vmem:[#allocation3 + $0x12c] sm:$0xff]
    %v1901 = vld [vmem:[#allocation3 + $0x134] sm:$0xf]
    %v1902 = vld [vmem:[#allocation3 + $0x138] sm:$0xff]
    %v1903 = vld [vmem:[#allocation3 + $0x140] sm:$0xf]
    %v1904 = vld [vmem:[#allocation3 + $0x144] sm:$0xff]
    %v1905 = vld [vmem:[#allocation3 + $0x14c] sm:$0xf]
    %v1906 = vld [vmem:[#allocation3 + $0x150] sm:$0xff]
    %v1907 = vld [vmem:[#allocation3 + $0x158] sm:$0xf]
    %v1908 = vld [vmem:[#allocation3 + $0x15c] sm:$0xff]
    %v1909 = vld [vmem:[#allocation3 + $0x164] sm:$0xf]
    %v1910 = vld [vmem:[#allocation3 + $0x168] sm:$0xff]
    %v1911 = vld [vmem:[#allocation3 + $0x170] sm:$0xf]
    %v1912 = vld [vmem:[#allocation3 + $0x174] sm:$0xff]
    %v1913 = vld [vmem:[#allocation3 + $0x17c] sm:$0xf]
    %v1914 = vld [vmem:[#allocation3 + $0x180] sm:$0xff]
    %v1915 = vld [vmem:[#allocation3 + $0x188] sm:$0xf]
    %v1916 = vld [vmem:[#allocation3 + $0x18c] sm:$0xff]
    %v1917 = vld [vmem:[#allocation3 + $0x194] sm:$0xf]
    %v1918 = vld [vmem:[#allocation3 + $0x198] sm:$0xff]
    %v1919 = vld [vmem:[#allocation3 + $0x1a0] sm:$0xf]
    %v1920 = vld [vmem:[#allocation3 + $0x1a4] sm:$0xff]
    %v1921 = vld [vmem:[#allocation3 + $0x1ac] sm:$0xf]
    %v1922 = vld [vmem:[#allocation3 + $0x1b0] sm:$0xff]
    %v1923 = vld [vmem:[#allocation3 + $0x1b8] sm:$0xf]
    %v1924 = vld [vmem:[#allocation3 + $0x1bc] sm:$0xff]
    %v1925 = vld [vmem:[#allocation3 + $0x1c4] sm:$0xf]
    %v1926 = vld [vmem:[#allocation3 + $0x1c8] sm:$0xff]
    %v1927 = vld [vmem:[#allocation3 + $0x1d0] sm:$0xf]
    %v1928 = vld [vmem:[#allocation3 + $0x1d4] sm:$0xff]
    %v1929 = vld [vmem:[#allocation3 + $0x1dc] sm:$0xf]
    %v1930 = vld [vmem:[#allocation3 + $0x1e0] sm:$0xff]
    %v1931 = vld [vmem:[#allocation3 + $0x1e8] sm:$0xf]
    %v1932 = vld [vmem:[#allocation3 + $0x1ec] sm:$0xff]
    %v1933 = vld [vmem:[#allocation3 + $0x1f4] sm:$0xf]
    %v1934 = vld [vmem:[#allocation3 + $0x1f8] sm:$0xff]
    %v1935 = vld [vmem:[#allocation3 + $0x200] sm:$0xf]
    %v1936 = vld [vmem:[#allocation3 + $0x204] sm:$0xff]
    %v1937 = vld [vmem:[#allocation3 + $0x20c] sm:$0xf]
    %v1938 = vld [vmem:[#allocation3 + $0x210] sm:$0xff]
    %v1939 = vld [vmem:[#allocation3 + $0x218] sm:$0xf]
    %v1940 = vld [vmem:[#allocation3 + $0x21c] sm:$0xff]
    %v1941 = vld [vmem:[#allocation3 + $0x224] sm:$0xf]
    %v1942 = vld [vmem:[#allocation3 + $0x228] sm:$0xff]
    %v1943 = vld [vmem:[#allocation3 + $0x230] sm:$0xf]
    %v1944 = vld [vmem:[#allocation3 + $0x234] sm:$0xff]
    %v1945 = vld [vmem:[#allocation3 + $0x23c] sm:$0xf]
    %v1946 = vpack.c.bf16 %v1663, %v1660
    %v1947 = vpack.c.bf16 %v1671, %v1668
    %v1948 = vpack.c.bf16 %v1679, %v1676
    %v1949 = vpack.c.bf16 %v1687, %v1684
    %v1950 = vpack.c.bf16 %v1695, %v1692
    %v1951 = vpack.c.bf16 %v1703, %v1700
    %v1952 = vpack.c.bf16 %v1711, %v1708
    %v1953 = vpack.c.bf16 %v1719, %v1716
    %v1954 = vpack.c.bf16 %v1727, %v1724
    %v1955 = vpack.c.bf16 %v1735, %v1732
    %v1956 = vpack.c.bf16 %v1743, %v1740
    %v1957 = vpack.c.bf16 %v1751, %v1748
    %v1958 = vpack.c.bf16 %v1759, %v1756
    %v1959 = vpack.c.bf16 %v1767, %v1764
    %v1960 = vpack.c.bf16 %v1775, %v1772
    %v1961 = vpack.c.bf16 %v1783, %v1780
    %v1962 = vpack.c.bf16 %v1791, %v1788
    %v1963 = vpack.c.bf16 %v1799, %v1796
    %v1964 = vpack.c.bf16 %v1807, %v1804
    %v1965 = vpack.c.bf16 %v1815, %v1812
    %v1966 = vpack.c.bf16 %v1823, %v1820
    %v1967 = vpack.c.bf16 %v1831, %v1828
    %v1968 = vpack.c.bf16 %v1839, %v1836
    %v1969 = vpack.c.bf16 %v1847, %v1844
    %v1970 = vld [vmem:[%s5] sm:$0x1]
    %v1972 = vlaneseq
    %v1973 = vshrl.u32 %v1972, 7
    %v1974 = vsub.s32 0, %v1973
    %v1975 = vrot.slane %v1970, %v1974
    %v2073 = vunpack.c.l.b16 %v1850
    %v2074 = vunpack.c.h.b16 %v1850
    %v2075 = vunpack.c.l.b16 %v1851
    %v2076 = vunpack.c.l.b16 %v1852
    %v2077 = vunpack.c.h.b16 %v1852
    %v2078 = vunpack.c.l.b16 %v1853
    %v2079 = vunpack.c.l.b16 %v1854
    %v2080 = vunpack.c.h.b16 %v1854
    %v2081 = vunpack.c.l.b16 %v1855
    %v2082 = vunpack.c.l.b16 %v1856
    %v2083 = vunpack.c.h.b16 %v1856
    %v2084 = vunpack.c.l.b16 %v1857
    %v2085 = vunpack.c.l.b16 %v1858
    %v2086 = vunpack.c.h.b16 %v1858
    %v2087 = vunpack.c.l.b16 %v1859
    %v2088 = vunpack.c.l.b16 %v1860
    %v2089 = vunpack.c.h.b16 %v1860
    %v2090 = vunpack.c.l.b16 %v1861
    %v2091 = vunpack.c.l.b16 %v1862
    %v2092 = vunpack.c.h.b16 %v1862
    %v2093 = vunpack.c.l.b16 %v1863
    %v2094 = vunpack.c.l.b16 %v1864
    %v2095 = vunpack.c.h.b16 %v1864
    %v2096 = vunpack.c.l.b16 %v1865
    %v2097 = vunpack.c.l.b16 %v1866
    %v2098 = vunpack.c.h.b16 %v1866
    %v2099 = vunpack.c.l.b16 %v1867
    %v2100 = vunpack.c.l.b16 %v1868
    %v2101 = vunpack.c.h.b16 %v1868
    %v2102 = vunpack.c.l.b16 %v1869
    %v2103 = vunpack.c.l.b16 %v1870
    %v2104 = vunpack.c.h.b16 %v1870
    %v2105 = vunpack.c.l.b16 %v1871
    %v2106 = vunpack.c.l.b16 %v1872
    %v2107 = vunpack.c.h.b16 %v1872
    %v2108 = vunpack.c.l.b16 %v1873
    %v2109 = vunpack.c.l.b16 %v1874
    %v2110 = vunpack.c.h.b16 %v1874
    %v2111 = vunpack.c.l.b16 %v1875
    %v2112 = vunpack.c.l.b16 %v1876
    %v2113 = vunpack.c.h.b16 %v1876
    %v2114 = vunpack.c.l.b16 %v1877
    %v2115 = vunpack.c.l.b16 %v1878
    %v2116 = vunpack.c.h.b16 %v1878
    %v2117 = vunpack.c.l.b16 %v1879
    %v2118 = vunpack.c.l.b16 %v1880
    %v2119 = vunpack.c.h.b16 %v1880
    %v2120 = vunpack.c.l.b16 %v1881
    %v2121 = vunpack.c.l.b16 %v1882
    %v2122 = vunpack.c.h.b16 %v1882
    %v2123 = vunpack.c.l.b16 %v1883
    %v2124 = vunpack.c.l.b16 %v1884
    %v2125 = vunpack.c.h.b16 %v1884
    %v2126 = vunpack.c.l.b16 %v1885
    %v2127 = vunpack.c.l.b16 %v1886
    %v2128 = vunpack.c.h.b16 %v1886
    %v2129 = vunpack.c.l.b16 %v1887
    %v2130 = vunpack.c.l.b16 %v1888
    %v2131 = vunpack.c.h.b16 %v1888
    %v2132 = vunpack.c.l.b16 %v1889
    %v2133 = vunpack.c.l.b16 %v1890
    %v2134 = vunpack.c.h.b16 %v1890
    %v2135 = vunpack.c.l.b16 %v1891
    %v2136 = vunpack.c.l.b16 %v1892
    %v2137 = vunpack.c.h.b16 %v1892
    %v2138 = vunpack.c.l.b16 %v1893
    %v2139 = vunpack.c.l.b16 %v1894
    %v2140 = vunpack.c.h.b16 %v1894
    %v2141 = vunpack.c.l.b16 %v1895
    %v2142 = vunpack.c.l.b16 %v1896
    %v2143 = vunpack.c.h.b16 %v1896
    %v2144 = vunpack.c.l.b16 %v1897
    %v2145 = vunpack.c.l.b16 %v1898
    %v2146 = vunpack.c.h.b16 %v1898
    %v2147 = vunpack.c.l.b16 %v1899
    %v2148 = vunpack.c.l.b16 %v1900
    %v2149 = vunpack.c.h.b16 %v1900
    %v2150 = vunpack.c.l.b16 %v1901
    %v2151 = vunpack.c.l.b16 %v1902
    %v2152 = vunpack.c.h.b16 %v1902
    %v2153 = vunpack.c.l.b16 %v1903
    %v2154 = vunpack.c.l.b16 %v1904
    %v2155 = vunpack.c.h.b16 %v1904
    %v2156 = vunpack.c.l.b16 %v1905
    %v2157 = vunpack.c.l.b16 %v1906
    %v2158 = vunpack.c.h.b16 %v1906
    %v2159 = vunpack.c.l.b16 %v1907
    %v2160 = vunpack.c.l.b16 %v1908
    %v2161 = vunpack.c.h.b16 %v1908
    %v2162 = vunpack.c.l.b16 %v1909
    %v2163 = vunpack.c.l.b16 %v1910
    %v2164 = vunpack.c.h.b16 %v1910
    %v2165 = vunpack.c.l.b16 %v1911
    %v2166 = vunpack.c.l.b16 %v1912
    %v2167 = vunpack.c.h.b16 %v1912
    %v2168 = vunpack.c.l.b16 %v1913
    %v2169 = vunpack.c.l.b16 %v1914
    %v2170 = vunpack.c.h.b16 %v1914
    %v2171 = vunpack.c.l.b16 %v1915
    %v2172 = vunpack.c.l.b16 %v1916
    %v2173 = vunpack.c.h.b16 %v1916
    %v2174 = vunpack.c.l.b16 %v1917
    %v2175 = vunpack.c.l.b16 %v1918
    %v2176 = vunpack.c.h.b16 %v1918
    %v2177 = vunpack.c.l.b16 %v1919
    %v2178 = vunpack.c.l.b16 %v1920
    %v2179 = vunpack.c.h.b16 %v1920
    %v2180 = vunpack.c.l.b16 %v1921
    %v2181 = vunpack.c.l.b16 %v1922
    %v2182 = vunpack.c.h.b16 %v1922
    %v2183 = vunpack.c.l.b16 %v1923
    %v2184 = vunpack.c.l.b16 %v1924
    %v2185 = vunpack.c.h.b16 %v1924
    %v2186 = vunpack.c.l.b16 %v1925
    %v2187 = vunpack.c.l.b16 %v1926
    %v2188 = vunpack.c.h.b16 %v1926
    %v2189 = vunpack.c.l.b16 %v1927
    %v2190 = vunpack.c.l.b16 %v1928
    %v2191 = vunpack.c.h.b16 %v1928
    %v2192 = vunpack.c.l.b16 %v1929
    %v2193 = vunpack.c.l.b16 %v1930
    %v2194 = vunpack.c.h.b16 %v1930
    %v2195 = vunpack.c.l.b16 %v1931
    %v2196 = vunpack.c.l.b16 %v1932
    %v2197 = vunpack.c.h.b16 %v1932
    %v2198 = vunpack.c.l.b16 %v1933
    %v2199 = vunpack.c.l.b16 %v1934
    %v2200 = vunpack.c.h.b16 %v1934
    %v2201 = vunpack.c.l.b16 %v1935
    %v2202 = vunpack.c.l.b16 %v1936
    %v2203 = vunpack.c.h.b16 %v1936
    %v2204 = vunpack.c.l.b16 %v1937
    %v2205 = vunpack.c.l.b16 %v1938
    %v2206 = vunpack.c.h.b16 %v1938
    %v2207 = vunpack.c.l.b16 %v1939
    %v2208 = vunpack.c.l.b16 %v1940
    %v2209 = vunpack.c.h.b16 %v1940
    %v2210 = vunpack.c.l.b16 %v1941
    %v2211 = vunpack.c.l.b16 %v1942
    %v2212 = vunpack.c.h.b16 %v1942
    %v2213 = vunpack.c.l.b16 %v1943
    %v2214 = vunpack.c.l.b16 %v1944
    %v2215 = vunpack.c.h.b16 %v1944
    %v2216 = vunpack.c.l.b16 %v1945
    %v2217 = vpack.c.b16 %v2076, %v2073
    %v2218 = vpack.c.b16 %v2077, %v2074
    %v2219 = vpack.c.b16 %v2078, %v2075
    %v2220 = vpack.c.b16 %v2082, %v2079
    %v2221 = vpack.c.b16 %v2083, %v2080
    %v2222 = vpack.c.b16 %v2084, %v2081
    %v2223 = vpack.c.b16 %v2088, %v2085
    %v2224 = vpack.c.b16 %v2089, %v2086
    %v2225 = vpack.c.b16 %v2090, %v2087
    %v2226 = vpack.c.b16 %v2094, %v2091
    %v2227 = vpack.c.b16 %v2095, %v2092
    %v2228 = vpack.c.b16 %v2096, %v2093
    %v2229 = vpack.c.b16 %v2100, %v2097
    %v2230 = vpack.c.b16 %v2101, %v2098
    %v2231 = vpack.c.b16 %v2102, %v2099
    %v2232 = vpack.c.b16 %v2106, %v2103
    %v2233 = vpack.c.b16 %v2107, %v2104
    %v2234 = vpack.c.b16 %v2108, %v2105
    %v2235 = vpack.c.b16 %v2112, %v2109
    %v2236 = vpack.c.b16 %v2113, %v2110
    %v2237 = vpack.c.b16 %v2114, %v2111
    %v2238 = vpack.c.b16 %v2118, %v2115
    %v2239 = vpack.c.b16 %v2119, %v2116
    %v2240 = vpack.c.b16 %v2120, %v2117
    %v2241 = vpack.c.b16 %v2124, %v2121
    %v2242 = vpack.c.b16 %v2125, %v2122
    %v2243 = vpack.c.b16 %v2126, %v2123
    %v2244 = vpack.c.b16 %v2130, %v2127
    %v2245 = vpack.c.b16 %v2131, %v2128
    %v2246 = vpack.c.b16 %v2132, %v2129
    %v2247 = vpack.c.b16 %v2136, %v2133
    %v2248 = vpack.c.b16 %v2137, %v2134
    %v2249 = vpack.c.b16 %v2138, %v2135
    %v2250 = vpack.c.b16 %v2142, %v2139
    %v2251 = vpack.c.b16 %v2143, %v2140
    %v2252 = vpack.c.b16 %v2144, %v2141
    %v2253 = vpack.c.b16 %v2148, %v2145
    %v2254 = vpack.c.b16 %v2149, %v2146
    %v2255 = vpack.c.b16 %v2150, %v2147
    %v2256 = vpack.c.b16 %v2154, %v2151
    %v2257 = vpack.c.b16 %v2155, %v2152
    %v2258 = vpack.c.b16 %v2156, %v2153
    %v2259 = vpack.c.b16 %v2160, %v2157
    %v2260 = vpack.c.b16 %v2161, %v2158
    %v2261 = vpack.c.b16 %v2162, %v2159
    %v2262 = vpack.c.b16 %v2166, %v2163
    %v2263 = vpack.c.b16 %v2167, %v2164
    %v2264 = vpack.c.b16 %v2168, %v2165
    %v2265 = vpack.c.b16 %v2172, %v2169
    %v2266 = vpack.c.b16 %v2173, %v2170
    %v2267 = vpack.c.b16 %v2174, %v2171
    %v2268 = vpack.c.b16 %v2178, %v2175
    %v2269 = vpack.c.b16 %v2179, %v2176
    %v2270 = vpack.c.b16 %v2180, %v2177
    %v2271 = vpack.c.b16 %v2184, %v2181
    %v2272 = vpack.c.b16 %v2185, %v2182
    %v2273 = vpack.c.b16 %v2186, %v2183
    %v2274 = vpack.c.b16 %v2190, %v2187
    %v2275 = vpack.c.b16 %v2191, %v2188
    %v2276 = vpack.c.b16 %v2192, %v2189
    %v2277 = vpack.c.b16 %v2196, %v2193
    %v2278 = vpack.c.b16 %v2197, %v2194
    %v2279 = vpack.c.b16 %v2198, %v2195
    %v2280 = vpack.c.b16 %v2202, %v2199
    %v2281 = vpack.c.b16 %v2203, %v2200
    %v2282 = vpack.c.b16 %v2204, %v2201
    %v2283 = vpack.c.b16 %v2208, %v2205
    %v2284 = vpack.c.b16 %v2209, %v2206
    %v2285 = vpack.c.b16 %v2210, %v2207
    %v2286 = vpack.c.b16 %v2214, %v2211
    %v2287 = vpack.c.b16 %v2215, %v2212
    %v2288 = vpack.c.b16 %v2216, %v2213
    %2361 = vmatprep.subr.bf16.mxu0 0
    %2362 = vmatpush1.bf16.msra.mxu0 %v1946
    %2363 = vmatprep.subr.bf16.mxu0 0
    %2364 = vmatpush1.bf16.msra.mxu0 %v1947
    %2365 = vmatprep.subr.bf16.mxu0 0
    %2366 = vmatpush1.bf16.msra.mxu0 %v1948
    %2367 = vmatprep.subr.bf16.mxu0 0
    %2368 = vmatpush1.bf16.msra.mxu0 %v1949
    %2369 = vmatprep.subr.bf16.mxu0 0
    %2370 = vmatpush1.bf16.msra.mxu0 %v1950
    %2371 = vmatprep.subr.bf16.mxu0 0
    %2372 = vmatpush1.bf16.msra.mxu0 %v1951
    %2373 = vmatprep.subr.bf16.mxu0 0
    %2374 = vmatpush1.bf16.msra.mxu0 %v1952
    %2375 = vmatprep.subr.bf16.mxu0 0
    %2376 = vmatpush1.bf16.msra.mxu0 %v1953
    %2377 = vmatprep.subr.bf16.mxu0 0
    %2378 = vmatpush1.bf16.msra.mxu0 %v1954
    %2379 = vmatprep.subr.bf16.mxu0 0
    %2380 = vmatpush1.bf16.msra.mxu0 %v1955
    %2381 = vmatprep.subr.bf16.mxu0 0
    %2382 = vmatpush1.bf16.msra.mxu0 %v1956
    %2383 = vmatprep.subr.bf16.mxu0 0
    %2384 = vmatpush1.bf16.msra.mxu0 %v1957
    %2385 = vmatprep.subr.bf16.mxu0 0
    %2386 = vmatpush1.bf16.msra.mxu0 %v1958
    %2387 = vmatprep.subr.bf16.mxu0 0
    %2388 = vmatpush1.bf16.msra.mxu0 %v1959
    %2389 = vmatprep.subr.bf16.mxu0 0
    %2390 = vmatpush1.bf16.msra.mxu0 %v1960
    %2391 = vmatprep.subr.bf16.mxu0 0
    %2392 = vmatpush1.bf16.msra.mxu0 %v1961
    %2393 = vmatprep.mubr.bf16.mxu0 %v2218
    %2394 = vmatmul.mubr.bf16.gmra.mrb[0].mxu0 %v2217
    %v2395 = vpop.f32.mrb[0].mxu0
    %v2396 = vadd.f32 %v1975, %v2395
    %v2397 = vpop.f32.mrb[0].mxu0
    %v2398 = vpop.f32.mrb[0].mxu0
    %v2399 = vadd.f32 %v1975, %v2398
    %v2400 = vpop.f32.mrb[0].mxu0
    %2401 = vmatprep.mubr.bf16.mxu0 %v2221
    %2402 = vmatmul.mubr.bf16.gmra.mrb[0].mxu0 %v2220
    %v2403 = vpop.f32.mrb[0].mxu0
    %v2404 = vadd.f32 %v1975, %v2403
    %v2405 = vpop.f32.mrb[0].mxu0
    %v2406 = vpop.f32.mrb[0].mxu0
    %v2407 = vadd.f32 %v1975, %v2406
    %v2408 = vpop.f32.mrb[0].mxu0
    %2409 = vmatprep.mubr.bf16.mxu0 %v2224
    %2410 = vmatmul.mubr.bf16.gmra.mrb[0].mxu0 %v2223
    %v2411 = vpop.f32.mrb[0].mxu0
    %v2412 = vadd.f32 %v1975, %v2411
    %v2413 = vpop.f32.mrb[0].mxu0
    %v2414 = vpop.f32.mrb[0].mxu0
    %v2415 = vadd.f32 %v1975, %v2414
    %v2416 = vpop.f32.mrb[0].mxu0
    %2417 = vmatprep.mubr.bf16.mxu0 %v2227
    %2418 = vmatmul.mubr.bf16.gmra.mrb[0].mxu0 %v2226
    %v2419 = vpop.f32.mrb[0].mxu0
    %v2420 = vadd.f32 %v1975, %v2419
    %v2421 = vpop.f32.mrb[0].mxu0
    %v2422 = vpop.f32.mrb[0].mxu0
    %v2423 = vadd.f32 %v1975, %v2422
    %v2424 = vpop.f32.mrb[0].mxu0
    %2425 = vmatprep.mubr.bf16.mxu0 %v2230
    %2426 = vmatmul.mubr.bf16.gmra.mrb[0].mxu0 %v2229
    %v2427 = vpop.f32.mrb[0].mxu0
    %v2428 = vadd.f32 %v1975, %v2427
    %v2429 = vpop.f32.mrb[0].mxu0
    %v2430 = vpop.f32.mrb[0].mxu0
    %v2431 = vadd.f32 %v1975, %v2430
    %v2432 = vpop.f32.mrb[0].mxu0
    %2433 = vmatprep.mubr.bf16.mxu0 %v2233
    %2434 = vmatmul.mubr.bf16.gmra.mrb[0].mxu0 %v2232
    %v2435 = vpop.f32.mrb[0].mxu0
    %v2436 = vadd.f32 %v1975, %v2435
    %v2437 = vpop.f32.mrb[0].mxu0
    %v2438 = vpop.f32.mrb[0].mxu0
    %v2439 = vadd.f32 %v1975, %v2438
    %v2440 = vpop.f32.mrb[0].mxu0
    %2441 = vmatprep.mubr.bf16.mxu0 %v2236
    %2442 = vmatmul.mubr.bf16.gmra.mrb[0].mxu0 %v2235
    %v2443 = vpop.f32.mrb[0].mxu0
    %v2444 = vadd.f32 %v1975, %v2443
    %v2445 = vpop.f32.mrb[0].mxu0
    %v2446 = vpop.f32.mrb[0].mxu0
    %v2447 = vadd.f32 %v1975, %v2446
    %v2448 = vpop.f32.mrb[0].mxu0
    %2449 = vmatprep.mubr.bf16.mxu0 %v2239
    %2450 = vmatmul.mubr.bf16.gmra.mrb[0].mxu0 %v2238
    %v2451 = vpop.f32.mrb[0].mxu0
    %v2452 = vadd.f32 %v1975, %v2451
    %v2453 = vpop.f32.mrb[0].mxu0
    %v2454 = vpop.f32.mrb[0].mxu0
    %v2455 = vadd.f32 %v1975, %v2454
    %v2456 = vpop.f32.mrb[0].mxu0
    %2457 = vmatprep.mubr.bf16.mxu0 %v2242
    %2458 = vmatmul.mubr.bf16.gmra.mrb[0].mxu0 %v2241
    %v2459 = vpop.f32.mrb[0].mxu0
    %v2460 = vadd.f32 %v1975, %v2459
    %v2461 = vpop.f32.mrb[0].mxu0
    %v2462 = vpop.f32.mrb[0].mxu0
    %v2463 = vadd.f32 %v1975, %v2462
    %v2464 = vpop.f32.mrb[0].mxu0
    %2465 = vmatprep.mubr.bf16.mxu0 %v2245
    %2466 = vmatmul.mubr.bf16.gmra.mrb[0].mxu0 %v2244
    %v2467 = vpop.f32.mrb[0].mxu0
    %v2468 = vadd.f32 %v1975, %v2467
    %v2469 = vpop.f32.mrb[0].mxu0
    %v2470 = vpop.f32.mrb[0].mxu0
    %v2471 = vadd.f32 %v1975, %v2470
    %v2472 = vpop.f32.mrb[0].mxu0
    %2473 = vmatprep.mubr.bf16.mxu0 %v2248
    %2474 = vmatmul.mubr.bf16.gmra.mrb[0].mxu0 %v2247
    %v2475 = vpop.f32.mrb[0].mxu0
    %v2476 = vadd.f32 %v1975, %v2475
    %v2477 = vpop.f32.mrb[0].mxu0
    %v2478 = vpop.f32.mrb[0].mxu0
    %v2479 = vadd.f32 %v1975, %v2478
    %v2480 = vpop.f32.mrb[0].mxu0
    %2481 = vmatprep.mubr.bf16.mxu0 %v2251
    %2482 = vmatmul.mubr.bf16.gmra.mrb[0].mxu0 %v2250
    %v2483 = vpop.f32.mrb[0].mxu0
    %v2484 = vadd.f32 %v1975, %v2483
    %v2485 = vpop.f32.mrb[0].mxu0
    %v2486 = vpop.f32.mrb[0].mxu0
    %v2487 = vadd.f32 %v1975, %v2486
    %v2488 = vpop.f32.mrb[0].mxu0
    %2489 = vmatprep.mubr.bf16.mxu0 %v2254
    %2490 = vmatmul.mubr.bf16.gmra.mrb[0].mxu0 %v2253
    %v2491 = vpop.f32.mrb[0].mxu0
    %v2492 = vadd.f32 %v1975, %v2491
    %v2493 = vpop.f32.mrb[0].mxu0
    %v2494 = vpop.f32.mrb[0].mxu0
    %v2495 = vadd.f32 %v1975, %v2494
    %v2496 = vpop.f32.mrb[0].mxu0
    %2497 = vmatprep.mubr.bf16.mxu0 %v2257
    %2498 = vmatmul.mubr.bf16.gmra.mrb[0].mxu0 %v2256
    %v2499 = vpop.f32.mrb[0].mxu0
    %v2500 = vadd.f32 %v1975, %v2499
    %v2501 = vpop.f32.mrb[0].mxu0
    %v2502 = vpop.f32.mrb[0].mxu0
    %v2503 = vadd.f32 %v1975, %v2502
    %v2504 = vpop.f32.mrb[0].mxu0
    %2505 = vmatprep.mubr.bf16.mxu0 %v2260
    %2506 = vmatmul.mubr.bf16.gmra.mrb[0].mxu0 %v2259
    %v2507 = vpop.f32.mrb[0].mxu0
    %v2508 = vadd.f32 %v1975, %v2507
    %v2509 = vpop.f32.mrb[0].mxu0
    %v2510 = vpop.f32.mrb[0].mxu0
    %v2511 = vadd.f32 %v1975, %v2510
    %v2512 = vpop.f32.mrb[0].mxu0
    %2513 = vmatprep.mubr.bf16.mxu0 %v2263
    %2514 = vmatmul.mubr.bf16.gmra.mrb[0].mxu0 %v2262
    %v2515 = vpop.f32.mrb[0].mxu0
    %v2516 = vadd.f32 %v1975, %v2515
    %v2517 = vpop.f32.mrb[0].mxu0
    %v2518 = vpop.f32.mrb[0].mxu0
    %v2519 = vadd.f32 %v1975, %v2518
    %v2520 = vpop.f32.mrb[0].mxu0
    %2521 = vmatprep.mubr.bf16.mxu0 %v2266
    %2522 = vmatmul.mubr.bf16.gmra.mrb[0].mxu0 %v2265
    %v2523 = vpop.f32.mrb[0].mxu0
    %v2524 = vadd.f32 %v1975, %v2523
    %v2525 = vpop.f32.mrb[0].mxu0
    %v2526 = vpop.f32.mrb[0].mxu0
    %v2527 = vadd.f32 %v1975, %v2526
    %v2528 = vpop.f32.mrb[0].mxu0
    %2529 = vmatprep.mubr.bf16.mxu0 %v2269
    %2530 = vmatmul.mubr.bf16.gmra.mrb[0].mxu0 %v2268
    %v2531 = vpop.f32.mrb[0].mxu0
    %v2532 = vadd.f32 %v1975, %v2531
    %v2533 = vpop.f32.mrb[0].mxu0
    %v2534 = vpop.f32.mrb[0].mxu0
    %v2535 = vadd.f32 %v1975, %v2534
    %v2536 = vpop.f32.mrb[0].mxu0
    %2537 = vmatprep.mubr.bf16.mxu0 %v2272
    %2538 = vmatmul.mubr.bf16.gmra.mrb[0].mxu0 %v2271
    %v2539 = vpop.f32.mrb[0].mxu0
    %v2540 = vadd.f32 %v1975, %v2539
    %v2541 = vpop.f32.mrb[0].mxu0
    %v2542 = vpop.f32.mrb[0].mxu0
    %v2543 = vadd.f32 %v1975, %v2542
    %v2544 = vpop.f32.mrb[0].mxu0
    %2545 = vmatprep.mubr.bf16.mxu0 %v2275
    %2546 = vmatmul.mubr.bf16.gmra.mrb[0].mxu0 %v2274
    %v2547 = vpop.f32.mrb[0].mxu0
    %v2548 = vadd.f32 %v1975, %v2547
    %v2549 = vpop.f32.mrb[0].mxu0
    %v2550 = vpop.f32.mrb[0].mxu0
    %v2551 = vadd.f32 %v1975, %v2550
    %v2552 = vpop.f32.mrb[0].mxu0
    %2553 = vmatprep.mubr.bf16.mxu0 %v2278
    %2554 = vmatmul.mubr.bf16.gmra.mrb[0].mxu0 %v2277
    %v2555 = vpop.f32.mrb[0].mxu0
    %v2556 = vadd.f32 %v1975, %v2555
    %v2557 = vpop.f32.mrb[0].mxu0
    %v2558 = vpop.f32.mrb[0].mxu0
    %v2559 = vadd.f32 %v1975, %v2558
    %v2560 = vpop.f32.mrb[0].mxu0
    %2561 = vmatprep.mubr.bf16.mxu0 %v2281
    %2562 = vmatmul.mubr.bf16.gmra.mrb[0].mxu0 %v2280
    %v2563 = vpop.f32.mrb[0].mxu0
    %v2564 = vadd.f32 %v1975, %v2563
    %v2565 = vpop.f32.mrb[0].mxu0
    %v2566 = vpop.f32.mrb[0].mxu0
    %v2567 = vadd.f32 %v1975, %v2566
    %v2568 = vpop.f32.mrb[0].mxu0
    %2569 = vmatprep.mubr.bf16.mxu0 %v2284
    %2570 = vmatmul.mubr.bf16.gmra.mrb[0].mxu0 %v2283
    %v2571 = vpop.f32.mrb[0].mxu0
    %v2572 = vadd.f32 %v1975, %v2571
    %v2573 = vpop.f32.mrb[0].mxu0
    %v2574 = vpop.f32.mrb[0].mxu0
    %v2575 = vadd.f32 %v1975, %v2574
    %v2576 = vpop.f32.mrb[0].mxu0
    %2577 = vmatprep.mubr.bf16.mxu0 %v2287
    %2578 = vmatmul.mubr.bf16.gmra.mrb[0].mxu0 %v2286
    %v2579 = vpop.f32.mrb[0].mxu0
    %v2580 = vadd.f32 %v1975, %v2579
    %v2581 = vpop.f32.mrb[0].mxu0
    %v2582 = vpop.f32.mrb[0].mxu0
    %v2583 = vadd.f32 %v1975, %v2582
    %v2584 = vpop.f32.mrb[0].mxu0
    %2585 = vdwg.mxu0
    %2586 = vmatprep.subr.bf16.mxu0 0
    %2587 = vmatpush1.bf16.msra.mxu0 %v1962
    %2588 = vmatprep.subr.bf16.mxu0 0
    %2589 = vmatpush1.bf16.msra.mxu0 %v1963
    %2590 = vmatprep.subr.bf16.mxu0 0
    %2591 = vmatpush1.bf16.msra.mxu0 %v1964
    %2592 = vmatprep.subr.bf16.mxu0 0
    %2593 = vmatpush1.bf16.msra.mxu0 %v1965
    %2594 = vmatprep.subr.bf16.mxu0 0
    %2595 = vmatpush1.bf16.msra.mxu0 %v1966
    %2596 = vmatprep.subr.bf16.mxu0 0
    %2597 = vmatpush1.bf16.msra.mxu0 %v1967
    %2598 = vmatprep.subr.bf16.mxu0 0
    %2599 = vmatpush1.bf16.msra.mxu0 %v1968
    %2600 = vmatprep.subr.bf16.mxu0 0
    %2601 = vmatpush1.bf16.msra.mxu0 %v1969
    %2602 = vmatprep.subr.bf16.mxu0 0
    %2603 = vmatpush1.bf16.msra.mxu0 0
    %2604 = vmatprep.subr.bf16.mxu0 0
    %2605 = vmatpush1.bf16.msra.mxu0 0
    %2606 = vmatprep.subr.bf16.mxu0 0
    %2607 = vmatpush1.bf16.msra.mxu0 0
    %2608 = vmatprep.subr.bf16.mxu0 0
    %2609 = vmatpush1.bf16.msra.mxu0 0
    %2610 = vmatprep.subr.bf16.mxu0 0
    %2611 = vmatpush1.bf16.msra.mxu0 0
    %2612 = vmatprep.subr.bf16.mxu0 0
    %2613 = vmatpush1.bf16.msra.mxu0 0
    %2614 = vmatprep.subr.bf16.mxu0 0
    %2615 = vmatpush1.bf16.msra.mxu0 0
    %2616 = vmatprep.subr.bf16.mxu0 0
    %2617 = vmatpush1.bf16.msra.mxu0 0
    %2618 = vmatprep.mubr.bf16.mxu0 0
    %2619 = vmatmul.mubr.bf16.gmra.mrb[0].mxu0 %v2219
    %v2620 = vpop.f32.mrb[0].mxu0
    %v2621 = vadd.f32 %v2396, %v2620
    %v2622 = vpop.f32.mrb[0].mxu0
    %v2623 = vpop.f32.mrb[0].mxu0
    %v2624 = vadd.f32 %v2399, %v2623
    %v2625 = vpop.f32.mrb[0].mxu0
    %2626 = vmatprep.mubr.bf16.mxu0 0
    %2627 = vmatmul.mubr.bf16.gmra.mrb[0].mxu0 %v2222
    %v2628 = vpop.f32.mrb[0].mxu0
    %v2629 = vadd.f32 %v2404, %v2628
    %v2630 = vpop.f32.mrb[0].mxu0
    %v2631 = vpop.f32.mrb[0].mxu0
    %v2632 = vadd.f32 %v2407, %v2631
    %v2633 = vpop.f32.mrb[0].mxu0
    %2634 = vmatprep.mubr.bf16.mxu0 0
    %2635 = vmatmul.mubr.bf16.gmra.mrb[0].mxu0 %v2225
    %v2636 = vpop.f32.mrb[0].mxu0
    %v2637 = vadd.f32 %v2412, %v2636
    %v2638 = vpop.f32.mrb[0].mxu0
    %v2639 = vpop.f32.mrb[0].mxu0
    %v2640 = vadd.f32 %v2415, %v2639
    %v2641 = vpop.f32.mrb[0].mxu0
    %2642 = vmatprep.mubr.bf16.mxu0 0
    %2643 = vmatmul.mubr.bf16.gmra.mrb[0].mxu0 %v2228
    %v2644 = vpop.f32.mrb[0].mxu0
    %v2645 = vadd.f32 %v2420, %v2644
    %v2646 = vpop.f32.mrb[0].mxu0
    %v2647 = vpop.f32.mrb[0].mxu0
    %v2648 = vadd.f32 %v2423, %v2647
    %v2649 = vpop.f32.mrb[0].mxu0
    %2650 = vmatprep.mubr.bf16.mxu0 0
    %2651 = vmatmul.mubr.bf16.gmra.mrb[0].mxu0 %v2231
    %v2652 = vpop.f32.mrb[0].mxu0
    %v2653 = vadd.f32 %v2428, %v2652
    %v2654 = vpop.f32.mrb[0].mxu0
    %v2655 = vpop.f32.mrb[0].mxu0
    %v2656 = vadd.f32 %v2431, %v2655
    %v2657 = vpop.f32.mrb[0].mxu0
    %2658 = vmatprep.mubr.bf16.mxu0 0
    %2659 = vmatmul.mubr.bf16.gmra.mrb[0].mxu0 %v2234
    %v2660 = vpop.f32.mrb[0].mxu0
    %v2661 = vadd.f32 %v2436, %v2660
    %v2662 = vpop.f32.mrb[0].mxu0
    %v2663 = vpop.f32.mrb[0].mxu0
    %v2664 = vadd.f32 %v2439, %v2663
    %v2665 = vpop.f32.mrb[0].mxu0
    %2666 = vmatprep.mubr.bf16.mxu0 0
    %2667 = vmatmul.mubr.bf16.gmra.mrb[0].mxu0 %v2237
    %v2668 = vpop.f32.mrb[0].mxu0
    %v2669 = vadd.f32 %v2444, %v2668
    %v2670 = vpop.f32.mrb[0].mxu0
    %v2671 = vpop.f32.mrb[0].mxu0
    %v2672 = vadd.f32 %v2447, %v2671
    %v2673 = vpop.f32.mrb[0].mxu0
    %2674 = vmatprep.mubr.bf16.mxu0 0
    %2675 = vmatmul.mubr.bf16.gmra.mrb[0].mxu0 %v2240
    %v2676 = vpop.f32.mrb[0].mxu0
    %v2677 = vadd.f32 %v2452, %v2676
    %v2678 = vpop.f32.mrb[0].mxu0
    %v2679 = vpop.f32.mrb[0].mxu0
    %v2680 = vadd.f32 %v2455, %v2679
    %v2681 = vpop.f32.mrb[0].mxu0
    %2682 = vmatprep.mubr.bf16.mxu0 0
    %2683 = vmatmul.mubr.bf16.gmra.mrb[0].mxu0 %v2243
    %v2684 = vpop.f32.mrb[0].mxu0
    %v2685 = vadd.f32 %v2460, %v2684
    %v2686 = vpop.f32.mrb[0].mxu0
    %v2687 = vpop.f32.mrb[0].mxu0
    %v2688 = vadd.f32 %v2463, %v2687
    %v2689 = vpop.f32.mrb[0].mxu0
    %2690 = vmatprep.mubr.bf16.mxu0 0
    %2691 = vmatmul.mubr.bf16.gmra.mrb[0].mxu0 %v2246
    %v2692 = vpop.f32.mrb[0].mxu0
    %v2693 = vadd.f32 %v2468, %v2692
    %v2694 = vpop.f32.mrb[0].mxu0
    %v2695 = vpop.f32.mrb[0].mxu0
    %v2696 = vadd.f32 %v2471, %v2695
    %v2697 = vpop.f32.mrb[0].mxu0
    %2698 = vmatprep.mubr.bf16.mxu0 0
    %2699 = vmatmul.mubr.bf16.gmra.mrb[0].mxu0 %v2249
    %v2700 = vpop.f32.mrb[0].mxu0
    %v2701 = vadd.f32 %v2476, %v2700
    %v2702 = vpop.f32.mrb[0].mxu0
    %v2703 = vpop.f32.mrb[0].mxu0
    %v2704 = vadd.f32 %v2479, %v2703
    %v2705 = vpop.f32.mrb[0].mxu0
    %2706 = vmatprep.mubr.bf16.mxu0 0
    %2707 = vmatmul.mubr.bf16.gmra.mrb[0].mxu0 %v2252
    %v2708 = vpop.f32.mrb[0].mxu0
    %v2709 = vadd.f32 %v2484, %v2708
    %v2710 = vpop.f32.mrb[0].mxu0
    %v2711 = vpop.f32.mrb[0].mxu0
    %v2712 = vadd.f32 %v2487, %v2711
    %v2713 = vpop.f32.mrb[0].mxu0
    %2714 = vmatprep.mubr.bf16.mxu0 0
    %2715 = vmatmul.mubr.bf16.gmra.mrb[0].mxu0 %v2255
    %v2716 = vpop.f32.mrb[0].mxu0
    %v2717 = vadd.f32 %v2492, %v2716
    %v2718 = vpop.f32.mrb[0].mxu0
    %v2719 = vpop.f32.mrb[0].mxu0
    %v2720 = vadd.f32 %v2495, %v2719
    %v2721 = vpop.f32.mrb[0].mxu0
    %2722 = vmatprep.mubr.bf16.mxu0 0
    %2723 = vmatmul.mubr.bf16.gmra.mrb[0].mxu0 %v2258
    %v2724 = vpop.f32.mrb[0].mxu0
    %v2725 = vadd.f32 %v2500, %v2724
    %v2726 = vpop.f32.mrb[0].mxu0
    %v2727 = vpop.f32.mrb[0].mxu0
    %v2728 = vadd.f32 %v2503, %v2727
    %v2729 = vpop.f32.mrb[0].mxu0
    %2730 = vmatprep.mubr.bf16.mxu0 0
    %2731 = vmatmul.mubr.bf16.gmra.mrb[0].mxu0 %v2261
    %v2732 = vpop.f32.mrb[0].mxu0
    %v2733 = vadd.f32 %v2508, %v2732
    %v2734 = vpop.f32.mrb[0].mxu0
    %v2735 = vpop.f32.mrb[0].mxu0
    %v2736 = vadd.f32 %v2511, %v2735
    %v2737 = vpop.f32.mrb[0].mxu0
    %2738 = vmatprep.mubr.bf16.mxu0 0
    %2739 = vmatmul.mubr.bf16.gmra.mrb[0].mxu0 %v2264
    %v2740 = vpop.f32.mrb[0].mxu0
    %v2741 = vadd.f32 %v2516, %v2740
    %v2742 = vpop.f32.mrb[0].mxu0
    %v2743 = vpop.f32.mrb[0].mxu0
    %v2744 = vadd.f32 %v2519, %v2743
    %v2745 = vpop.f32.mrb[0].mxu0
    %2746 = vmatprep.mubr.bf16.mxu0 0
    %2747 = vmatmul.mubr.bf16.gmra.mrb[0].mxu0 %v2267
    %v2748 = vpop.f32.mrb[0].mxu0
    %v2749 = vadd.f32 %v2524, %v2748
    %v2750 = vpop.f32.mrb[0].mxu0
    %v2751 = vpop.f32.mrb[0].mxu0
    %v2752 = vadd.f32 %v2527, %v2751
    %v2753 = vpop.f32.mrb[0].mxu0
    %2754 = vmatprep.mubr.bf16.mxu0 0
    %2755 = vmatmul.mubr.bf16.gmra.mrb[0].mxu0 %v2270
    %v2756 = vpop.f32.mrb[0].mxu0
    %v2757 = vadd.f32 %v2532, %v2756
    %v2758 = vpop.f32.mrb[0].mxu0
    %v2759 = vpop.f32.mrb[0].mxu0
    %v2760 = vadd.f32 %v2535, %v2759
    %v2761 = vpop.f32.mrb[0].mxu0
    %2762 = vmatprep.mubr.bf16.mxu0 0
    %2763 = vmatmul.mubr.bf16.gmra.mrb[0].mxu0 %v2273
    %v2764 = vpop.f32.mrb[0].mxu0
    %v2765 = vadd.f32 %v2540, %v2764
    %v2766 = vpop.f32.mrb[0].mxu0
    %v2767 = vpop.f32.mrb[0].mxu0
    %v2768 = vadd.f32 %v2543, %v2767
    %v2769 = vpop.f32.mrb[0].mxu0
    %2770 = vmatprep.mubr.bf16.mxu0 0
    %2771 = vmatmul.mubr.bf16.gmra.mrb[0].mxu0 %v2276
    %v2772 = vpop.f32.mrb[0].mxu0
    %v2773 = vadd.f32 %v2548, %v2772
    %v2774 = vpop.f32.mrb[0].mxu0
    %v2775 = vpop.f32.mrb[0].mxu0
    %v2776 = vadd.f32 %v2551, %v2775
    %v2777 = vpop.f32.mrb[0].mxu0
    %2778 = vmatprep.mubr.bf16.mxu0 0
    %2779 = vmatmul.mubr.bf16.gmra.mrb[0].mxu0 %v2279
    %v2780 = vpop.f32.mrb[0].mxu0
    %v2781 = vadd.f32 %v2556, %v2780
    %v2782 = vpop.f32.mrb[0].mxu0
    %v2783 = vpop.f32.mrb[0].mxu0
    %v2784 = vadd.f32 %v2559, %v2783
    %v2785 = vpop.f32.mrb[0].mxu0
    %2786 = vmatprep.mubr.bf16.mxu0 0
    %2787 = vmatmul.mubr.bf16.gmra.mrb[0].mxu0 %v2282
    %v2788 = vpop.f32.mrb[0].mxu0
    %v2789 = vadd.f32 %v2564, %v2788
    %v2790 = vpop.f32.mrb[0].mxu0
    %v2791 = vpop.f32.mrb[0].mxu0
    %v2792 = vadd.f32 %v2567, %v2791
    %v2793 = vpop.f32.mrb[0].mxu0
    %2794 = vmatprep.mubr.bf16.mxu0 0
    %2795 = vmatmul.mubr.bf16.gmra.mrb[0].mxu0 %v2285
    %v2796 = vpop.f32.mrb[0].mxu0
    %v2797 = vadd.f32 %v2572, %v2796
    %v2798 = vpop.f32.mrb[0].mxu0
    %v2799 = vpop.f32.mrb[0].mxu0
    %v2800 = vadd.f32 %v2575, %v2799
    %v2801 = vpop.f32.mrb[0].mxu0
    %2802 = vmatprep.mubr.bf16.mxu0 0
    %2803 = vmatmul.mubr.bf16.gmra.mrb[0].mxu0 %v2288
    %v2804 = vpop.f32.mrb[0].mxu0
    %v2805 = vadd.f32 %v2580, %v2804
    %v2806 = vpop.f32.mrb[0].mxu0
    %v2807 = vpop.f32.mrb[0].mxu0
    %v2808 = vadd.f32 %v2583, %v2807
    %v2809 = vpop.f32.mrb[0].mxu0
    %2810 = vdwg.mxu0
    %v2811 = vmax.f32 %v2621, 0.0
    %v2812 = vmax.f32 %v2624, 0.0
    %v2813 = vmax.f32 %v2629, 0.0
    %v2814 = vmax.f32 %v2632, 0.0
    %v2815 = vmax.f32 %v2637, 0.0
    %v2816 = vmax.f32 %v2640, 0.0
    %v2817 = vmax.f32 %v2645, 0.0
    %v2818 = vmax.f32 %v2648, 0.0
    %v2819 = vmax.f32 %v2653, 0.0
    %v2820 = vmax.f32 %v2656, 0.0
    %v2821 = vmax.f32 %v2661, 0.0
    %v2822 = vmax.f32 %v2664, 0.0
    %v2823 = vmax.f32 %v2669, 0.0
    %v2824 = vmax.f32 %v2672, 0.0
    %v2825 = vmax.f32 %v2677, 0.0
    %v2826 = vmax.f32 %v2680, 0.0
    %v2827 = vmax.f32 %v2685, 0.0
    %v2828 = vmax.f32 %v2688, 0.0
    %v2829 = vmax.f32 %v2693, 0.0
    %v2830 = vmax.f32 %v2696, 0.0
    %v2831 = vmax.f32 %v2701, 0.0
    %v2832 = vmax.f32 %v2704, 0.0
    %v2833 = vmax.f32 %v2709, 0.0
    %v2834 = vmax.f32 %v2712, 0.0
    %v2835 = vmax.f32 %v2717, 0.0
    %v2836 = vmax.f32 %v2720, 0.0
    %v2837 = vmax.f32 %v2725, 0.0
    %v2838 = vmax.f32 %v2728, 0.0
    %v2839 = vmax.f32 %v2733, 0.0
    %v2840 = vmax.f32 %v2736, 0.0
    %v2841 = vmax.f32 %v2741, 0.0
    %v2842 = vmax.f32 %v2744, 0.0
    %v2843 = vmax.f32 %v2749, 0.0
    %v2844 = vmax.f32 %v2752, 0.0
    %v2845 = vmax.f32 %v2757, 0.0
    %v2846 = vmax.f32 %v2760, 0.0
    %v2847 = vmax.f32 %v2765, 0.0
    %v2848 = vmax.f32 %v2768, 0.0
    %v2849 = vmax.f32 %v2773, 0.0
    %v2850 = vmax.f32 %v2776, 0.0
    %v2851 = vmax.f32 %v2781, 0.0
    %v2852 = vmax.f32 %v2784, 0.0
    %v2853 = vmax.f32 %v2789, 0.0
    %v2854 = vmax.f32 %v2792, 0.0
    %v2855 = vmax.f32 %v2797, 0.0
    %v2856 = vmax.f32 %v2800, 0.0
    %v2857 = vmax.f32 %v2805, 0.0
    %v2858 = vmax.f32 %v2808, 0.0
    %2859 = vst [vmem:[#allocation2] sm:$0xff] %v2811
    %2860 = vst [vmem:[#allocation2 + $0x8] sm:$0xff] %v2812
    %2861 = vst [vmem:[#allocation2 + $0x10] sm:$0xff] %v2813
    %2862 = vst [vmem:[#allocation2 + $0x18] sm:$0xff] %v2814
    %2863 = vst [vmem:[#allocation2 + $0x20] sm:$0xff] %v2815
    %2864 = vst [vmem:[#allocation2 + $0x28] sm:$0xff] %v2816
    %2865 = vst [vmem:[#allocation2 + $0x30] sm:$0xff] %v2817
    %2866 = vst [vmem:[#allocation2 + $0x38] sm:$0xff] %v2818
    %2867 = vst [vmem:[#allocation2 + $0x40] sm:$0xff] %v2819
    %2868 = vst [vmem:[#allocation2 + $0x48] sm:$0xff] %v2820
    %2869 = vst [vmem:[#allocation2 + $0x50] sm:$0xff] %v2821
    %2870 = vst [vmem:[#allocation2 + $0x58] sm:$0xff] %v2822
    %2871 = vst [vmem:[#allocation2 + $0x60] sm:$0xff] %v2823
    %2872 = vst [vmem:[#allocation2 + $0x68] sm:$0xff] %v2824
    %2873 = vst [vmem:[#allocation2 + $0x70] sm:$0xff] %v2825
    %2874 = vst [vmem:[#allocation2 + $0x78] sm:$0xff] %v2826
    %2875 = vst [vmem:[#allocation2 + $0x80] sm:$0xff] %v2827
    %2876 = vst [vmem:[#allocation2 + $0x88] sm:$0xff] %v2828
    %2877 = vst [vmem:[#allocation2 + $0x90] sm:$0xff] %v2829
    %2878 = vst [vmem:[#allocation2 + $0x98] sm:$0xff] %v2830
    %2879 = vst [vmem:[#allocation2 + $0xa0] sm:$0xff] %v2831
    %2880 = vst [vmem:[#allocation2 + $0xa8] sm:$0xff] %v2832
    %2881 = vst [vmem:[#allocation2 + $0xb0] sm:$0xff] %v2833
    %2882 = vst [vmem:[#allocation2 + $0xb8] sm:$0xff] %v2834
    %2883 = vst [vmem:[#allocation2 + $0xc0] sm:$0xff] %v2835
    %2884 = vst [vmem:[#allocation2 + $0xc8] sm:$0xff] %v2836
    %2885 = vst [vmem:[#allocation2 + $0xd0] sm:$0xff] %v2837
    %2886 = vst [vmem:[#allocation2 + $0xd8] sm:$0xff] %v2838
    %2887 = vst [vmem:[#allocation2 + $0xe0] sm:$0xff] %v2839
    %2888 = vst [vmem:[#allocation2 + $0xe8] sm:$0xff] %v2840
    %2889 = vst [vmem:[#allocation2 + $0xf0] sm:$0xff] %v2841
    %2890 = vst [vmem:[#allocation2 + $0xf8] sm:$0xff] %v2842
    %2891 = vst [vmem:[#allocation2 + $0x100] sm:$0xff] %v2843
    %2892 = vst [vmem:[#allocation2 + $0x108] sm:$0xff] %v2844
    %2893 = vst [vmem:[#allocation2 + $0x110] sm:$0xff] %v2845
    %2894 = vst [vmem:[#allocation2 + $0x118] sm:$0xff] %v2846
    %2895 = vst [vmem:[#allocation2 + $0x120] sm:$0xff] %v2847
    %2896 = vst [vmem:[#allocation2 + $0x128] sm:$0xff] %v2848
    %2897 = vst [vmem:[#allocation2 + $0x130] sm:$0xff] %v2849
    %2898 = vst [vmem:[#allocation2 + $0x138] sm:$0xff] %v2850
    %2899 = vst [vmem:[#allocation2 + $0x140] sm:$0xff] %v2851
    %2900 = vst [vmem:[#allocation2 + $0x148] sm:$0xff] %v2852
    %2901 = vst [vmem:[#allocation2 + $0x150] sm:$0xff] %v2853
    %2902 = vst [vmem:[#allocation2 + $0x158] sm:$0xff] %v2854
    %2903 = vst [vmem:[#allocation2 + $0x160] sm:$0xff] %v2855
    %2904 = vst [vmem:[#allocation2 + $0x168] sm:$0xff] %v2856
    %2905 = vst [vmem:[#allocation2 + $0x170] sm:$0xff] %v2857
    %2906 = vst [vmem:[#allocation2 + $0x178] sm:$0xff] %v2858
    %v2907 = vld [vmem:[#allocation7] sm:$0xf]
    %v2908 = vld [vmem:[#allocation7 + $0x4] sm:$0xf]
    %v2909 = vld [vmem:[#allocation7 + $0x8] sm:$0xf]
    %v2910 = vld [vmem:[#allocation7 + $0xc] sm:$0xf]
    %v2911 = vld [vmem:[#allocation7 + $0x10] sm:$0xf]
    %v2912 = vld [vmem:[#allocation7 + $0x14] sm:$0xf]
    %v2913 = vld [vmem:[#allocation7 + $0x18] sm:$0xf]
    %v2914 = vld [vmem:[#allocation7 + $0x1c] sm:$0xf]
    %v2915 = vld [vmem:[#allocation7 + $0x20] sm:$0xf]
    %v2916 = vld [vmem:[#allocation7 + $0x24] sm:$0xf]
    %v2917 = vld [vmem:[#allocation7 + $0x28] sm:$0xf]
    %v2918 = vld [vmem:[#allocation7 + $0x2c] sm:$0xf]
    %v2919 = vld [vmem:[#allocation7 + $0x30] sm:$0xf]
    %v2920 = vld [vmem:[#allocation7 + $0x34] sm:$0xf]
    %v2921 = vld [vmem:[#allocation7 + $0x38] sm:$0xf]
    %v2922 = vld [vmem:[#allocation7 + $0x3c] sm:$0xf]
    %v2923 = vld [vmem:[#allocation2] sm:$0xff]
    %v2924 = vld [vmem:[#allocation2 + $0x8] sm:$0xff]
    %v2925 = vld [vmem:[#allocation2 + $0x10] sm:$0xff]
    %v2926 = vld [vmem:[#allocation2 + $0x18] sm:$0xff]
    %v2927 = vld [vmem:[#allocation2 + $0x20] sm:$0xff]
    %v2928 = vld [vmem:[#allocation2 + $0x28] sm:$0xff]
    %v2929 = vld [vmem:[#allocation2 + $0x30] sm:$0xff]
    %v2930 = vld [vmem:[#allocation2 + $0x38] sm:$0xff]
    %v2931 = vld [vmem:[#allocation2 + $0x40] sm:$0xff]
    %v2932 = vld [vmem:[#allocation2 + $0x48] sm:$0xff]
    %v2933 = vld [vmem:[#allocation2 + $0x50] sm:$0xff]
    %v2934 = vld [vmem:[#allocation2 + $0x58] sm:$0xff]
    %v2935 = vld [vmem:[#allocation2 + $0x60] sm:$0xff]
    %v2936 = vld [vmem:[#allocation2 + $0x68] sm:$0xff]
    %v2937 = vld [vmem:[#allocation2 + $0x70] sm:$0xff]
    %v2938 = vld [vmem:[#allocation2 + $0x78] sm:$0xff]
    %v2939 = vld [vmem:[#allocation2 + $0x80] sm:$0xff]
    %v2940 = vld [vmem:[#allocation2 + $0x88] sm:$0xff]
    %v2941 = vld [vmem:[#allocation2 + $0x90] sm:$0xff]
    %v2942 = vld [vmem:[#allocation2 + $0x98] sm:$0xff]
    %v2943 = vld [vmem:[#allocation2 + $0xa0] sm:$0xff]
    %v2944 = vld [vmem:[#allocation2 + $0xa8] sm:$0xff]
    %v2945 = vld [vmem:[#allocation2 + $0xb0] sm:$0xff]
    %v2946 = vld [vmem:[#allocation2 + $0xb8] sm:$0xff]
    %v2947 = vld [vmem:[#allocation2 + $0xc0] sm:$0xff]
    %v2948 = vld [vmem:[#allocation2 + $0xc8] sm:$0xff]
    %v2949 = vld [vmem:[#allocation2 + $0xd0] sm:$0xff]
    %v2950 = vld [vmem:[#allocation2 + $0xd8] sm:$0xff]
    %v2951 = vld [vmem:[#allocation2 + $0xe0] sm:$0xff]
    %v2952 = vld [vmem:[#allocation2 + $0xe8] sm:$0xff]
    %v2953 = vld [vmem:[#allocation2 + $0xf0] sm:$0xff]
    %v2954 = vld [vmem:[#allocation2 + $0xf8] sm:$0xff]
    %v2955 = vld [vmem:[#allocation2 + $0x100] sm:$0xff]
    %v2956 = vld [vmem:[#allocation2 + $0x108] sm:$0xff]
    %v2957 = vld [vmem:[#allocation2 + $0x110] sm:$0xff]
    %v2958 = vld [vmem:[#allocation2 + $0x118] sm:$0xff]
    %v2959 = vld [vmem:[#allocation2 + $0x120] sm:$0xff]
    %v2960 = vld [vmem:[#allocation2 + $0x128] sm:$0xff]
    %v2961 = vld [vmem:[#allocation2 + $0x130] sm:$0xff]
    %v2962 = vld [vmem:[#allocation2 + $0x138] sm:$0xff]
    %v2963 = vld [vmem:[#allocation2 + $0x140] sm:$0xff]
    %v2964 = vld [vmem:[#allocation2 + $0x148] sm:$0xff]
    %v2965 = vld [vmem:[#allocation2 + $0x150] sm:$0xff]
    %v2966 = vld [vmem:[#allocation2 + $0x158] sm:$0xff]
    %v2967 = vld [vmem:[#allocation2 + $0x160] sm:$0xff]
    %v2968 = vld [vmem:[#allocation2 + $0x168] sm:$0xff]
    %v2969 = vld [vmem:[#allocation2 + $0x170] sm:$0xff]
    %v2970 = vld [vmem:[#allocation2 + $0x178] sm:$0xff]
    %v2971 = vpack.c.bf16 %v2924, %v2923
    %v2972 = vpack.c.bf16 %v2926, %v2925
    %v2973 = vpack.c.bf16 %v2928, %v2927
    %v2974 = vpack.c.bf16 %v2930, %v2929
    %v2975 = vpack.c.bf16 %v2932, %v2931
    %v2976 = vpack.c.bf16 %v2934, %v2933
    %v2977 = vpack.c.bf16 %v2936, %v2935
    %v2978 = vpack.c.bf16 %v2938, %v2937
    %v2979 = vpack.c.bf16 %v2940, %v2939
    %v2980 = vpack.c.bf16 %v2942, %v2941
    %v2981 = vpack.c.bf16 %v2944, %v2943
    %v2982 = vpack.c.bf16 %v2946, %v2945
    %v2983 = vpack.c.bf16 %v2948, %v2947
    %v2984 = vpack.c.bf16 %v2950, %v2949
    %v2985 = vpack.c.bf16 %v2952, %v2951
    %v2986 = vpack.c.bf16 %v2954, %v2953
    %v2987 = vpack.c.bf16 %v2956, %v2955
    %v2988 = vpack.c.bf16 %v2958, %v2957
    %v2989 = vpack.c.bf16 %v2960, %v2959
    %v2990 = vpack.c.bf16 %v2962, %v2961
    %v2991 = vpack.c.bf16 %v2964, %v2963
    %v2992 = vpack.c.bf16 %v2966, %v2965
    %v2993 = vpack.c.bf16 %v2968, %v2967
    %v2994 = vpack.c.bf16 %v2970, %v2969
    %v2995 = vld [vmem:[%s7] sm:$0xff]
    %v2996 = vld [vmem:[%s7 + $0x8] sm:$0xff]
    %v2997 = vld [vmem:[%s7 + $0x10] sm:$0xff]
    %v2998 = vld [vmem:[%s7 + $0x18] sm:$0xff]
    %v2999 = vld [vmem:[%s7 + $0x20] sm:$0xff]
    %v3000 = vld [vmem:[%s7 + $0x28] sm:$0xff]
    %v3001 = vld [vmem:[%s7 + $0x30] sm:$0xff]
    %v3002 = vld [vmem:[%s7 + $0x38] sm:$0xff]
    %v3003 = vld [vmem:[%s7 + $0x40] sm:$0xff]
    %v3004 = vld [vmem:[%s7 + $0x48] sm:$0xff]
    %v3005 = vld [vmem:[%s7 + $0x50] sm:$0xff]
    %v3006 = vld [vmem:[%s7 + $0x58] sm:$0xff]
    %v3007 = vld [vmem:[%s7 + $0x60] sm:$0xff]
    %v3008 = vld [vmem:[%s7 + $0x68] sm:$0xff]
    %v3009 = vld [vmem:[%s7 + $0x70] sm:$0xff]
    %v3010 = vld [vmem:[%s7 + $0x78] sm:$0xff]
    %3012 = vset.pattern.permute.xlu0 0
    %3013 = vperm.xlu0 %3012, %v2995
    %v3014 = vpop.permute.xlu0 %3013
    %3017 = vset.pattern.permute.xlu0 0
    %3018 = vperm.xlu0 %3017, %v2996
    %v3019 = vpop.permute.xlu0 %3018
    %3022 = vset.pattern.permute.xlu0 0
    %3023 = vperm.xlu0 %3022, %v2997
    %v3024 = vpop.permute.xlu0 %3023
    %3027 = vset.pattern.permute.xlu0 0
    %3028 = vperm.xlu0 %3027, %v2998
    %v3029 = vpop.permute.xlu0 %3028
    %3032 = vset.pattern.permute.xlu0 0
    %3033 = vperm.xlu0 %3032, %v2999
    %v3034 = vpop.permute.xlu0 %3033
    %3037 = vset.pattern.permute.xlu0 0
    %3038 = vperm.xlu0 %3037, %v3000
    %v3039 = vpop.permute.xlu0 %3038
    %3042 = vset.pattern.permute.xlu0 0
    %3043 = vperm.xlu0 %3042, %v3001
    %v3044 = vpop.permute.xlu0 %3043
    %3047 = vset.pattern.permute.xlu0 0
    %3048 = vperm.xlu0 %3047, %v3002
    %v3049 = vpop.permute.xlu0 %3048
    %3052 = vset.pattern.permute.xlu0 0
    %3053 = vperm.xlu0 %3052, %v3003
    %v3054 = vpop.permute.xlu0 %3053
    %3057 = vset.pattern.permute.xlu0 0
    %3058 = vperm.xlu0 %3057, %v3004
    %v3059 = vpop.permute.xlu0 %3058
    %3062 = vset.pattern.permute.xlu0 0
    %3063 = vperm.xlu0 %3062, %v3005
    %v3064 = vpop.permute.xlu0 %3063
    %3067 = vset.pattern.permute.xlu0 0
    %3068 = vperm.xlu0 %3067, %v3006
    %v3069 = vpop.permute.xlu0 %3068
    %3072 = vset.pattern.permute.xlu0 0
    %3073 = vperm.xlu0 %3072, %v3007
    %v3074 = vpop.permute.xlu0 %3073
    %3077 = vset.pattern.permute.xlu0 0
    %3078 = vperm.xlu0 %3077, %v3008
    %v3079 = vpop.permute.xlu0 %3078
    %3082 = vset.pattern.permute.xlu0 0
    %3083 = vperm.xlu0 %3082, %v3009
    %v3084 = vpop.permute.xlu0 %3083
    %3087 = vset.pattern.permute.xlu0 0
    %3088 = vperm.xlu0 %3087, %v3010
    %v3089 = vpop.permute.xlu0 %3088
    %v3107 = vunpack.c.l.b16 %v2907
    %v3108 = vunpack.c.l.b16 %v2908
    %v3109 = vunpack.c.l.b16 %v2909
    %v3110 = vunpack.c.l.b16 %v2910
    %v3111 = vunpack.c.l.b16 %v2911
    %v3112 = vunpack.c.l.b16 %v2912
    %v3113 = vunpack.c.l.b16 %v2913
    %v3114 = vunpack.c.l.b16 %v2914
    %v3115 = vunpack.c.l.b16 %v2915
    %v3116 = vunpack.c.l.b16 %v2916
    %v3117 = vunpack.c.l.b16 %v2917
    %v3118 = vunpack.c.l.b16 %v2918
    %v3119 = vunpack.c.l.b16 %v2919
    %v3120 = vunpack.c.l.b16 %v2920
    %v3121 = vunpack.c.l.b16 %v2921
    %v3122 = vunpack.c.l.b16 %v2922
    %v3123 = vpack.c.b16 %v3108, %v3107
    %v3124 = vpack.c.b16 %v3110, %v3109
    %v3125 = vpack.c.b16 %v3112, %v3111
    %v3126 = vpack.c.b16 %v3114, %v3113
    %v3127 = vpack.c.b16 %v3116, %v3115
    %v3128 = vpack.c.b16 %v3118, %v3117
    %v3129 = vpack.c.b16 %v3120, %v3119
    %v3130 = vpack.c.b16 %v3122, %v3121
    %3139 = vxpose.xlu0.c.b16.start [1/8] %v3123, 128
    %3140 = vxpose.xlu0.c.b16.cont [2/8] %v3124, 128
    %3141 = vxpose.xlu0.c.b16.cont [3/8] %v3125, 128
    %3142 = vxpose.xlu0.c.b16.cont [4/8] %v3126, 128
    %3143 = vxpose.xlu0.c.b16.cont [5/8] %v3127, 128
    %3144 = vxpose.xlu0.c.b16.cont [6/8] %v3128, 128
    %3145 = vxpose.xlu0.c.b16.cont [7/8] %v3129, 128
    %3146 = vxpose.xlu0.c.b16.end [8/8] %v3130, 128
    %v3147 = vpop.trf.xlu0
    %v3148 = vpop.trf.xlu0
    %v3149 = vpop.trf.xlu0
    %v3150 = vpop.trf.xlu0
    %v3151 = vpop.trf.xlu0
    %v3152 = vpop.trf.xlu0
    %v3153 = vpop.trf.xlu0
    %v3154 = vpop.trf.xlu0
    %3155 = vmatprep.subr.bf16.mxu0 0
    %3156 = vmatpush1.bf16.xpose.msra.mxu0 %v2971
    %3157 = vmatprep.subr.bf16.mxu0 0
    %3158 = vmatpush1.bf16.xpose.msra.mxu0 %v2972
    %3159 = vmatprep.subr.bf16.mxu0 0
    %3160 = vmatpush1.bf16.xpose.msra.mxu0 %v2973
    %3161 = vmatprep.subr.bf16.mxu0 0
    %3162 = vmatpush1.bf16.xpose.msra.mxu0 %v2974
    %3163 = vmatprep.subr.bf16.mxu0 0
    %3164 = vmatpush1.bf16.xpose.msra.mxu0 %v2975
    %3165 = vmatprep.subr.bf16.mxu0 0
    %3166 = vmatpush1.bf16.xpose.msra.mxu0 %v2976
    %3167 = vmatprep.subr.bf16.mxu0 0
    %3168 = vmatpush1.bf16.xpose.msra.mxu0 %v2977
    %3169 = vmatprep.subr.bf16.mxu0 0
    %3170 = vmatpush1.bf16.xpose.msra.mxu0 %v2978
    %3171 = vmatprep.subr.bf16.mxu0 0
    %3172 = vmatpush1.bf16.xpose.msra.mxu0 %v2979
    %3173 = vmatprep.subr.bf16.mxu0 0
    %3174 = vmatpush1.bf16.xpose.msra.mxu0 %v2980
    %3175 = vmatprep.subr.bf16.mxu0 0
    %3176 = vmatpush1.bf16.xpose.msra.mxu0 %v2981
    %3177 = vmatprep.subr.bf16.mxu0 0
    %3178 = vmatpush1.bf16.xpose.msra.mxu0 %v2982
    %3179 = vmatprep.subr.bf16.mxu0 0
    %3180 = vmatpush1.bf16.xpose.msra.mxu0 %v2983
    %3181 = vmatprep.subr.bf16.mxu0 0
    %3182 = vmatpush1.bf16.xpose.msra.mxu0 %v2984
    %3183 = vmatprep.subr.bf16.mxu0 0
    %3184 = vmatpush1.bf16.xpose.msra.mxu0 %v2985
    %3185 = vmatprep.subr.bf16.mxu0 0
    %3186 = vmatpush1.bf16.xpose.msra.mxu0 %v2986
    %3187 = vmatprep.mubr.bf16.mxu0 0
    %3188 = vmatmul.mubr.bf16.gmra.mrb[0].mxu0 %v3147
    %v3189 = vpop.f32.mrb[0].mxu0
    %v3190 = vadd.f32 %v3014, %v3189
    %v3191 = vpop.f32.mrb[0].mxu0
    %v3192 = vadd.f32 %v3014, %v3191
    %v3193 = vpop.f32.mrb[0].mxu0
    %v3194 = vadd.f32 %v3019, %v3193
    %v3195 = vpop.f32.mrb[0].mxu0
    %v3196 = vadd.f32 %v3019, %v3195
    %3197 = vmatprep.mubr.bf16.mxu0 0
    %3198 = vmatmul.mubr.bf16.gmra.mrb[0].mxu0 %v3148
    %v3199 = vpop.f32.mrb[0].mxu0
    %v3200 = vadd.f32 %v3024, %v3199
    %v3201 = vpop.f32.mrb[0].mxu0
    %v3202 = vadd.f32 %v3024, %v3201
    %v3203 = vpop.f32.mrb[0].mxu0
    %v3204 = vadd.f32 %v3029, %v3203
    %v3205 = vpop.f32.mrb[0].mxu0
    %v3206 = vadd.f32 %v3029, %v3205
    %3207 = vmatprep.mubr.bf16.mxu0 0
    %3208 = vmatmul.mubr.bf16.gmra.mrb[0].mxu0 %v3149
    %v3209 = vpop.f32.mrb[0].mxu0
    %v3210 = vadd.f32 %v3034, %v3209
    %v3211 = vpop.f32.mrb[0].mxu0
    %v3212 = vadd.f32 %v3034, %v3211
    %v3213 = vpop.f32.mrb[0].mxu0
    %v3214 = vadd.f32 %v3039, %v3213
    %v3215 = vpop.f32.mrb[0].mxu0
    %v3216 = vadd.f32 %v3039, %v3215
    %3217 = vmatprep.mubr.bf16.mxu0 0
    %3218 = vmatmul.mubr.bf16.gmra.mrb[0].mxu0 %v3150
    %v3219 = vpop.f32.mrb[0].mxu0
    %v3220 = vadd.f32 %v3044, %v3219
    %v3221 = vpop.f32.mrb[0].mxu0
    %v3222 = vadd.f32 %v3044, %v3221
    %v3223 = vpop.f32.mrb[0].mxu0
    %v3224 = vadd.f32 %v3049, %v3223
    %v3225 = vpop.f32.mrb[0].mxu0
    %v3226 = vadd.f32 %v3049, %v3225
    %3227 = vmatprep.mubr.bf16.mxu0 0
    %3228 = vmatmul.mubr.bf16.gmra.mrb[0].mxu0 %v3151
    %v3229 = vpop.f32.mrb[0].mxu0
    %v3230 = vadd.f32 %v3054, %v3229
    %v3231 = vpop.f32.mrb[0].mxu0
    %v3232 = vadd.f32 %v3054, %v3231
    %v3233 = vpop.f32.mrb[0].mxu0
    %v3234 = vadd.f32 %v3059, %v3233
    %v3235 = vpop.f32.mrb[0].mxu0
    %v3236 = vadd.f32 %v3059, %v3235
    %3237 = vmatprep.mubr.bf16.mxu0 0
    %3238 = vmatmul.mubr.bf16.gmra.mrb[0].mxu0 %v3152
    %v3239 = vpop.f32.mrb[0].mxu0
    %v3240 = vadd.f32 %v3064, %v3239
    %v3241 = vpop.f32.mrb[0].mxu0
    %v3242 = vadd.f32 %v3064, %v3241
    %v3243 = vpop.f32.mrb[0].mxu0
    %v3244 = vadd.f32 %v3069, %v3243
    %v3245 = vpop.f32.mrb[0].mxu0
    %v3246 = vadd.f32 %v3069, %v3245
    %3247 = vmatprep.mubr.bf16.mxu0 0
    %3248 = vmatmul.mubr.bf16.gmra.mrb[0].mxu0 %v3153
    %v3249 = vpop.f32.mrb[0].mxu0
    %v3250 = vadd.f32 %v3074, %v3249
    %v3251 = vpop.f32.mrb[0].mxu0
    %v3252 = vadd.f32 %v3074, %v3251
    %v3253 = vpop.f32.mrb[0].mxu0
    %v3254 = vadd.f32 %v3079, %v3253
    %v3255 = vpop.f32.mrb[0].mxu0
    %v3256 = vadd.f32 %v3079, %v3255
    %3257 = vmatprep.mubr.bf16.mxu0 0
    %3258 = vmatmul.mubr.bf16.gmra.mrb[0].mxu0 %v3154
    %v3259 = vpop.f32.mrb[0].mxu0
    %v3260 = vadd.f32 %v3084, %v3259
    %v3261 = vpop.f32.mrb[0].mxu0
    %v3262 = vadd.f32 %v3084, %v3261
    %v3263 = vpop.f32.mrb[0].mxu0
    %v3264 = vadd.f32 %v3089, %v3263
    %v3265 = vpop.f32.mrb[0].mxu0
    %v3266 = vadd.f32 %v3089, %v3265
    %3267 = vdwg.mxu0
    %3268 = vmatprep.subr.bf16.mxu0 0
    %3269 = vmatpush1.bf16.xpose.msra.mxu0 %v2987
    %3270 = vmatprep.subr.bf16.mxu0 0
    %3271 = vmatpush1.bf16.xpose.msra.mxu0 %v2988
    %3272 = vmatprep.subr.bf16.mxu0 0
    %3273 = vmatpush1.bf16.xpose.msra.mxu0 %v2989
    %3274 = vmatprep.subr.bf16.mxu0 0
    %3275 = vmatpush1.bf16.xpose.msra.mxu0 %v2990
    %3276 = vmatprep.subr.bf16.mxu0 0
    %3277 = vmatpush1.bf16.xpose.msra.mxu0 %v2991
    %3278 = vmatprep.subr.bf16.mxu0 0
    %3279 = vmatpush1.bf16.xpose.msra.mxu0 %v2992
    %3280 = vmatprep.subr.bf16.mxu0 0
    %3281 = vmatpush1.bf16.xpose.msra.mxu0 %v2993
    %3282 = vmatprep.subr.bf16.mxu0 0
    %3283 = vmatpush1.bf16.xpose.msra.mxu0 %v2994
    %3284 = vmatprep.subr.bf16.mxu0 0
    %3285 = vmatpush1.bf16.xpose.msra.mxu0 0
    %3286 = vmatprep.subr.bf16.mxu0 0
    %3287 = vmatpush1.bf16.xpose.msra.mxu0 0
    %3288 = vmatprep.subr.bf16.mxu0 0
    %3289 = vmatpush1.bf16.xpose.msra.mxu0 0
    %3290 = vmatprep.subr.bf16.mxu0 0
    %3291 = vmatpush1.bf16.xpose.msra.mxu0 0
    %3292 = vmatprep.subr.bf16.mxu0 0
    %3293 = vmatpush1.bf16.xpose.msra.mxu0 0
    %3294 = vmatprep.subr.bf16.mxu0 0
    %3295 = vmatpush1.bf16.xpose.msra.mxu0 0
    %3296 = vmatprep.subr.bf16.mxu0 0
    %3297 = vmatpush1.bf16.xpose.msra.mxu0 0
    %3298 = vmatprep.subr.bf16.mxu0 0
    %3299 = vmatpush1.bf16.xpose.msra.mxu0 0
    %3300 = vmatprep.mubr.bf16.mxu0 0
    %3301 = vmatmul.mubr.bf16.gmra.mrb[0].mxu0 %v3147
    %v3302 = vpop.f32.mrb[0].mxu0
    %v3303 = vadd.f32 %v3014, %v3302
    %v3304 = vpop.f32.mrb[0].mxu0
    %v3305 = vpop.f32.mrb[0].mxu0
    %v3306 = vadd.f32 %v3019, %v3305
    %v3307 = vpop.f32.mrb[0].mxu0
    %3308 = vmatprep.mubr.bf16.mxu0 0
    %3309 = vmatmul.mubr.bf16.gmra.mrb[0].mxu0 %v3148
    %v3310 = vpop.f32.mrb[0].mxu0
    %v3311 = vadd.f32 %v3024, %v3310
    %v3312 = vpop.f32.mrb[0].mxu0
    %v3313 = vpop.f32.mrb[0].mxu0
    %v3314 = vadd.f32 %v3029, %v3313
    %v3315 = vpop.f32.mrb[0].mxu0
    %3316 = vmatprep.mubr.bf16.mxu0 0
    %3317 = vmatmul.mubr.bf16.gmra.mrb[0].mxu0 %v3149
    %v3318 = vpop.f32.mrb[0].mxu0
    %v3319 = vadd.f32 %v3034, %v3318
    %v3320 = vpop.f32.mrb[0].mxu0
    %v3321 = vpop.f32.mrb[0].mxu0
    %v3322 = vadd.f32 %v3039, %v3321
    %v3323 = vpop.f32.mrb[0].mxu0
    %3324 = vmatprep.mubr.bf16.mxu0 0
    %3325 = vmatmul.mubr.bf16.gmra.mrb[0].mxu0 %v3150
    %v3326 = vpop.f32.mrb[0].mxu0
    %v3327 = vadd.f32 %v3044, %v3326
    %v3328 = vpop.f32.mrb[0].mxu0
    %v3329 = vpop.f32.mrb[0].mxu0
    %v3330 = vadd.f32 %v3049, %v3329
    %v3331 = vpop.f32.mrb[0].mxu0
    %3332 = vmatprep.mubr.bf16.mxu0 0
    %3333 = vmatmul.mubr.bf16.gmra.mrb[0].mxu0 %v3151
    %v3334 = vpop.f32.mrb[0].mxu0
    %v3335 = vadd.f32 %v3054, %v3334
    %v3336 = vpop.f32.mrb[0].mxu0
    %v3337 = vpop.f32.mrb[0].mxu0
    %v3338 = vadd.f32 %v3059, %v3337
    %v3339 = vpop.f32.mrb[0].mxu0
    %3340 = vmatprep.mubr.bf16.mxu0 0
    %3341 = vmatmul.mubr.bf16.gmra.mrb[0].mxu0 %v3152
    %v3342 = vpop.f32.mrb[0].mxu0
    %v3343 = vadd.f32 %v3064, %v3342
    %v3344 = vpop.f32.mrb[0].mxu0
    %v3345 = vpop.f32.mrb[0].mxu0
    %v3346 = vadd.f32 %v3069, %v3345
    %v3347 = vpop.f32.mrb[0].mxu0
    %3348 = vmatprep.mubr.bf16.mxu0 0
    %3349 = vmatmul.mubr.bf16.gmra.mrb[0].mxu0 %v3153
    %v3350 = vpop.f32.mrb[0].mxu0
    %v3351 = vadd.f32 %v3074, %v3350
    %v3352 = vpop.f32.mrb[0].mxu0
    %v3353 = vpop.f32.mrb[0].mxu0
    %v3354 = vadd.f32 %v3079, %v3353
    %v3355 = vpop.f32.mrb[0].mxu0
    %3356 = vmatprep.mubr.bf16.mxu0 0
    %3357 = vmatmul.mubr.bf16.gmra.mrb[0].mxu0 %v3154
    %v3358 = vpop.f32.mrb[0].mxu0
    %v3359 = vadd.f32 %v3084, %v3358
    %v3360 = vpop.f32.mrb[0].mxu0
    %v3361 = vpop.f32.mrb[0].mxu0
    %v3362 = vadd.f32 %v3089, %v3361
    %v3363 = vpop.f32.mrb[0].mxu0
    %3364 = vdwg.mxu0
    %v3365 = vxor.u32 %v3190, 2147483648
    %v3366 = vxor.u32 %v3192, 2147483648
    %v3367 = vxor.u32 %v3303, 2147483648
    %v3368 = vxor.u32 %v3194, 2147483648
    %v3369 = vxor.u32 %v3196, 2147483648
    %v3370 = vxor.u32 %v3306, 2147483648
    %v3371 = vxor.u32 %v3200, 2147483648
    %v3372 = vxor.u32 %v3202, 2147483648
    %v3373 = vxor.u32 %v3311, 2147483648
    %v3374 = vxor.u32 %v3204, 2147483648
    %v3375 = vxor.u32 %v3206, 2147483648
    %v3376 = vxor.u32 %v3314, 2147483648
    %v3377 = vxor.u32 %v3210, 2147483648
    %v3378 = vxor.u32 %v3212, 2147483648
    %v3379 = vxor.u32 %v3319, 2147483648
    %v3380 = vxor.u32 %v3214, 2147483648
    %v3381 = vxor.u32 %v3216, 2147483648
    %v3382 = vxor.u32 %v3322, 2147483648
    %v3383 = vxor.u32 %v3220, 2147483648
    %v3384 = vxor.u32 %v3222, 2147483648
    %v3385 = vxor.u32 %v3327, 2147483648
    %v3386 = vxor.u32 %v3224, 2147483648
    %v3387 = vxor.u32 %v3226, 2147483648
    %v3388 = vxor.u32 %v3330, 2147483648
    %v3389 = vxor.u32 %v3230, 2147483648
    %v3390 = vxor.u32 %v3232, 2147483648
    %v3391 = vxor.u32 %v3335, 2147483648
    %v3392 = vxor.u32 %v3234, 2147483648
    %v3393 = vxor.u32 %v3236, 2147483648
    %v3394 = vxor.u32 %v3338, 2147483648
    %v3395 = vxor.u32 %v3240, 2147483648
    %v3396 = vxor.u32 %v3242, 2147483648
    %v3397 = vxor.u32 %v3343, 2147483648
    %v3398 = vxor.u32 %v3244, 2147483648
    %v3399 = vxor.u32 %v3246, 2147483648
    %v3400 = vxor.u32 %v3346, 2147483648
    %v3401 = vxor.u32 %v3250, 2147483648
    %v3402 = vxor.u32 %v3252, 2147483648
    %v3403 = vxor.u32 %v3351, 2147483648
    %v3404 = vxor.u32 %v3254, 2147483648
    %v3405 = vxor.u32 %v3256, 2147483648
    %v3406 = vxor.u32 %v3354, 2147483648
    %v3407 = vxor.u32 %v3260, 2147483648
    %v3408 = vxor.u32 %v3262, 2147483648
    %v3409 = vxor.u32 %v3359, 2147483648
    %v3410 = vxor.u32 %v3264, 2147483648
    %v3411 = vxor.u32 %v3266, 2147483648
    %v3412 = vxor.u32 %v3362, 2147483648
    %v3413 = vmul.f32 %v3365, 1.442695
    %v3414 = vpow.pop %v3413
    %v3415 = vmul.f32 %v3366, 1.442695
    %v3416 = vpow.pop %v3415
    %v3417 = vmul.f32 %v3367, 1.442695
    %v3418 = vpow.pop %v3417
    %v3419 = vmul.f32 %v3368, 1.442695
    %v3420 = vpow.pop %v3419
    %v3421 = vmul.f32 %v3369, 1.442695
    %v3422 = vpow.pop %v3421
    %v3423 = vmul.f32 %v3370, 1.442695
    %v3424 = vpow.pop %v3423
    %v3425 = vmul.f32 %v3371, 1.442695
    %v3426 = vpow.pop %v3425
    %v3427 = vmul.f32 %v3372, 1.442695
    %v3428 = vpow.pop %v3427
    %v3429 = vmul.f32 %v3373, 1.442695
    %v3430 = vpow.pop %v3429
    %v3431 = vmul.f32 %v3374, 1.442695
    %v3432 = vpow.pop %v3431
    %v3433 = vmul.f32 %v3375, 1.442695
    %v3434 = vpow.pop %v3433
    %v3435 = vmul.f32 %v3376, 1.442695
    %v3436 = vpow.pop %v3435
    %v3437 = vmul.f32 %v3377, 1.442695
    %v3438 = vpow.pop %v3437
    %v3439 = vmul.f32 %v3378, 1.442695
    %v3440 = vpow.pop %v3439
    %v3441 = vmul.f32 %v3379, 1.442695
    %v3442 = vpow.pop %v3441
    %v3443 = vmul.f32 %v3380, 1.442695
    %v3444 = vpow.pop %v3443
    %v3445 = vmul.f32 %v3381, 1.442695
    %v3446 = vpow.pop %v3445
    %v3447 = vmul.f32 %v3382, 1.442695
    %v3448 = vpow.pop %v3447
    %v3449 = vmul.f32 %v3383, 1.442695
    %v3450 = vpow.pop %v3449
    %v3451 = vmul.f32 %v3384, 1.442695
    %v3452 = vpow.pop %v3451
    %v3453 = vmul.f32 %v3385, 1.442695
    %v3454 = vpow.pop %v3453
    %v3455 = vmul.f32 %v3386, 1.442695
    %v3456 = vpow.pop %v3455
    %v3457 = vmul.f32 %v3387, 1.442695
    %v3458 = vpow.pop %v3457
    %v3459 = vmul.f32 %v3388, 1.442695
    %v3460 = vpow.pop %v3459
    %v3461 = vmul.f32 %v3389, 1.442695
    %v3462 = vpow.pop %v3461
    %v3463 = vmul.f32 %v3390, 1.442695
    %v3464 = vpow.pop %v3463
    %v3465 = vmul.f32 %v3391, 1.442695
    %v3466 = vpow.pop %v3465
    %v3467 = vmul.f32 %v3392, 1.442695
    %v3468 = vpow.pop %v3467
    %v3469 = vmul.f32 %v3393, 1.442695
    %v3470 = vpow.pop %v3469
    %v3471 = vmul.f32 %v3394, 1.442695
    %v3472 = vpow.pop %v3471
    %v3473 = vmul.f32 %v3395, 1.442695
    %v3474 = vpow.pop %v3473
    %v3475 = vmul.f32 %v3396, 1.442695
    %v3476 = vpow.pop %v3475
    %v3477 = vmul.f32 %v3397, 1.442695
    %v3478 = vpow.pop %v3477
    %v3479 = vmul.f32 %v3398, 1.442695
    %v3480 = vpow.pop %v3479
    %v3481 = vmul.f32 %v3399, 1.442695
    %v3482 = vpow.pop %v3481
    %v3483 = vmul.f32 %v3400, 1.442695
    %v3484 = vpow.pop %v3483
    %v3485 = vmul.f32 %v3401, 1.442695
    %v3486 = vpow.pop %v3485
    %v3487 = vmul.f32 %v3402, 1.442695
    %v3488 = vpow.pop %v3487
    %v3489 = vmul.f32 %v3403, 1.442695
    %v3490 = vpow.pop %v3489
    %v3491 = vmul.f32 %v3404, 1.442695
    %v3492 = vpow.pop %v3491
    %v3493 = vmul.f32 %v3405, 1.442695
    %v3494 = vpow.pop %v3493
    %v3495 = vmul.f32 %v3406, 1.442695
    %v3496 = vpow.pop %v3495
    %v3497 = vmul.f32 %v3407, 1.442695
    %v3498 = vpow.pop %v3497
    %v3499 = vmul.f32 %v3408, 1.442695
    %v3500 = vpow.pop %v3499
    %v3501 = vmul.f32 %v3409, 1.442695
    %v3502 = vpow.pop %v3501
    %v3503 = vmul.f32 %v3410, 1.442695
    %v3504 = vpow.pop %v3503
    %v3505 = vmul.f32 %v3411, 1.442695
    %v3506 = vpow.pop %v3505
    %v3507 = vmul.f32 %v3412, 1.442695
    %v3508 = vpow.pop %v3507
    %v3509 = vadd.f32 %v3414, 1.0
    %v3510 = vadd.f32 %v3416, 1.0
    %v3511 = vadd.f32 %v3418, 1.0
    %v3512 = vadd.f32 %v3420, 1.0
    %v3513 = vadd.f32 %v3422, 1.0
    %v3514 = vadd.f32 %v3424, 1.0
    %v3515 = vadd.f32 %v3426, 1.0
    %v3516 = vadd.f32 %v3428, 1.0
    %v3517 = vadd.f32 %v3430, 1.0
    %v3518 = vadd.f32 %v3432, 1.0
    %v3519 = vadd.f32 %v3434, 1.0
    %v3520 = vadd.f32 %v3436, 1.0
    %v3521 = vadd.f32 %v3438, 1.0
    %v3522 = vadd.f32 %v3440, 1.0
    %v3523 = vadd.f32 %v3442, 1.0
    %v3524 = vadd.f32 %v3444, 1.0
    %v3525 = vadd.f32 %v3446, 1.0
    %v3526 = vadd.f32 %v3448, 1.0
    %v3527 = vadd.f32 %v3450, 1.0
    %v3528 = vadd.f32 %v3452, 1.0
    %v3529 = vadd.f32 %v3454, 1.0
    %v3530 = vadd.f32 %v3456, 1.0
    %v3531 = vadd.f32 %v3458, 1.0
    %v3532 = vadd.f32 %v3460, 1.0
    %v3533 = vadd.f32 %v3462, 1.0
    %v3534 = vadd.f32 %v3464, 1.0
    %v3535 = vadd.f32 %v3466, 1.0
    %v3536 = vadd.f32 %v3468, 1.0
    %v3537 = vadd.f32 %v3470, 1.0
    %v3538 = vadd.f32 %v3472, 1.0
    %v3539 = vadd.f32 %v3474, 1.0
    %v3540 = vadd.f32 %v3476, 1.0
    %v3541 = vadd.f32 %v3478, 1.0
    %v3542 = vadd.f32 %v3480, 1.0
    %v3543 = vadd.f32 %v3482, 1.0
    %v3544 = vadd.f32 %v3484, 1.0
    %v3545 = vadd.f32 %v3486, 1.0
    %v3546 = vadd.f32 %v3488, 1.0
    %v3547 = vadd.f32 %v3490, 1.0
    %v3548 = vadd.f32 %v3492, 1.0
    %v3549 = vadd.f32 %v3494, 1.0
    %v3550 = vadd.f32 %v3496, 1.0
    %v3551 = vadd.f32 %v3498, 1.0
    %v3552 = vadd.f32 %v3500, 1.0
    %v3553 = vadd.f32 %v3502, 1.0
    %v3554 = vadd.f32 %v3504, 1.0
    %v3555 = vadd.f32 %v3506, 1.0
    %v3556 = vadd.f32 %v3508, 1.0
    %v3557 = vrcp.pop %v3509
    %v3558 = vmul.f32 1.0, %v3557
    %v3559 = vrcp.pop %v3510
    %v3560 = vmul.f32 1.0, %v3559
    %v3561 = vrcp.pop %v3511
    %v3562 = vmul.f32 1.0, %v3561
    %v3563 = vrcp.pop %v3512
    %v3564 = vmul.f32 1.0, %v3563
    %v3565 = vrcp.pop %v3513
    %v3566 = vmul.f32 1.0, %v3565
    %v3567 = vrcp.pop %v3514
    %v3568 = vmul.f32 1.0, %v3567
    %v3569 = vrcp.pop %v3515
    %v3570 = vmul.f32 1.0, %v3569
    %v3571 = vrcp.pop %v3516
    %v3572 = vmul.f32 1.0, %v3571
    %v3573 = vrcp.pop %v3517
    %v3574 = vmul.f32 1.0, %v3573
    %v3575 = vrcp.pop %v3518
    %v3576 = vmul.f32 1.0, %v3575
    %v3577 = vrcp.pop %v3519
    %v3578 = vmul.f32 1.0, %v3577
    %v3579 = vrcp.pop %v3520
    %v3580 = vmul.f32 1.0, %v3579
    %v3581 = vrcp.pop %v3521
    %v3582 = vmul.f32 1.0, %v3581
    %v3583 = vrcp.pop %v3522
    %v3584 = vmul.f32 1.0, %v3583
    %v3585 = vrcp.pop %v3523
    %v3586 = vmul.f32 1.0, %v3585
    %v3587 = vrcp.pop %v3524
    %v3588 = vmul.f32 1.0, %v3587
    %v3589 = vrcp.pop %v3525
    %v3590 = vmul.f32 1.0, %v3589
    %v3591 = vrcp.pop %v3526
    %v3592 = vmul.f32 1.0, %v3591
    %v3593 = vrcp.pop %v3527
    %v3594 = vmul.f32 1.0, %v3593
    %v3595 = vrcp.pop %v3528
    %v3596 = vmul.f32 1.0, %v3595
    %v3597 = vrcp.pop %v3529
    %v3598 = vmul.f32 1.0, %v3597
    %v3599 = vrcp.pop %v3530
    %v3600 = vmul.f32 1.0, %v3599
    %v3601 = vrcp.pop %v3531
    %v3602 = vmul.f32 1.0, %v3601
    %v3603 = vrcp.pop %v3532
    %v3604 = vmul.f32 1.0, %v3603
    %v3605 = vrcp.pop %v3533
    %v3606 = vmul.f32 1.0, %v3605
    %v3607 = vrcp.pop %v3534
    %v3608 = vmul.f32 1.0, %v3607
    %v3609 = vrcp.pop %v3535
    %v3610 = vmul.f32 1.0, %v3609
    %v3611 = vrcp.pop %v3536
    %v3612 = vmul.f32 1.0, %v3611
    %v3613 = vrcp.pop %v3537
    %v3614 = vmul.f32 1.0, %v3613
    %v3615 = vrcp.pop %v3538
    %v3616 = vmul.f32 1.0, %v3615
    %v3617 = vrcp.pop %v3539
    %v3618 = vmul.f32 1.0, %v3617
    %v3619 = vrcp.pop %v3540
    %v3620 = vmul.f32 1.0, %v3619
    %v3621 = vrcp.pop %v3541
    %v3622 = vmul.f32 1.0, %v3621
    %v3623 = vrcp.pop %v3542
    %v3624 = vmul.f32 1.0, %v3623
    %v3625 = vrcp.pop %v3543
    %v3626 = vmul.f32 1.0, %v3625
    %v3627 = vrcp.pop %v3544
    %v3628 = vmul.f32 1.0, %v3627
    %v3629 = vrcp.pop %v3545
    %v3630 = vmul.f32 1.0, %v3629
    %v3631 = vrcp.pop %v3546
    %v3632 = vmul.f32 1.0, %v3631
    %v3633 = vrcp.pop %v3547
    %v3634 = vmul.f32 1.0, %v3633
    %v3635 = vrcp.pop %v3548
    %v3636 = vmul.f32 1.0, %v3635
    %v3637 = vrcp.pop %v3549
    %v3638 = vmul.f32 1.0, %v3637
    %v3639 = vrcp.pop %v3550
    %v3640 = vmul.f32 1.0, %v3639
    %v3641 = vrcp.pop %v3551
    %v3642 = vmul.f32 1.0, %v3641
    %v3643 = vrcp.pop %v3552
    %v3644 = vmul.f32 1.0, %v3643
    %v3645 = vrcp.pop %v3553
    %v3646 = vmul.f32 1.0, %v3645
    %v3647 = vrcp.pop %v3554
    %v3648 = vmul.f32 1.0, %v3647
    %v3649 = vrcp.pop %v3555
    %v3650 = vmul.f32 1.0, %v3649
    %v3651 = vrcp.pop %v3556
    %v3652 = vmul.f32 1.0, %v3651
    %3653 = vst [vmem:[%s8] sm:$0xff] %v3558
    %3654 = vst [vmem:[%s8 + $0x8] sm:$0xff] %v3560
    %3655 = vst [vmem:[%s8 + $0x10] sm:$0xff] %v3562
    %3656 = vst [vmem:[%s8 + $0x18] sm:$0xff] %v3564
    %3657 = vst [vmem:[%s8 + $0x20] sm:$0xff] %v3566
    %3658 = vst [vmem:[%s8 + $0x28] sm:$0xff] %v3568
    %3659 = vst [vmem:[%s8 + $0x30] sm:$0xff] %v3570
    %3660 = vst [vmem:[%s8 + $0x38] sm:$0xff] %v3572
    %3661 = vst [vmem:[%s8 + $0x40] sm:$0xff] %v3574
    %3662 = vst [vmem:[%s8 + $0x48] sm:$0xff] %v3576
    %3663 = vst [vmem:[%s8 + $0x50] sm:$0xff] %v3578
    %3664 = vst [vmem:[%s8 + $0x58] sm:$0xff] %v3580
    %3665 = vst [vmem:[%s8 + $0x60] sm:$0xff] %v3582
    %3666 = vst [vmem:[%s8 + $0x68] sm:$0xff] %v3584
    %3667 = vst [vmem:[%s8 + $0x70] sm:$0xff] %v3586
    %3668 = vst [vmem:[%s8 + $0x78] sm:$0xff] %v3588
    %3669 = vst [vmem:[%s8 + $0x80] sm:$0xff] %v3590
    %3670 = vst [vmem:[%s8 + $0x88] sm:$0xff] %v3592
    %3671 = vst [vmem:[%s8 + $0x90] sm:$0xff] %v3594
    %3672 = vst [vmem:[%s8 + $0x98] sm:$0xff] %v3596
    %3673 = vst [vmem:[%s8 + $0xa0] sm:$0xff] %v3598
    %3674 = vst [vmem:[%s8 + $0xa8] sm:$0xff] %v3600
    %3675 = vst [vmem:[%s8 + $0xb0] sm:$0xff] %v3602
    %3676 = vst [vmem:[%s8 + $0xb8] sm:$0xff] %v3604
    %3677 = vst [vmem:[%s8 + $0xc0] sm:$0xff] %v3606
    %3678 = vst [vmem:[%s8 + $0xc8] sm:$0xff] %v3608
    %3679 = vst [vmem:[%s8 + $0xd0] sm:$0xff] %v3610
    %3680 = vst [vmem:[%s8 + $0xd8] sm:$0xff] %v3612
    %3681 = vst [vmem:[%s8 + $0xe0] sm:$0xff] %v3614
    %3682 = vst [vmem:[%s8 + $0xe8] sm:$0xff] %v3616
    %3683 = vst [vmem:[%s8 + $0xf0] sm:$0xff] %v3618
    %3684 = vst [vmem:[%s8 + $0xf8] sm:$0xff] %v3620
    %3685 = vst [vmem:[%s8 + $0x100] sm:$0xff] %v3622
    %3686 = vst [vmem:[%s8 + $0x108] sm:$0xff] %v3624
    %3687 = vst [vmem:[%s8 + $0x110] sm:$0xff] %v3626
    %3688 = vst [vmem:[%s8 + $0x118] sm:$0xff] %v3628
    %3689 = vst [vmem:[%s8 + $0x120] sm:$0xff] %v3630
    %3690 = vst [vmem:[%s8 + $0x128] sm:$0xff] %v3632
    %3691 = vst [vmem:[%s8 + $0x130] sm:$0xff] %v3634
    %3692 = vst [vmem:[%s8 + $0x138] sm:$0xff] %v3636
    %3693 = vst [vmem:[%s8 + $0x140] sm:$0xff] %v3638
    %3694 = vst [vmem:[%s8 + $0x148] sm:$0xff] %v3640
    %3695 = vst [vmem:[%s8 + $0x150] sm:$0xff] %v3642
    %3696 = vst [vmem:[%s8 + $0x158] sm:$0xff] %v3644
    %3697 = vst [vmem:[%s8 + $0x160] sm:$0xff] %v3646
    %3698 = vst [vmem:[%s8 + $0x168] sm:$0xff] %v3648
    %3699 = vst [vmem:[%s8 + $0x170] sm:$0xff] %v3650
    %3700 = vst [vmem:[%s8 + $0x178] sm:$0xff] %v3652
    // Predicated region
    $region46: #{gcn_encoder_apply.1} parent=1 // pred_check
      _
    $region47: #{gcn_encoder_apply.1} parent=1 // pred_check_branch
      %3702 = sbr.rel (0) target = $region49
    $region48: #{gcn_encoder_apply.1} parent=1 // pred_region
      _
    $region49: #{gcn_encoder_apply.1} parent=1 // pred_fallthru
      _
    // Predicated region
    $region50: #{gcn_encoder_apply.1} parent=1 // pred_check
      _
    $region51: #{gcn_encoder_apply.1} parent=1 // pred_check_branch
      %3704 = sbr.rel (0) target = $region53
    $region52: #{gcn_encoder_apply.1} parent=1 // pred_region
      _
    $region53: #{gcn_encoder_apply.1} parent=1 // pred_fallthru
      _
    %3705 = vsyncpa [#allocation4], 1
    %3706 = vsyncpa [#allocation6], 1

</llo_original>
